<compile_context>
chip_gen: v7x
topology: tpu7x:2x2x1
jax: 0.10.0
libtpu: 0.0.40
codegen_flags: <defaults>
</compile_context>

<pallas_src>
import jax
import jax.numpy as jnp
from jax.experimental import pallas as pl
from jax.experimental.pallas import tpu as pltpu

HIDDEN = 1024
MID = 512
OUT = 1
VOCAB = 64             # stand-in embedding table size


def _round_up(x, m):
    return ((x + m - 1) // m) * m


def _pick_tile(batch):
    """Batch tile size.

    * B >= 1024: TB=512 (amortize per-step overhead; capped at 512 so the
      working set stays well inside v7x's 64 MiB physical VMEM per TC).
    * 512 <= B < 1024: TB=256 -> >= 2 grid steps, no padding waste.
    * 256 <= B < 512: TB=128 -> >= 2 grid steps so v7x's 2 TCs both get work.
    * B < 256: single step, rounded to 16 rows (bf16 packs 16 rows/sublane grp).
    """
    if batch >= 1024:
        return 512
    if batch >= 512:
        return 256
    if batch >= 256:
        return 128
    return _round_up(batch, 16)


def _sts_head_kernel(x_ref, w1_ref, b1_ref, w2_ref, b2_ref, w3_ref, b3_ref,
                     o_ref):
    """Fused MLP head on one batch tile.

    out[0, b] = relu(relu(x@W1+b1)@W2+b2) . w3 + b3, written lane-dense as a
    [1, TB] row (batch along lanes).
    """
    x = x_ref[...]                                             # bf16 [TB,1024]

    z1 = jnp.dot(x, w1_ref[...], preferred_element_type=jnp.float32)
    z1 = jnp.maximum(z1 + b1_ref[...], 0.0)                    # f32 [TB,1024]

    z2 = jnp.dot(z1.astype(jnp.bfloat16), w2_ref[...],
                 preferred_element_type=jnp.float32)
    z2 = jnp.maximum(z2 + b2_ref[...], 0.0)                    # f32 [TB, 512]

    # Final layer has out_features=1. Compute it transposed (w3 . z2^T, the
    # standard NT / flash-attention contraction) so the result lands as a
    # lane-dense [1, TB] row: unmasked stores and 4*TB bytes of writeback
    # instead of a broadcast [TB, 128] slab.
    z3 = jnp.einsum('ok,bk->ob', w3_ref[...], z2.astype(jnp.bfloat16),
                    preferred_element_type=jnp.float32)        # f32 [1, TB]
    o_ref[...] = (z3 + b3_ref[0]).astype(o_ref.dtype)


def sts_head(x_cls, w1, b1, w2, b2, w3, b3):
    """Classifier head. x_cls: [B, 1024] f32 -> [B, 1] f32.

    w1: [1024,1024] bf16, w2: [1024,512] bf16 (stored [in, out]),
    w3: [1, 512] bf16 (row vector), b1: [1,1024] f32, b2: [1,512] f32,
    b3: [1] f32 (scalar, SMEM).
    """
    B = x_cls.shape[0]
    TB = _pick_tile(B)
    Bp = _round_up(B, TB)
    nb = Bp // TB

    x = x_cls.astype(jnp.bfloat16)          # halve the x DMA / VMEM footprint
    if Bp != B:
        # Padded rows flow through the head and produce garbage values that
        # are sliced away below; nothing in-kernel reduces over the batch.
        x = jnp.pad(x, ((0, Bp - B), (0, 0)))

    w_bytes = (HIDDEN * HIDDEN + HIDDEN * MID + MID) * 2       # bf16 weights
    cost = pl.CostEstimate(
        flops=2 * Bp * (HIDDEN * HIDDEN + HIDDEN * MID + MID),
        transcendentals=0,
        bytes_accessed=Bp * HIDDEN * 2 + w_bytes
        + (HIDDEN + MID + 1) * 4 + Bp * 4,
    )

    out = pl.pallas_call(
        _sts_head_kernel,
        out_shape=jax.ShapeDtypeStruct((1, Bp), jnp.float32),
        grid_spec=pltpu.PrefetchScalarGridSpec(
            num_scalar_prefetch=0,
            grid=(nb,),
            in_specs=[
                # x tile: pipelined (double-buffered) across batch tiles.
                pl.BlockSpec((TB, HIDDEN), lambda i: (i, 0)),
                # Weights/biases: constant block index -> VMEM-resident,
                # single-buffered (nothing to overlap).
                pl.BlockSpec((HIDDEN, HIDDEN), lambda i: (0, 0),
                             pipeline_mode=pl.Buffered(1)),            # W1
                pl.BlockSpec((1, HIDDEN), lambda i: (0, 0),
                             pipeline_mode=pl.Buffered(1)),            # b1
                pl.BlockSpec((HIDDEN, MID), lambda i: (0, 0),
                             pipeline_mode=pl.Buffered(1)),            # W2
                pl.BlockSpec((1, MID), lambda i: (0, 0),
                             pipeline_mode=pl.Buffered(1)),            # b2
                pl.BlockSpec((1, MID), lambda i: (0, 0),
                             pipeline_mode=pl.Buffered(1)),            # w3 row
                pl.BlockSpec(memory_space=pltpu.MemorySpace.SMEM),     # b3
            ],
            # Lane-dense transposed output: grid step i writes columns
            # [i*TB, (i+1)*TB) of the single output row.
            out_specs=pl.BlockSpec((1, TB), lambda i: (0, i)),
        ),
        compiler_params=pltpu.CompilerParams(
            dimension_semantics=("parallel",),   # shard batch over v7x's 2 TCs
            vmem_limit_bytes=32 << 20,           # fits v5e / v6e / v7x
        ),
        cost_estimate=cost,
    )(x, w1, b1, w2, b2, w3, b3)

    return out[0, :B].reshape(B, OUT)


def init_params(key):
    """Parameter init matching the module's layer shapes (weights in bf16)."""
    ks = jax.random.split(key, 7)

    def lin(kw, kb, fan_in, fan_out):
        bound = 1.0 / jnp.sqrt(fan_in)
        # stored as [in, out] (transpose of torch's [out, in])
        w = jax.random.uniform(kw, (fan_in, fan_out), jnp.float32, -bound, bound)
        b = jax.random.uniform(kb, (1, fan_out), jnp.float32, -bound, bound)
        return w.astype(jnp.bfloat16), b

    w1, b1 = lin(ks[0], ks[1], HIDDEN, HIDDEN)
    w2, b2 = lin(ks[2], ks[3], HIDDEN, MID)
    w3t, b3t = lin(ks[4], ks[5], MID, OUT)      # w3t: [512, 1] bf16
    w3 = w3t.reshape(1, MID)                    # row vector [1, 512] bf16
    b3 = b3t.reshape(1)                         # scalar as shape (1,) f32
    # stand-in "BERT" embedding table (vocab x 1024)
    emb = jax.random.normal(ks[6], (VOCAB, HIDDEN), jnp.float32) * 0.02
    return (w1, b1, w2, b2, w3, b3), emb


def sts_classifier_forward(token_ids, params, emb):
    """Forward mirroring StsClassifier.forward.

    token_ids: [B, S] int32 token ids.
    TODO(synk): the pretrained bert-large-cased encoder is replaced by a
    deterministic embedding lookup producing the [CLS] hidden state.
    """
    # Gather only the [CLS] token -- no [B, S, 1024] intermediate.
    x_cls = jnp.take(emb, token_ids[:, 0], axis=0)     # [B, 1024] glue
    w1, b1, w2, b2, w3, b3 = params
    return sts_head(x_cls, w1, b1, w2, b2, w3, b3)


def _reference(token_ids, params, emb):
    """Pure-JAX reference with matching bf16 quantization."""
    x = jnp.take(emb, token_ids[:, 0], axis=0).astype(jnp.bfloat16)
    w1, b1, w2, b2, w3, b3 = params
    z1 = jnp.maximum(
        jnp.dot(x, w1, preferred_element_type=jnp.float32) + b1, 0.0)
    z2 = jnp.maximum(
        jnp.dot(z1.astype(jnp.bfloat16), w2,
                preferred_element_type=jnp.float32) + b2, 0.0)
    z3 = jnp.dot(z2.astype(jnp.bfloat16), w3.T,
                 preferred_element_type=jnp.float32) + b3[0]
    return z3


if __name__ == "__main__":
    key = jax.random.PRNGKey(0)
    k_param, k_tok = jax.random.split(key)

    params, emb = init_params(k_param)

    B, S = 2, 8
    token_ids = jax.random.randint(k_tok, (B, S), 0, VOCAB, dtype=jnp.int32)

    out = sts_classifier_forward(token_ids, params, emb)
    out = jax.block_until_ready(out)

    ref = _reference(token_ids, params, emb)
    assert out.shape == (B, OUT), out.shape
    assert jnp.allclose(out, ref, atol=1e-3, rtol=1e-3), (out, ref)

    print("KERNEL_OK")
</pallas_src>

<mosaic_0001>
module attributes {stable_mosaic.version = 11 : i64} {
  func.func @_sts_head_kernel(%arg0: i32, %arg1: memref<16x1024xbf16, #tpu.memory_space<vmem>>, %arg2: memref<1024x1024xbf16, #tpu.memory_space<vmem>>, %arg3: memref<1x1024xf32, #tpu.memory_space<vmem>>, %arg4: memref<1024x512xbf16, #tpu.memory_space<vmem>>, %arg5: memref<1x512xf32, #tpu.memory_space<vmem>>, %arg6: memref<1x512xbf16, #tpu.memory_space<vmem>>, %arg7: memref<1xf32, #tpu.memory_space<smem>>, %arg8: memref<1x16xf32, #tpu.memory_space<vmem>>) attributes {dimension_semantics = [#tpu.dimension_semantics<parallel>], iteration_bounds = array<i64: 1>, scalar_prefetch = 0 : i64, scratch_operands = 0 : i64, tpu.core_type = #tpu.core_type<tc>, window_params = [{transform_indices = @transform_0, window_bounds = array<i64: 16, 1024>}, {pipeline_mode = #tpu.pipeline_mode<synchronous>, transform_indices = @transform_1, window_bounds = array<i64: 1024, 1024>}, {pipeline_mode = #tpu.pipeline_mode<synchronous>, transform_indices = @transform_2, window_bounds = array<i64: 1, 1024>}, {pipeline_mode = #tpu.pipeline_mode<synchronous>, transform_indices = @transform_3, window_bounds = array<i64: 1024, 512>}, {pipeline_mode = #tpu.pipeline_mode<synchronous>, transform_indices = @transform_4, window_bounds = array<i64: 1, 512>}, {pipeline_mode = #tpu.pipeline_mode<synchronous>, transform_indices = @transform_5, window_bounds = array<i64: 1, 512>}, {transform_indices = @transform_6, window_bounds = array<i64: 1>}, {transform_indices = @transform_7, window_bounds = array<i64: 1, 16>}]} {
    %c0 = arith.constant 0 : index
    %c0_0 = arith.constant 0 : index
    %0 = vector.load %arg1[%c0, %c0_0] : memref<16x1024xbf16, #tpu.memory_space<vmem>>, vector<16x1024xbf16>
    %c0_1 = arith.constant 0 : index
    %c0_2 = arith.constant 0 : index
    %1 = vector.load %arg2[%c0_1, %c0_2] : memref<1024x1024xbf16, #tpu.memory_space<vmem>>, vector<1024x1024xbf16>
    %cst = arith.constant dense<0.000000e+00> : vector<16x1024xf32>
    %2 = tpu.matmul %0, %1, %cst {dimension_numbers = #tpu.dot_dimension_numbers<[1], [0], [0], [1], [0, 0, 1, 1], [], []>} : vector<16x1024xbf16>, vector<1024x1024xbf16>, vector<16x1024xf32> -> vector<16x1024xf32>
    %c0_3 = arith.constant 0 : index
    %c0_4 = arith.constant 0 : index
    %3 = vector.load %arg3[%c0_3, %c0_4] : memref<1x1024xf32, #tpu.memory_space<vmem>>, vector<1x1024xf32>
    %4 = vector.broadcast %3 : vector<1x1024xf32> to vector<16x1024xf32>
    %5 = arith.addf %2, %4 : vector<16x1024xf32>
    %cst_5 = arith.constant 0.000000e+00 : f32
    %6 = vector.broadcast %cst_5 : f32 to vector<16x1024xf32>
    %7 = arith.maximumf %5, %6 : vector<16x1024xf32>
    %8 = arith.truncf %7 : vector<16x1024xf32> to vector<16x1024xbf16>
    %c0_6 = arith.constant 0 : index
    %c0_7 = arith.constant 0 : index
    %9 = vector.load %arg4[%c0_6, %c0_7] : memref<1024x512xbf16, #tpu.memory_space<vmem>>, vector<1024x512xbf16>
    %cst_8 = arith.constant dense<0.000000e+00> : vector<16x512xf32>
    %10 = tpu.matmul %8, %9, %cst_8 {dimension_numbers = #tpu.dot_dimension_numbers<[1], [0], [0], [1], [0, 0, 1, 1], [], []>} : vector<16x1024xbf16>, vector<1024x512xbf16>, vector<16x512xf32> -> vector<16x512xf32>
    %c0_9 = arith.constant 0 : index
    %c0_10 = arith.constant 0 : index
    %11 = vector.load %arg5[%c0_9, %c0_10] : memref<1x512xf32, #tpu.memory_space<vmem>>, vector<1x512xf32>
    %12 = vector.broadcast %11 : vector<1x512xf32> to vector<16x512xf32>
    %13 = arith.addf %10, %12 : vector<16x512xf32>
    %cst_11 = arith.constant 0.000000e+00 : f32
    %14 = vector.broadcast %cst_11 : f32 to vector<16x512xf32>
    %15 = arith.maximumf %13, %14 : vector<16x512xf32>
    %c0_12 = arith.constant 0 : index
    %c0_13 = arith.constant 0 : index
    %16 = vector.load %arg6[%c0_12, %c0_13] : memref<1x512xbf16, #tpu.memory_space<vmem>>, vector<1x512xbf16>
    %17 = arith.truncf %15 : vector<16x512xf32> to vector<16x512xbf16>
    "tpu.trace_start"() <{level = 10 : i32, message = "ok,bk->ob"}> : () -> ()
    %cst_14 = arith.constant dense<0.000000e+00> : vector<1x16xf32>
    %18 = tpu.matmul %16, %17, %cst_14 {dimension_numbers = #tpu.dot_dimension_numbers<[1], [1], [0], [0], [0, 0, 1, 0], [], []>} : vector<1x512xbf16>, vector<16x512xbf16>, vector<1x16xf32> -> vector<1x16xf32>
    "tpu.trace_stop"() : () -> ()
    %c0_15 = arith.constant 0 : index
    %19 = memref.load %arg7[%c0_15] : memref<1xf32, #tpu.memory_space<smem>>
    %20 = vector.broadcast %19 : f32 to vector<1x16xf32>
    %21 = arith.addf %18, %20 : vector<1x16xf32>
    %c0_16 = arith.constant 0 : index
    %c0_17 = arith.constant 0 : index
    %22 = vector.load %arg8[%c0_16, %c0_17] : memref<1x16xf32, #tpu.memory_space<vmem>>, vector<1x16xf32>
    tpu.vector_store %arg8[%c0_16, %c0_17], %21 {strides = array<i32>} : memref<1x16xf32, #tpu.memory_space<vmem>>, vector<1x16xf32>,
    return
  }
  func.func @transform_0(%arg0: i32) -> (i32, i32) {
    %c0_i32 = arith.constant 0 : i32
    %c0_i32_0 = arith.constant 0 : i32
    return %arg0, %c0_i32 : i32, i32
  }
  func.func @transform_1(%arg0: i32) -> (i32, i32) {
    %c0_i32 = arith.constant 0 : i32
    %c0_i32_0 = arith.constant 0 : i32
    %c0_i32_1 = arith.constant 0 : i32
    return %c0_i32, %c0_i32_0 : i32, i32
  }
  func.func @transform_2(%arg0: i32) -> (i32, i32) {
    %c0_i32 = arith.constant 0 : i32
    %c0_i32_0 = arith.constant 0 : i32
    %c0_i32_1 = arith.constant 0 : i32
    return %c0_i32, %c0_i32_0 : i32, i32
  }
  func.func @transform_3(%arg0: i32) -> (i32, i32) {
    %c0_i32 = arith.constant 0 : i32
    %c0_i32_0 = arith.constant 0 : i32
    %c0_i32_1 = arith.constant 0 : i32
    return %c0_i32, %c0_i32_0 : i32, i32
  }
  func.func @transform_4(%arg0: i32) -> (i32, i32) {
    %c0_i32 = arith.constant 0 : i32
    %c0_i32_0 = arith.constant 0 : i32
    %c0_i32_1 = arith.constant 0 : i32
    return %c0_i32, %c0_i32_0 : i32, i32
  }
  func.func @transform_5(%arg0: i32) -> (i32, i32) {
    %c0_i32 = arith.constant 0 : i32
    %c0_i32_0 = arith.constant 0 : i32
    %c0_i32_1 = arith.constant 0 : i32
    return %c0_i32, %c0_i32_0 : i32, i32
  }
  func.func @transform_6(%arg0: i32) -> i32 {
    %c0_i32 = arith.constant 0 : i32
    %c0_i32_0 = arith.constant 0 : i32
    return %c0_i32 : i32
  }
  func.func @transform_7(%arg0: i32) -> (i32, i32) {
    %c0_i32 = arith.constant 0 : i32
    %c0_i32_0 = arith.constant 0 : i32
    return %c0_i32, %arg0 : i32, i32
  }
}

</mosaic_0001>

<llo_original>
// kernel: tpu_custom_call.1
$region0: #{tpu_custom_call.1}
  #allocation0 [shape = 'u32[]', space=smem, size = 0x4, offset = 0x4, fixed_abs, tag = 'smem constant byte address 0x4 - core index']
  #allocation1 [shape = 'u32[144,128]{1,0:T(1,128)}', space=vmem, size = 0x12000, scoped, tag = 'internal scratch']
  #allocation2 [shape = 'f32[1]{0:T(128)S(6)}', space=smem, size = 0x200, scoped, tag = 'scoped memory for tpu_custom_call.1']
  %s0 = inlined_call_operand.hbm [shape: bf16[16,1024], index: 0, kind: input, shape index: {}]
  %s1 = inlined_call_operand.hbm [shape: bf16[1024,1024], index: 1, kind: input, shape index: {}]
  %s2 = inlined_call_operand.hbm [shape: f32[1,1024], index: 2, kind: input, shape index: {}]
  %s3 = inlined_call_operand.hbm [shape: bf16[1024,512], index: 3, kind: input, shape index: {}]
  %s4 = inlined_call_operand.hbm [shape: f32[1,512], index: 4, kind: input, shape index: {}]
  %s5 = inlined_call_operand.hbm [shape: bf16[1,512], index: 5, kind: input, shape index: {}]
  %s6 = inlined_call_operand.<no memory space> [shape: f32[1], index: 6, kind: input, shape index: {}]
  %s7 = inlined_call_operand.hbm [shape: f32[1,16], index: 7, kind: output, shape index: {}]
  %s8 = sld [smem:[#allocation0]]
  $region62: #{tpu_custom_call.1} parent=0
    _
  %s10 = ssub.s32 1, %s8
  %s11 = scalar_select 0, %s10, %s8
  %12 = sst [smem:[#allocation2]] %s6
  $region1: #{tpu_custom_call.1} parent=0
    #allocation3 [shape = 'u8[32768]{0}', space=vmem, size = 0x8000, scoped, tag = 'input window, operand 0, single buffered']
    #allocation4 [shape = 's32[1]{0}', space=sflag, size = 0x4, scoped, tag = 'scoped memory for tpu_custom_call.1']
    #allocation5 [shape = 's32[1]{0}', space=sflag, size = 0x4, scoped, tag = 'scoped memory for tpu_custom_call.1']
    #allocation6 [shape = 'u8[2097152]{0}', space=vmem, size = 0x200000, scoped, tag = 'input window, operand 1, single buffered']
    #allocation7 [shape = 's32[1]{0}', space=sflag, size = 0x4, scoped, tag = 'scoped memory for tpu_custom_call.1']
    #allocation8 [shape = 'u8[4096]{0}', space=vmem, size = 0x1000, scoped, tag = 'input window, operand 2, single buffered']
    #allocation9 [shape = 'u8[1048576]{0}', space=vmem, size = 0x100000, scoped, tag = 'input window, operand 3, single buffered']
    #allocation10 [shape = 's32[1]{0}', space=sflag, size = 0x4, scoped, tag = 'scoped memory for tpu_custom_call.1']
    #allocation11 [shape = 'u8[2048]{0}', space=vmem, size = 0x800, scoped, tag = 'input window, operand 4, single buffered']
    #allocation12 [shape = 'u8[2048]{0}', space=vmem, size = 0x800, scoped, tag = 'input window, operand 5, single buffered']
    #allocation13 [shape = 's32[1]{0}', space=sflag, size = 0x4, scoped, tag = 'scoped memory for tpu_custom_call.1']
    #allocation14 [shape = 'u8[512]{0}', space=vmem, size = 0x400, scoped, tag = 'output window, operand 0, single buffered']
    %13 = vsyncpa [#allocation4], 0
    %14 = vsyncpa [#allocation7], 0
    %15 = vsyncpa [#allocation10], 0
    %16 = vsyncpa [#allocation13], 0
    %17 = vsyncpa [#allocation5], 0
    // Predicated region
    $region2: #{tpu_custom_call.1} parent=1 // pred_check
      _
    $region3: #{tpu_custom_call.1} parent=1 // pred_check_branch
      %19 = sbr.rel (0) target = $region5
    $region4: #{tpu_custom_call.1} parent=1 // pred_region
      %s21 = ssub.s32 1024, 1024
      %22 = vsyncadd [#allocation4], %s21
      %s23 = sshll.u32 [#allocation3], 4
      %s24 = int_to_ptr.vmem [resolvable:$true] %s23
      %29 = dma.hbm_to_vmem [thread:$0]  %s0, 1024, %s24, [#allocation4], 512, 512, 32
    $region5: #{tpu_custom_call.1} parent=1 // pred_fallthru
      _
    // Predicated region
    $region6: #{tpu_custom_call.1} parent=1 // pred_check
      _
    $region7: #{tpu_custom_call.1} parent=1 // pred_check_branch
      %31 = sbr.rel (0) target = $region9
    $region8: #{tpu_custom_call.1} parent=1 // pred_region
      %s33 = ssub.s32 65536, 65536
      %34 = vsyncadd [#allocation7], %s33
      %s35 = sshll.u32 [#allocation6], 4
      %s36 = int_to_ptr.vmem [resolvable:$true] %s35
      %41 = dma.hbm_to_vmem [thread:$0]  %s1, 65536, %s36, [#allocation7], 512, 512, 32
    $region9: #{tpu_custom_call.1} parent=1 // pred_fallthru
      _
    // Predicated region
    $region10: #{tpu_custom_call.1} parent=1 // pred_check
      _
    $region11: #{tpu_custom_call.1} parent=1 // pred_check_branch
      %43 = sbr.rel (0) target = $region13
    $region12: #{tpu_custom_call.1} parent=1 // pred_region
      %s45 = ssub.s32 128, 128
      %46 = vsyncadd [#allocation7], %s45
      %s48 = sshll.u32 [#allocation8], 4
      %s49 = int_to_ptr.vmem [resolvable:$true] %s48
      %51 = dma.hbm_to_vmem [thread:$0]  %s2, 128, %s49, [#allocation7]
    $region13: #{tpu_custom_call.1} parent=1 // pred_fallthru
      _
    // Predicated region
    $region14: #{tpu_custom_call.1} parent=1 // pred_check
      _
    $region15: #{tpu_custom_call.1} parent=1 // pred_check_branch
      %53 = sbr.rel (0) target = $region17
    $region16: #{tpu_custom_call.1} parent=1 // pred_region
      %s55 = ssub.s32 32768, 32768
      %56 = vsyncadd [#allocation10], %s55
      %s57 = sshll.u32 [#allocation9], 4
      %s58 = int_to_ptr.vmem [resolvable:$true] %s57
      %63 = dma.hbm_to_vmem [thread:$0]  %s3, 32768, %s58, [#allocation10], 256, 256, 16
    $region17: #{tpu_custom_call.1} parent=1 // pred_fallthru
      _
    // Predicated region
    $region18: #{tpu_custom_call.1} parent=1 // pred_check
      _
    $region19: #{tpu_custom_call.1} parent=1 // pred_check_branch
      %65 = sbr.rel (0) target = $region21
    $region20: #{tpu_custom_call.1} parent=1 // pred_region
      %s67 = ssub.s32 64, 64
      %68 = vsyncadd [#allocation10], %s67
      %s70 = sshll.u32 [#allocation11], 4
      %s71 = int_to_ptr.vmem [resolvable:$true] %s70
      %73 = dma.hbm_to_vmem [thread:$0]  %s4, 64, %s71, [#allocation10]
    $region21: #{tpu_custom_call.1} parent=1 // pred_fallthru
      _
    // Predicated region
    $region22: #{tpu_custom_call.1} parent=1 // pred_check
      _
    $region23: #{tpu_custom_call.1} parent=1 // pred_check_branch
      %75 = sbr.rel (0) target = $region25
    $region24: #{tpu_custom_call.1} parent=1 // pred_region
      %s77 = ssub.s32 64, 64
      %78 = vsyncadd [#allocation13], %s77
      %s80 = sshll.u32 [#allocation12], 4
      %s81 = int_to_ptr.vmem [resolvable:$true] %s80
      %83 = dma.hbm_to_vmem [thread:$0]  %s5, 64, %s81, [#allocation13]
    $region25: #{tpu_custom_call.1} parent=1 // pred_fallthru
      _
    // Predicated region
    $region26: #{tpu_custom_call.1} parent=1 // pred_check
      _
    $region27: #{tpu_custom_call.1} parent=1 // pred_check_branch
      %85 = sbr.rel (0) target = $region29
    $region28: #{tpu_custom_call.1} parent=1 // pred_region
      _
    $region29: #{tpu_custom_call.1} parent=1 // pred_fallthru
      _
    // Predicated region
    $region30: #{tpu_custom_call.1} parent=1 // pred_check
      _
    $region31: #{tpu_custom_call.1} parent=1 // pred_check_branch
      %87 = sbr.rel (0) target = $region33
    $region32: #{tpu_custom_call.1} parent=1 // pred_region
      %88 = dma.done [#allocation4], 1024
    $region33: #{tpu_custom_call.1} parent=1 // pred_fallthru
      _
    // Predicated region
    $region34: #{tpu_custom_call.1} parent=1 // pred_check
      _
    $region35: #{tpu_custom_call.1} parent=1 // pred_check_branch
      %90 = sbr.rel (0) target = $region37
    $region36: #{tpu_custom_call.1} parent=1 // pred_region
      %91 = dma.done [#allocation7], 65536
    $region37: #{tpu_custom_call.1} parent=1 // pred_fallthru
      _
    // Predicated region
    $region38: #{tpu_custom_call.1} parent=1 // pred_check
      _
    $region39: #{tpu_custom_call.1} parent=1 // pred_check_branch
      %93 = sbr.rel (0) target = $region41
    $region40: #{tpu_custom_call.1} parent=1 // pred_region
      %94 = dma.done [#allocation7], 128
    $region41: #{tpu_custom_call.1} parent=1 // pred_fallthru
      _
    // Predicated region
    $region42: #{tpu_custom_call.1} parent=1 // pred_check
      _
    $region43: #{tpu_custom_call.1} parent=1 // pred_check_branch
      %96 = sbr.rel (0) target = $region45
    $region44: #{tpu_custom_call.1} parent=1 // pred_region
      %97 = dma.done [#allocation10], 32768
    $region45: #{tpu_custom_call.1} parent=1 // pred_fallthru
      _
    // Predicated region
    $region46: #{tpu_custom_call.1} parent=1 // pred_check
      _
    $region47: #{tpu_custom_call.1} parent=1 // pred_check_branch
      %99 = sbr.rel (0) target = $region49
    $region48: #{tpu_custom_call.1} parent=1 // pred_region
      %100 = dma.done [#allocation10], 64
    $region49: #{tpu_custom_call.1} parent=1 // pred_fallthru
      _
    // Predicated region
    $region50: #{tpu_custom_call.1} parent=1 // pred_check
      _
    $region51: #{tpu_custom_call.1} parent=1 // pred_check_branch
      %102 = sbr.rel (0) target = $region53
    $region52: #{tpu_custom_call.1} parent=1 // pred_region
      %103 = dma.done [#allocation13], 64
    $region53: #{tpu_custom_call.1} parent=1 // pred_fallthru
      _
    %v105 = vld [vmem:[#allocation3] sm:$0xff]
    %v106 = vld [vmem:[#allocation3 + $0x8] sm:$0xff]
    %v107 = vld [vmem:[#allocation3 + $0x10] sm:$0xff]
    %v108 = vld [vmem:[#allocation3 + $0x18] sm:$0xff]
    %v109 = vld [vmem:[#allocation3 + $0x20] sm:$0xff]
    %v110 = vld [vmem:[#allocation3 + $0x28] sm:$0xff]
    %v111 = vld [vmem:[#allocation3 + $0x30] sm:$0xff]
    %v112 = vld [vmem:[#allocation3 + $0x38] sm:$0xff]
    %v113 = vld [vmem:[#allocation6] sm:$0xff]
    %v114 = vld [vmem:[#allocation6 + $0x8] sm:$0xff]
    %v115 = vld [vmem:[#allocation6 + $0x10] sm:$0xff]
    %v116 = vld [vmem:[#allocation6 + $0x18] sm:$0xff]
    %v117 = vld [vmem:[#allocation6 + $0x20] sm:$0xff]
    %v118 = vld [vmem:[#allocation6 + $0x28] sm:$0xff]
    %v119 = vld [vmem:[#allocation6 + $0x30] sm:$0xff]
    %v120 = vld [vmem:[#allocation6 + $0x38] sm:$0xff]
    %v121 = vld [vmem:[#allocation6 + $0x40] sm:$0xff]
    %v122 = vld [vmem:[#allocation6 + $0x48] sm:$0xff]
    %v123 = vld [vmem:[#allocation6 + $0x50] sm:$0xff]
    %v124 = vld [vmem:[#allocation6 + $0x58] sm:$0xff]
    %v125 = vld [vmem:[#allocation6 + $0x60] sm:$0xff]
    %v126 = vld [vmem:[#allocation6 + $0x68] sm:$0xff]
    %v127 = vld [vmem:[#allocation6 + $0x70] sm:$0xff]
    %v128 = vld [vmem:[#allocation6 + $0x78] sm:$0xff]
    %v129 = vld [vmem:[#allocation6 + $0x80] sm:$0xff]
    %v130 = vld [vmem:[#allocation6 + $0x88] sm:$0xff]
    %v131 = vld [vmem:[#allocation6 + $0x90] sm:$0xff]
    %v132 = vld [vmem:[#allocation6 + $0x98] sm:$0xff]
    %v133 = vld [vmem:[#allocation6 + $0xa0] sm:$0xff]
    %v134 = vld [vmem:[#allocation6 + $0xa8] sm:$0xff]
    %v135 = vld [vmem:[#allocation6 + $0xb0] sm:$0xff]
    %v136 = vld [vmem:[#allocation6 + $0xb8] sm:$0xff]
    %v137 = vld [vmem:[#allocation6 + $0xc0] sm:$0xff]
    %v138 = vld [vmem:[#allocation6 + $0xc8] sm:$0xff]
    %v139 = vld [vmem:[#allocation6 + $0xd0] sm:$0xff]
    %v140 = vld [vmem:[#allocation6 + $0xd8] sm:$0xff]
    %v141 = vld [vmem:[#allocation6 + $0xe0] sm:$0xff]
    %v142 = vld [vmem:[#allocation6 + $0xe8] sm:$0xff]
    %v143 = vld [vmem:[#allocation6 + $0xf0] sm:$0xff]
    %v144 = vld [vmem:[#allocation6 + $0xf8] sm:$0xff]
    %v145 = vld [vmem:[#allocation6 + $0x100] sm:$0xff]
    %v146 = vld [vmem:[#allocation6 + $0x108] sm:$0xff]
    %v147 = vld [vmem:[#allocation6 + $0x110] sm:$0xff]
    %v148 = vld [vmem:[#allocation6 + $0x118] sm:$0xff]
    %v149 = vld [vmem:[#allocation6 + $0x120] sm:$0xff]
    %v150 = vld [vmem:[#allocation6 + $0x128] sm:$0xff]
    %v151 = vld [vmem:[#allocation6 + $0x130] sm:$0xff]
    %v152 = vld [vmem:[#allocation6 + $0x138] sm:$0xff]
    %v153 = vld [vmem:[#allocation6 + $0x140] sm:$0xff]
    %v154 = vld [vmem:[#allocation6 + $0x148] sm:$0xff]
    %v155 = vld [vmem:[#allocation6 + $0x150] sm:$0xff]
    %v156 = vld [vmem:[#allocation6 + $0x158] sm:$0xff]
    %v157 = vld [vmem:[#allocation6 + $0x160] sm:$0xff]
    %v158 = vld [vmem:[#allocation6 + $0x168] sm:$0xff]
    %v159 = vld [vmem:[#allocation6 + $0x170] sm:$0xff]
    %v160 = vld [vmem:[#allocation6 + $0x178] sm:$0xff]
    %v161 = vld [vmem:[#allocation6 + $0x180] sm:$0xff]
    %v162 = vld [vmem:[#allocation6 + $0x188] sm:$0xff]
    %v163 = vld [vmem:[#allocation6 + $0x190] sm:$0xff]
    %v164 = vld [vmem:[#allocation6 + $0x198] sm:$0xff]
    %v165 = vld [vmem:[#allocation6 + $0x1a0] sm:$0xff]
    %v166 = vld [vmem:[#allocation6 + $0x1a8] sm:$0xff]
    %v167 = vld [vmem:[#allocation6 + $0x1b0] sm:$0xff]
    %v168 = vld [vmem:[#allocation6 + $0x1b8] sm:$0xff]
    %v169 = vld [vmem:[#allocation6 + $0x1c0] sm:$0xff]
    %v170 = vld [vmem:[#allocation6 + $0x1c8] sm:$0xff]
    %v171 = vld [vmem:[#allocation6 + $0x1d0] sm:$0xff]
    %v172 = vld [vmem:[#allocation6 + $0x1d8] sm:$0xff]
    %v173 = vld [vmem:[#allocation6 + $0x1e0] sm:$0xff]
    %v174 = vld [vmem:[#allocation6 + $0x1e8] sm:$0xff]
    %v175 = vld [vmem:[#allocation6 + $0x1f0] sm:$0xff]
    %v176 = vld [vmem:[#allocation6 + $0x1f8] sm:$0xff]
    %v177 = vld [vmem:[#allocation6 + $0x200] sm:$0xff]
    %v178 = vld [vmem:[#allocation6 + $0x208] sm:$0xff]
    %v179 = vld [vmem:[#allocation6 + $0x210] sm:$0xff]
    %v180 = vld [vmem:[#allocation6 + $0x218] sm:$0xff]
    %v181 = vld [vmem:[#allocation6 + $0x220] sm:$0xff]
    %v182 = vld [vmem:[#allocation6 + $0x228] sm:$0xff]
    %v183 = vld [vmem:[#allocation6 + $0x230] sm:$0xff]
    %v184 = vld [vmem:[#allocation6 + $0x238] sm:$0xff]
    %v185 = vld [vmem:[#allocation6 + $0x240] sm:$0xff]
    %v186 = vld [vmem:[#allocation6 + $0x248] sm:$0xff]
    %v187 = vld [vmem:[#allocation6 + $0x250] sm:$0xff]
    %v188 = vld [vmem:[#allocation6 + $0x258] sm:$0xff]
    %v189 = vld [vmem:[#allocation6 + $0x260] sm:$0xff]
    %v190 = vld [vmem:[#allocation6 + $0x268] sm:$0xff]
    %v191 = vld [vmem:[#allocation6 + $0x270] sm:$0xff]
    %v192 = vld [vmem:[#allocation6 + $0x278] sm:$0xff]
    %v193 = vld [vmem:[#allocation6 + $0x280] sm:$0xff]
    %v194 = vld [vmem:[#allocation6 + $0x288] sm:$0xff]
    %v195 = vld [vmem:[#allocation6 + $0x290] sm:$0xff]
    %v196 = vld [vmem:[#allocation6 + $0x298] sm:$0xff]
    %v197 = vld [vmem:[#allocation6 + $0x2a0] sm:$0xff]
    %v198 = vld [vmem:[#allocation6 + $0x2a8] sm:$0xff]
    %v199 = vld [vmem:[#allocation6 + $0x2b0] sm:$0xff]
    %v200 = vld [vmem:[#allocation6 + $0x2b8] sm:$0xff]
    %v201 = vld [vmem:[#allocation6 + $0x2c0] sm:$0xff]
    %v202 = vld [vmem:[#allocation6 + $0x2c8] sm:$0xff]
    %v203 = vld [vmem:[#allocation6 + $0x2d0] sm:$0xff]
    %v204 = vld [vmem:[#allocation6 + $0x2d8] sm:$0xff]
    %v205 = vld [vmem:[#allocation6 + $0x2e0] sm:$0xff]
    %v206 = vld [vmem:[#allocation6 + $0x2e8] sm:$0xff]
    %v207 = vld [vmem:[#allocation6 + $0x2f0] sm:$0xff]
    %v208 = vld [vmem:[#allocation6 + $0x2f8] sm:$0xff]
    %v209 = vld [vmem:[#allocation6 + $0x300] sm:$0xff]
    %v210 = vld [vmem:[#allocation6 + $0x308] sm:$0xff]
    %v211 = vld [vmem:[#allocation6 + $0x310] sm:$0xff]
    %v212 = vld [vmem:[#allocation6 + $0x318] sm:$0xff]
    %v213 = vld [vmem:[#allocation6 + $0x320] sm:$0xff]
    %v214 = vld [vmem:[#allocation6 + $0x328] sm:$0xff]
    %v215 = vld [vmem:[#allocation6 + $0x330] sm:$0xff]
    %v216 = vld [vmem:[#allocation6 + $0x338] sm:$0xff]
    %v217 = vld [vmem:[#allocation6 + $0x340] sm:$0xff]
    %v218 = vld [vmem:[#allocation6 + $0x348] sm:$0xff]
    %v219 = vld [vmem:[#allocation6 + $0x350] sm:$0xff]
    %v220 = vld [vmem:[#allocation6 + $0x358] sm:$0xff]
    %v221 = vld [vmem:[#allocation6 + $0x360] sm:$0xff]
    %v222 = vld [vmem:[#allocation6 + $0x368] sm:$0xff]
    %v223 = vld [vmem:[#allocation6 + $0x370] sm:$0xff]
    %v224 = vld [vmem:[#allocation6 + $0x378] sm:$0xff]
    %v225 = vld [vmem:[#allocation6 + $0x380] sm:$0xff]
    %v226 = vld [vmem:[#allocation6 + $0x388] sm:$0xff]
    %v227 = vld [vmem:[#allocation6 + $0x390] sm:$0xff]
    %v228 = vld [vmem:[#allocation6 + $0x398] sm:$0xff]
    %v229 = vld [vmem:[#allocation6 + $0x3a0] sm:$0xff]
    %v230 = vld [vmem:[#allocation6 + $0x3a8] sm:$0xff]
    %v231 = vld [vmem:[#allocation6 + $0x3b0] sm:$0xff]
    %v232 = vld [vmem:[#allocation6 + $0x3b8] sm:$0xff]
    %v233 = vld [vmem:[#allocation6 + $0x3c0] sm:$0xff]
    %v234 = vld [vmem:[#allocation6 + $0x3c8] sm:$0xff]
    %v235 = vld [vmem:[#allocation6 + $0x3d0] sm:$0xff]
    %v236 = vld [vmem:[#allocation6 + $0x3d8] sm:$0xff]
    %v237 = vld [vmem:[#allocation6 + $0x3e0] sm:$0xff]
    %v238 = vld [vmem:[#allocation6 + $0x3e8] sm:$0xff]
    %v239 = vld [vmem:[#allocation6 + $0x3f0] sm:$0xff]
    %v240 = vld [vmem:[#allocation6 + $0x3f8] sm:$0xff]
    %v241 = vld [vmem:[#allocation6 + $0x400] sm:$0xff]
    %v242 = vld [vmem:[#allocation6 + $0x408] sm:$0xff]
    %v243 = vld [vmem:[#allocation6 + $0x410] sm:$0xff]
    %v244 = vld [vmem:[#allocation6 + $0x418] sm:$0xff]
    %v245 = vld [vmem:[#allocation6 + $0x420] sm:$0xff]
    %v246 = vld [vmem:[#allocation6 + $0x428] sm:$0xff]
    %v247 = vld [vmem:[#allocation6 + $0x430] sm:$0xff]
    %v248 = vld [vmem:[#allocation6 + $0x438] sm:$0xff]
    %v249 = vld [vmem:[#allocation6 + $0x440] sm:$0xff]
    %v250 = vld [vmem:[#allocation6 + $0x448] sm:$0xff]
    %v251 = vld [vmem:[#allocation6 + $0x450] sm:$0xff]
    %v252 = vld [vmem:[#allocation6 + $0x458] sm:$0xff]
    %v253 = vld [vmem:[#allocation6 + $0x460] sm:$0xff]
    %v254 = vld [vmem:[#allocation6 + $0x468] sm:$0xff]
    %v255 = vld [vmem:[#allocation6 + $0x470] sm:$0xff]
    %v256 = vld [vmem:[#allocation6 + $0x478] sm:$0xff]
    %v257 = vld [vmem:[#allocation6 + $0x480] sm:$0xff]
    %v258 = vld [vmem:[#allocation6 + $0x488] sm:$0xff]
    %v259 = vld [vmem:[#allocation6 + $0x490] sm:$0xff]
    %v260 = vld [vmem:[#allocation6 + $0x498] sm:$0xff]
    %v261 = vld [vmem:[#allocation6 + $0x4a0] sm:$0xff]
    %v262 = vld [vmem:[#allocation6 + $0x4a8] sm:$0xff]
    %v263 = vld [vmem:[#allocation6 + $0x4b0] sm:$0xff]
    %v264 = vld [vmem:[#allocation6 + $0x4b8] sm:$0xff]
    %v265 = vld [vmem:[#allocation6 + $0x4c0] sm:$0xff]
    %v266 = vld [vmem:[#allocation6 + $0x4c8] sm:$0xff]
    %v267 = vld [vmem:[#allocation6 + $0x4d0] sm:$0xff]
    %v268 = vld [vmem:[#allocation6 + $0x4d8] sm:$0xff]
    %v269 = vld [vmem:[#allocation6 + $0x4e0] sm:$0xff]
    %v270 = vld [vmem:[#allocation6 + $0x4e8] sm:$0xff]
    %v271 = vld [vmem:[#allocation6 + $0x4f0] sm:$0xff]
    %v272 = vld [vmem:[#allocation6 + $0x4f8] sm:$0xff]
    %v273 = vld [vmem:[#allocation6 + $0x500] sm:$0xff]
    %v274 = vld [vmem:[#allocation6 + $0x508] sm:$0xff]
    %v275 = vld [vmem:[#allocation6 + $0x510] sm:$0xff]
    %v276 = vld [vmem:[#allocation6 + $0x518] sm:$0xff]
    %v277 = vld [vmem:[#allocation6 + $0x520] sm:$0xff]
    %v278 = vld [vmem:[#allocation6 + $0x528] sm:$0xff]
    %v279 = vld [vmem:[#allocation6 + $0x530] sm:$0xff]
    %v280 = vld [vmem:[#allocation6 + $0x538] sm:$0xff]
    %v281 = vld [vmem:[#allocation6 + $0x540] sm:$0xff]
    %v282 = vld [vmem:[#allocation6 + $0x548] sm:$0xff]
    %v283 = vld [vmem:[#allocation6 + $0x550] sm:$0xff]
    %v284 = vld [vmem:[#allocation6 + $0x558] sm:$0xff]
    %v285 = vld [vmem:[#allocation6 + $0x560] sm:$0xff]
    %v286 = vld [vmem:[#allocation6 + $0x568] sm:$0xff]
    %v287 = vld [vmem:[#allocation6 + $0x570] sm:$0xff]
    %v288 = vld [vmem:[#allocation6 + $0x578] sm:$0xff]
    %v289 = vld [vmem:[#allocation6 + $0x580] sm:$0xff]
    %v290 = vld [vmem:[#allocation6 + $0x588] sm:$0xff]
    %v291 = vld [vmem:[#allocation6 + $0x590] sm:$0xff]
    %v292 = vld [vmem:[#allocation6 + $0x598] sm:$0xff]
    %v293 = vld [vmem:[#allocation6 + $0x5a0] sm:$0xff]
    %v294 = vld [vmem:[#allocation6 + $0x5a8] sm:$0xff]
    %v295 = vld [vmem:[#allocation6 + $0x5b0] sm:$0xff]
    %v296 = vld [vmem:[#allocation6 + $0x5b8] sm:$0xff]
    %v297 = vld [vmem:[#allocation6 + $0x5c0] sm:$0xff]
    %v298 = vld [vmem:[#allocation6 + $0x5c8] sm:$0xff]
    %v299 = vld [vmem:[#allocation6 + $0x5d0] sm:$0xff]
    %v300 = vld [vmem:[#allocation6 + $0x5d8] sm:$0xff]
    %v301 = vld [vmem:[#allocation6 + $0x5e0] sm:$0xff]
    %v302 = vld [vmem:[#allocation6 + $0x5e8] sm:$0xff]
    %v303 = vld [vmem:[#allocation6 + $0x5f0] sm:$0xff]
    %v304 = vld [vmem:[#allocation6 + $0x5f8] sm:$0xff]
    %v305 = vld [vmem:[#allocation6 + $0x600] sm:$0xff]
    %v306 = vld [vmem:[#allocation6 + $0x608] sm:$0xff]
    %v307 = vld [vmem:[#allocation6 + $0x610] sm:$0xff]
    %v308 = vld [vmem:[#allocation6 + $0x618] sm:$0xff]
    %v309 = vld [vmem:[#allocation6 + $0x620] sm:$0xff]
    %v310 = vld [vmem:[#allocation6 + $0x628] sm:$0xff]
    %v311 = vld [vmem:[#allocation6 + $0x630] sm:$0xff]
    %v312 = vld [vmem:[#allocation6 + $0x638] sm:$0xff]
    %v313 = vld [vmem:[#allocation6 + $0x640] sm:$0xff]
    %v314 = vld [vmem:[#allocation6 + $0x648] sm:$0xff]
    %v315 = vld [vmem:[#allocation6 + $0x650] sm:$0xff]
    %v316 = vld [vmem:[#allocation6 + $0x658] sm:$0xff]
    %v317 = vld [vmem:[#allocation6 + $0x660] sm:$0xff]
    %v318 = vld [vmem:[#allocation6 + $0x668] sm:$0xff]
    %v319 = vld [vmem:[#allocation6 + $0x670] sm:$0xff]
    %v320 = vld [vmem:[#allocation6 + $0x678] sm:$0xff]
    %v321 = vld [vmem:[#allocation6 + $0x680] sm:$0xff]
    %v322 = vld [vmem:[#allocation6 + $0x688] sm:$0xff]
    %v323 = vld [vmem:[#allocation6 + $0x690] sm:$0xff]
    %v324 = vld [vmem:[#allocation6 + $0x698] sm:$0xff]
    %v325 = vld [vmem:[#allocation6 + $0x6a0] sm:$0xff]
    %v326 = vld [vmem:[#allocation6 + $0x6a8] sm:$0xff]
    %v327 = vld [vmem:[#allocation6 + $0x6b0] sm:$0xff]
    %v328 = vld [vmem:[#allocation6 + $0x6b8] sm:$0xff]
    %v329 = vld [vmem:[#allocation6 + $0x6c0] sm:$0xff]
    %v330 = vld [vmem:[#allocation6 + $0x6c8] sm:$0xff]
    %v331 = vld [vmem:[#allocation6 + $0x6d0] sm:$0xff]
    %v332 = vld [vmem:[#allocation6 + $0x6d8] sm:$0xff]
    %v333 = vld [vmem:[#allocation6 + $0x6e0] sm:$0xff]
    %v334 = vld [vmem:[#allocation6 + $0x6e8] sm:$0xff]
    %v335 = vld [vmem:[#allocation6 + $0x6f0] sm:$0xff]
    %v336 = vld [vmem:[#allocation6 + $0x6f8] sm:$0xff]
    %v337 = vld [vmem:[#allocation6 + $0x700] sm:$0xff]
    %v338 = vld [vmem:[#allocation6 + $0x708] sm:$0xff]
    %v339 = vld [vmem:[#allocation6 + $0x710] sm:$0xff]
    %v340 = vld [vmem:[#allocation6 + $0x718] sm:$0xff]
    %v341 = vld [vmem:[#allocation6 + $0x720] sm:$0xff]
    %v342 = vld [vmem:[#allocation6 + $0x728] sm:$0xff]
    %v343 = vld [vmem:[#allocation6 + $0x730] sm:$0xff]
    %v344 = vld [vmem:[#allocation6 + $0x738] sm:$0xff]
    %v345 = vld [vmem:[#allocation6 + $0x740] sm:$0xff]
    %v346 = vld [vmem:[#allocation6 + $0x748] sm:$0xff]
    %v347 = vld [vmem:[#allocation6 + $0x750] sm:$0xff]
    %v348 = vld [vmem:[#allocation6 + $0x758] sm:$0xff]
    %v349 = vld [vmem:[#allocation6 + $0x760] sm:$0xff]
    %v350 = vld [vmem:[#allocation6 + $0x768] sm:$0xff]
    %v351 = vld [vmem:[#allocation6 + $0x770] sm:$0xff]
    %v352 = vld [vmem:[#allocation6 + $0x778] sm:$0xff]
    %v353 = vld [vmem:[#allocation6 + $0x780] sm:$0xff]
    %v354 = vld [vmem:[#allocation6 + $0x788] sm:$0xff]
    %v355 = vld [vmem:[#allocation6 + $0x790] sm:$0xff]
    %v356 = vld [vmem:[#allocation6 + $0x798] sm:$0xff]
    %v357 = vld [vmem:[#allocation6 + $0x7a0] sm:$0xff]
    %v358 = vld [vmem:[#allocation6 + $0x7a8] sm:$0xff]
    %v359 = vld [vmem:[#allocation6 + $0x7b0] sm:$0xff]
    %v360 = vld [vmem:[#allocation6 + $0x7b8] sm:$0xff]
    %v361 = vld [vmem:[#allocation6 + $0x7c0] sm:$0xff]
    %v362 = vld [vmem:[#allocation6 + $0x7c8] sm:$0xff]
    %v363 = vld [vmem:[#allocation6 + $0x7d0] sm:$0xff]
    %v364 = vld [vmem:[#allocation6 + $0x7d8] sm:$0xff]
    %v365 = vld [vmem:[#allocation6 + $0x7e0] sm:$0xff]
    %v366 = vld [vmem:[#allocation6 + $0x7e8] sm:$0xff]
    %v367 = vld [vmem:[#allocation6 + $0x7f0] sm:$0xff]
    %v368 = vld [vmem:[#allocation6 + $0x7f8] sm:$0xff]
    %v369 = vld [vmem:[#allocation6 + $0x800] sm:$0xff]
    %v370 = vld [vmem:[#allocation6 + $0x808] sm:$0xff]
    %v371 = vld [vmem:[#allocation6 + $0x810] sm:$0xff]
    %v372 = vld [vmem:[#allocation6 + $0x818] sm:$0xff]
    %v373 = vld [vmem:[#allocation6 + $0x820] sm:$0xff]
    %v374 = vld [vmem:[#allocation6 + $0x828] sm:$0xff]
    %v375 = vld [vmem:[#allocation6 + $0x830] sm:$0xff]
    %v376 = vld [vmem:[#allocation6 + $0x838] sm:$0xff]
    %v377 = vld [vmem:[#allocation6 + $0x840] sm:$0xff]
    %v378 = vld [vmem:[#allocation6 + $0x848] sm:$0xff]
    %v379 = vld [vmem:[#allocation6 + $0x850] sm:$0xff]
    %v380 = vld [vmem:[#allocation6 + $0x858] sm:$0xff]
    %v381 = vld [vmem:[#allocation6 + $0x860] sm:$0xff]
    %v382 = vld [vmem:[#allocation6 + $0x868] sm:$0xff]
    %v383 = vld [vmem:[#allocation6 + $0x870] sm:$0xff]
    %v384 = vld [vmem:[#allocation6 + $0x878] sm:$0xff]
    %v385 = vld [vmem:[#allocation6 + $0x880] sm:$0xff]
    %v386 = vld [vmem:[#allocation6 + $0x888] sm:$0xff]
    %v387 = vld [vmem:[#allocation6 + $0x890] sm:$0xff]
    %v388 = vld [vmem:[#allocation6 + $0x898] sm:$0xff]
    %v389 = vld [vmem:[#allocation6 + $0x8a0] sm:$0xff]
    %v390 = vld [vmem:[#allocation6 + $0x8a8] sm:$0xff]
    %v391 = vld [vmem:[#allocation6 + $0x8b0] sm:$0xff]
    %v392 = vld [vmem:[#allocation6 + $0x8b8] sm:$0xff]
    %v393 = vld [vmem:[#allocation6 + $0x8c0] sm:$0xff]
    %v394 = vld [vmem:[#allocation6 + $0x8c8] sm:$0xff]
    %v395 = vld [vmem:[#allocation6 + $0x8d0] sm:$0xff]
    %v396 = vld [vmem:[#allocation6 + $0x8d8] sm:$0xff]
    %v397 = vld [vmem:[#allocation6 + $0x8e0] sm:$0xff]
    %v398 = vld [vmem:[#allocation6 + $0x8e8] sm:$0xff]
    %v399 = vld [vmem:[#allocation6 + $0x8f0] sm:$0xff]
    %v400 = vld [vmem:[#allocation6 + $0x8f8] sm:$0xff]
    %v401 = vld [vmem:[#allocation6 + $0x900] sm:$0xff]
    %v402 = vld [vmem:[#allocation6 + $0x908] sm:$0xff]
    %v403 = vld [vmem:[#allocation6 + $0x910] sm:$0xff]
    %v404 = vld [vmem:[#allocation6 + $0x918] sm:$0xff]
    %v405 = vld [vmem:[#allocation6 + $0x920] sm:$0xff]
    %v406 = vld [vmem:[#allocation6 + $0x928] sm:$0xff]
    %v407 = vld [vmem:[#allocation6 + $0x930] sm:$0xff]
    %v408 = vld [vmem:[#allocation6 + $0x938] sm:$0xff]
    %v409 = vld [vmem:[#allocation6 + $0x940] sm:$0xff]
    %v410 = vld [vmem:[#allocation6 + $0x948] sm:$0xff]
    %v411 = vld [vmem:[#allocation6 + $0x950] sm:$0xff]
    %v412 = vld [vmem:[#allocation6 + $0x958] sm:$0xff]
    %v413 = vld [vmem:[#allocation6 + $0x960] sm:$0xff]
    %v414 = vld [vmem:[#allocation6 + $0x968] sm:$0xff]
    %v415 = vld [vmem:[#allocation6 + $0x970] sm:$0xff]
    %v416 = vld [vmem:[#allocation6 + $0x978] sm:$0xff]
    %v417 = vld [vmem:[#allocation6 + $0x980] sm:$0xff]
    %v418 = vld [vmem:[#allocation6 + $0x988] sm:$0xff]
    %v419 = vld [vmem:[#allocation6 + $0x990] sm:$0xff]
    %v420 = vld [vmem:[#allocation6 + $0x998] sm:$0xff]
    %v421 = vld [vmem:[#allocation6 + $0x9a0] sm:$0xff]
    %v422 = vld [vmem:[#allocation6 + $0x9a8] sm:$0xff]
    %v423 = vld [vmem:[#allocation6 + $0x9b0] sm:$0xff]
    %v424 = vld [vmem:[#allocation6 + $0x9b8] sm:$0xff]
    %v425 = vld [vmem:[#allocation6 + $0x9c0] sm:$0xff]
    %v426 = vld [vmem:[#allocation6 + $0x9c8] sm:$0xff]
    %v427 = vld [vmem:[#allocation6 + $0x9d0] sm:$0xff]
    %v428 = vld [vmem:[#allocation6 + $0x9d8] sm:$0xff]
    %v429 = vld [vmem:[#allocation6 + $0x9e0] sm:$0xff]
    %v430 = vld [vmem:[#allocation6 + $0x9e8] sm:$0xff]
    %v431 = vld [vmem:[#allocation6 + $0x9f0] sm:$0xff]
    %v432 = vld [vmem:[#allocation6 + $0x9f8] sm:$0xff]
    %v433 = vld [vmem:[#allocation6 + $0xa00] sm:$0xff]
    %v434 = vld [vmem:[#allocation6 + $0xa08] sm:$0xff]
    %v435 = vld [vmem:[#allocation6 + $0xa10] sm:$0xff]
    %v436 = vld [vmem:[#allocation6 + $0xa18] sm:$0xff]
    %v437 = vld [vmem:[#allocation6 + $0xa20] sm:$0xff]
    %v438 = vld [vmem:[#allocation6 + $0xa28] sm:$0xff]
    %v439 = vld [vmem:[#allocation6 + $0xa30] sm:$0xff]
    %v440 = vld [vmem:[#allocation6 + $0xa38] sm:$0xff]
    %v441 = vld [vmem:[#allocation6 + $0xa40] sm:$0xff]
    %v442 = vld [vmem:[#allocation6 + $0xa48] sm:$0xff]
    %v443 = vld [vmem:[#allocation6 + $0xa50] sm:$0xff]
    %v444 = vld [vmem:[#allocation6 + $0xa58] sm:$0xff]
    %v445 = vld [vmem:[#allocation6 + $0xa60] sm:$0xff]
    %v446 = vld [vmem:[#allocation6 + $0xa68] sm:$0xff]
    %v447 = vld [vmem:[#allocation6 + $0xa70] sm:$0xff]
    %v448 = vld [vmem:[#allocation6 + $0xa78] sm:$0xff]
    %v449 = vld [vmem:[#allocation6 + $0xa80] sm:$0xff]
    %v450 = vld [vmem:[#allocation6 + $0xa88] sm:$0xff]
    %v451 = vld [vmem:[#allocation6 + $0xa90] sm:$0xff]
    %v452 = vld [vmem:[#allocation6 + $0xa98] sm:$0xff]
    %v453 = vld [vmem:[#allocation6 + $0xaa0] sm:$0xff]
    %v454 = vld [vmem:[#allocation6 + $0xaa8] sm:$0xff]
    %v455 = vld [vmem:[#allocation6 + $0xab0] sm:$0xff]
    %v456 = vld [vmem:[#allocation6 + $0xab8] sm:$0xff]
    %v457 = vld [vmem:[#allocation6 + $0xac0] sm:$0xff]
    %v458 = vld [vmem:[#allocation6 + $0xac8] sm:$0xff]
    %v459 = vld [vmem:[#allocation6 + $0xad0] sm:$0xff]
    %v460 = vld [vmem:[#allocation6 + $0xad8] sm:$0xff]
    %v461 = vld [vmem:[#allocation6 + $0xae0] sm:$0xff]
    %v462 = vld [vmem:[#allocation6 + $0xae8] sm:$0xff]
    %v463 = vld [vmem:[#allocation6 + $0xaf0] sm:$0xff]
    %v464 = vld [vmem:[#allocation6 + $0xaf8] sm:$0xff]
    %v465 = vld [vmem:[#allocation6 + $0xb00] sm:$0xff]
    %v466 = vld [vmem:[#allocation6 + $0xb08] sm:$0xff]
    %v467 = vld [vmem:[#allocation6 + $0xb10] sm:$0xff]
    %v468 = vld [vmem:[#allocation6 + $0xb18] sm:$0xff]
    %v469 = vld [vmem:[#allocation6 + $0xb20] sm:$0xff]
    %v470 = vld [vmem:[#allocation6 + $0xb28] sm:$0xff]
    %v471 = vld [vmem:[#allocation6 + $0xb30] sm:$0xff]
    %v472 = vld [vmem:[#allocation6 + $0xb38] sm:$0xff]
    %v473 = vld [vmem:[#allocation6 + $0xb40] sm:$0xff]
    %v474 = vld [vmem:[#allocation6 + $0xb48] sm:$0xff]
    %v475 = vld [vmem:[#allocation6 + $0xb50] sm:$0xff]
    %v476 = vld [vmem:[#allocation6 + $0xb58] sm:$0xff]
    %v477 = vld [vmem:[#allocation6 + $0xb60] sm:$0xff]
    %v478 = vld [vmem:[#allocation6 + $0xb68] sm:$0xff]
    %v479 = vld [vmem:[#allocation6 + $0xb70] sm:$0xff]
    %v480 = vld [vmem:[#allocation6 + $0xb78] sm:$0xff]
    %v481 = vld [vmem:[#allocation6 + $0xb80] sm:$0xff]
    %v482 = vld [vmem:[#allocation6 + $0xb88] sm:$0xff]
    %v483 = vld [vmem:[#allocation6 + $0xb90] sm:$0xff]
    %v484 = vld [vmem:[#allocation6 + $0xb98] sm:$0xff]
    %v485 = vld [vmem:[#allocation6 + $0xba0] sm:$0xff]
    %v486 = vld [vmem:[#allocation6 + $0xba8] sm:$0xff]
    %v487 = vld [vmem:[#allocation6 + $0xbb0] sm:$0xff]
    %v488 = vld [vmem:[#allocation6 + $0xbb8] sm:$0xff]
    %v489 = vld [vmem:[#allocation6 + $0xbc0] sm:$0xff]
    %v490 = vld [vmem:[#allocation6 + $0xbc8] sm:$0xff]
    %v491 = vld [vmem:[#allocation6 + $0xbd0] sm:$0xff]
    %v492 = vld [vmem:[#allocation6 + $0xbd8] sm:$0xff]
    %v493 = vld [vmem:[#allocation6 + $0xbe0] sm:$0xff]
    %v494 = vld [vmem:[#allocation6 + $0xbe8] sm:$0xff]
    %v495 = vld [vmem:[#allocation6 + $0xbf0] sm:$0xff]
    %v496 = vld [vmem:[#allocation6 + $0xbf8] sm:$0xff]
    %v497 = vld [vmem:[#allocation6 + $0xc00] sm:$0xff]
    %v498 = vld [vmem:[#allocation6 + $0xc08] sm:$0xff]
    %v499 = vld [vmem:[#allocation6 + $0xc10] sm:$0xff]
    %v500 = vld [vmem:[#allocation6 + $0xc18] sm:$0xff]
    %v501 = vld [vmem:[#allocation6 + $0xc20] sm:$0xff]
    %v502 = vld [vmem:[#allocation6 + $0xc28] sm:$0xff]
    %v503 = vld [vmem:[#allocation6 + $0xc30] sm:$0xff]
    %v504 = vld [vmem:[#allocation6 + $0xc38] sm:$0xff]
    %v505 = vld [vmem:[#allocation6 + $0xc40] sm:$0xff]
    %v506 = vld [vmem:[#allocation6 + $0xc48] sm:$0xff]
    %v507 = vld [vmem:[#allocation6 + $0xc50] sm:$0xff]
    %v508 = vld [vmem:[#allocation6 + $0xc58] sm:$0xff]
    %v509 = vld [vmem:[#allocation6 + $0xc60] sm:$0xff]
    %v510 = vld [vmem:[#allocation6 + $0xc68] sm:$0xff]
    %v511 = vld [vmem:[#allocation6 + $0xc70] sm:$0xff]
    %v512 = vld [vmem:[#allocation6 + $0xc78] sm:$0xff]
    %v513 = vld [vmem:[#allocation6 + $0xc80] sm:$0xff]
    %v514 = vld [vmem:[#allocation6 + $0xc88] sm:$0xff]
    %v515 = vld [vmem:[#allocation6 + $0xc90] sm:$0xff]
    %v516 = vld [vmem:[#allocation6 + $0xc98] sm:$0xff]
    %v517 = vld [vmem:[#allocation6 + $0xca0] sm:$0xff]
    %v518 = vld [vmem:[#allocation6 + $0xca8] sm:$0xff]
    %v519 = vld [vmem:[#allocation6 + $0xcb0] sm:$0xff]
    %v520 = vld [vmem:[#allocation6 + $0xcb8] sm:$0xff]
    %v521 = vld [vmem:[#allocation6 + $0xcc0] sm:$0xff]
    %v522 = vld [vmem:[#allocation6 + $0xcc8] sm:$0xff]
    %v523 = vld [vmem:[#allocation6 + $0xcd0] sm:$0xff]
    %v524 = vld [vmem:[#allocation6 + $0xcd8] sm:$0xff]
    %v525 = vld [vmem:[#allocation6 + $0xce0] sm:$0xff]
    %v526 = vld [vmem:[#allocation6 + $0xce8] sm:$0xff]
    %v527 = vld [vmem:[#allocation6 + $0xcf0] sm:$0xff]
    %v528 = vld [vmem:[#allocation6 + $0xcf8] sm:$0xff]
    %v529 = vld [vmem:[#allocation6 + $0xd00] sm:$0xff]
    %v530 = vld [vmem:[#allocation6 + $0xd08] sm:$0xff]
    %v531 = vld [vmem:[#allocation6 + $0xd10] sm:$0xff]
    %v532 = vld [vmem:[#allocation6 + $0xd18] sm:$0xff]
    %v533 = vld [vmem:[#allocation6 + $0xd20] sm:$0xff]
    %v534 = vld [vmem:[#allocation6 + $0xd28] sm:$0xff]
    %v535 = vld [vmem:[#allocation6 + $0xd30] sm:$0xff]
    %v536 = vld [vmem:[#allocation6 + $0xd38] sm:$0xff]
    %v537 = vld [vmem:[#allocation6 + $0xd40] sm:$0xff]
    %v538 = vld [vmem:[#allocation6 + $0xd48] sm:$0xff]
    %v539 = vld [vmem:[#allocation6 + $0xd50] sm:$0xff]
    %v540 = vld [vmem:[#allocation6 + $0xd58] sm:$0xff]
    %v541 = vld [vmem:[#allocation6 + $0xd60] sm:$0xff]
    %v542 = vld [vmem:[#allocation6 + $0xd68] sm:$0xff]
    %v543 = vld [vmem:[#allocation6 + $0xd70] sm:$0xff]
    %v544 = vld [vmem:[#allocation6 + $0xd78] sm:$0xff]
    %v545 = vld [vmem:[#allocation6 + $0xd80] sm:$0xff]
    %v546 = vld [vmem:[#allocation6 + $0xd88] sm:$0xff]
    %v547 = vld [vmem:[#allocation6 + $0xd90] sm:$0xff]
    %v548 = vld [vmem:[#allocation6 + $0xd98] sm:$0xff]
    %v549 = vld [vmem:[#allocation6 + $0xda0] sm:$0xff]
    %v550 = vld [vmem:[#allocation6 + $0xda8] sm:$0xff]
    %v551 = vld [vmem:[#allocation6 + $0xdb0] sm:$0xff]
    %v552 = vld [vmem:[#allocation6 + $0xdb8] sm:$0xff]
    %v553 = vld [vmem:[#allocation6 + $0xdc0] sm:$0xff]
    %v554 = vld [vmem:[#allocation6 + $0xdc8] sm:$0xff]
    %v555 = vld [vmem:[#allocation6 + $0xdd0] sm:$0xff]
    %v556 = vld [vmem:[#allocation6 + $0xdd8] sm:$0xff]
    %v557 = vld [vmem:[#allocation6 + $0xde0] sm:$0xff]
    %v558 = vld [vmem:[#allocation6 + $0xde8] sm:$0xff]
    %v559 = vld [vmem:[#allocation6 + $0xdf0] sm:$0xff]
    %v560 = vld [vmem:[#allocation6 + $0xdf8] sm:$0xff]
    %v561 = vld [vmem:[#allocation6 + $0xe00] sm:$0xff]
    %v562 = vld [vmem:[#allocation6 + $0xe08] sm:$0xff]
    %v563 = vld [vmem:[#allocation6 + $0xe10] sm:$0xff]
    %v564 = vld [vmem:[#allocation6 + $0xe18] sm:$0xff]
    %v565 = vld [vmem:[#allocation6 + $0xe20] sm:$0xff]
    %v566 = vld [vmem:[#allocation6 + $0xe28] sm:$0xff]
    %v567 = vld [vmem:[#allocation6 + $0xe30] sm:$0xff]
    %v568 = vld [vmem:[#allocation6 + $0xe38] sm:$0xff]
    %v569 = vld [vmem:[#allocation6 + $0xe40] sm:$0xff]
    %v570 = vld [vmem:[#allocation6 + $0xe48] sm:$0xff]
    %v571 = vld [vmem:[#allocation6 + $0xe50] sm:$0xff]
    %v572 = vld [vmem:[#allocation6 + $0xe58] sm:$0xff]
    %v573 = vld [vmem:[#allocation6 + $0xe60] sm:$0xff]
    %v574 = vld [vmem:[#allocation6 + $0xe68] sm:$0xff]
    %v575 = vld [vmem:[#allocation6 + $0xe70] sm:$0xff]
    %v576 = vld [vmem:[#allocation6 + $0xe78] sm:$0xff]
    %v577 = vld [vmem:[#allocation6 + $0xe80] sm:$0xff]
    %v578 = vld [vmem:[#allocation6 + $0xe88] sm:$0xff]
    %v579 = vld [vmem:[#allocation6 + $0xe90] sm:$0xff]
    %v580 = vld [vmem:[#allocation6 + $0xe98] sm:$0xff]
    %v581 = vld [vmem:[#allocation6 + $0xea0] sm:$0xff]
    %v582 = vld [vmem:[#allocation6 + $0xea8] sm:$0xff]
    %v583 = vld [vmem:[#allocation6 + $0xeb0] sm:$0xff]
    %v584 = vld [vmem:[#allocation6 + $0xeb8] sm:$0xff]
    %v585 = vld [vmem:[#allocation6 + $0xec0] sm:$0xff]
    %v586 = vld [vmem:[#allocation6 + $0xec8] sm:$0xff]
    %v587 = vld [vmem:[#allocation6 + $0xed0] sm:$0xff]
    %v588 = vld [vmem:[#allocation6 + $0xed8] sm:$0xff]
    %v589 = vld [vmem:[#allocation6 + $0xee0] sm:$0xff]
    %v590 = vld [vmem:[#allocation6 + $0xee8] sm:$0xff]
    %v591 = vld [vmem:[#allocation6 + $0xef0] sm:$0xff]
    %v592 = vld [vmem:[#allocation6 + $0xef8] sm:$0xff]
    %v593 = vld [vmem:[#allocation6 + $0xf00] sm:$0xff]
    %v594 = vld [vmem:[#allocation6 + $0xf08] sm:$0xff]
    %v595 = vld [vmem:[#allocation6 + $0xf10] sm:$0xff]
    %v596 = vld [vmem:[#allocation6 + $0xf18] sm:$0xff]
    %v597 = vld [vmem:[#allocation6 + $0xf20] sm:$0xff]
    %v598 = vld [vmem:[#allocation6 + $0xf28] sm:$0xff]
    %v599 = vld [vmem:[#allocation6 + $0xf30] sm:$0xff]
    %v600 = vld [vmem:[#allocation6 + $0xf38] sm:$0xff]
    %v601 = vld [vmem:[#allocation6 + $0xf40] sm:$0xff]
    %v602 = vld [vmem:[#allocation6 + $0xf48] sm:$0xff]
    %v603 = vld [vmem:[#allocation6 + $0xf50] sm:$0xff]
    %v604 = vld [vmem:[#allocation6 + $0xf58] sm:$0xff]
    %v605 = vld [vmem:[#allocation6 + $0xf60] sm:$0xff]
    %v606 = vld [vmem:[#allocation6 + $0xf68] sm:$0xff]
    %v607 = vld [vmem:[#allocation6 + $0xf70] sm:$0xff]
    %v608 = vld [vmem:[#allocation6 + $0xf78] sm:$0xff]
    %v609 = vld [vmem:[#allocation6 + $0xf80] sm:$0xff]
    %v610 = vld [vmem:[#allocation6 + $0xf88] sm:$0xff]
    %v611 = vld [vmem:[#allocation6 + $0xf90] sm:$0xff]
    %v612 = vld [vmem:[#allocation6 + $0xf98] sm:$0xff]
    %v613 = vld [vmem:[#allocation6 + $0xfa0] sm:$0xff]
    %v614 = vld [vmem:[#allocation6 + $0xfa8] sm:$0xff]
    %v615 = vld [vmem:[#allocation6 + $0xfb0] sm:$0xff]
    %v616 = vld [vmem:[#allocation6 + $0xfb8] sm:$0xff]
    %v617 = vld [vmem:[#allocation6 + $0xfc0] sm:$0xff]
    %v618 = vld [vmem:[#allocation6 + $0xfc8] sm:$0xff]
    %v619 = vld [vmem:[#allocation6 + $0xfd0] sm:$0xff]
    %v620 = vld [vmem:[#allocation6 + $0xfd8] sm:$0xff]
    %v621 = vld [vmem:[#allocation6 + $0xfe0] sm:$0xff]
    %v622 = vld [vmem:[#allocation6 + $0xfe8] sm:$0xff]
    %v623 = vld [vmem:[#allocation6 + $0xff0] sm:$0xff]
    %v624 = vld [vmem:[#allocation6 + $0xff8] sm:$0xff]
    %v625 = vld [vmem:[#allocation8] sm:$0xff]
    %v627 = vlaneseq
    %v628 = vshrl.u32 %v627, 7
    %v629 = vsub.s32 0, %v628
    %v630 = vrot.slane %v625, %v629
    %v631 = vlaneseq
    %v632 = vshrl.u32 %v631, 7
    %v633 = vsub.s32 1, %v632
    %v634 = vrot.slane %v625, %v633
    %v635 = vlaneseq
    %v636 = vshrl.u32 %v635, 7
    %v637 = vsub.s32 2, %v636
    %v638 = vrot.slane %v625, %v637
    %v639 = vlaneseq
    %v640 = vshrl.u32 %v639, 7
    %v641 = vsub.s32 3, %v640
    %v642 = vrot.slane %v625, %v641
    %v643 = vlaneseq
    %v644 = vshrl.u32 %v643, 7
    %v645 = vsub.s32 4, %v644
    %v646 = vrot.slane %v625, %v645
    %v647 = vlaneseq
    %v648 = vshrl.u32 %v647, 7
    %v649 = vsub.s32 5, %v648
    %v650 = vrot.slane %v625, %v649
    %v651 = vlaneseq
    %v652 = vshrl.u32 %v651, 7
    %v653 = vsub.s32 6, %v652
    %v654 = vrot.slane %v625, %v653
    %v655 = vlaneseq
    %v656 = vshrl.u32 %v655, 7
    %v657 = vsub.s32 7, %v656
    %v658 = vrot.slane %v625, %v657
    %v675 = vunpack.c.l.b16 %v105
    %v676 = vunpack.c.h.b16 %v105
    %v677 = vunpack.c.l.b16 %v106
    %v678 = vunpack.c.h.b16 %v106
    %v679 = vunpack.c.l.b16 %v107
    %v680 = vunpack.c.h.b16 %v107
    %v681 = vunpack.c.l.b16 %v108
    %v682 = vunpack.c.h.b16 %v108
    %v683 = vunpack.c.l.b16 %v109
    %v684 = vunpack.c.h.b16 %v109
    %v685 = vunpack.c.l.b16 %v110
    %v686 = vunpack.c.h.b16 %v110
    %v687 = vunpack.c.l.b16 %v111
    %v688 = vunpack.c.h.b16 %v111
    %v689 = vunpack.c.l.b16 %v112
    %v690 = vunpack.c.h.b16 %v112
    %v691 = vpack.c.b16 %v683, %v675
    %v692 = vpack.c.b16 %v684, %v676
    %v693 = vpack.c.b16 %v685, %v677
    %v694 = vpack.c.b16 %v686, %v678
    %v695 = vpack.c.b16 %v687, %v679
    %v696 = vpack.c.b16 %v688, %v680
    %v697 = vpack.c.b16 %v689, %v681
    %v698 = vpack.c.b16 %v690, %v682
    %v1219 = vunpack.c.l.b16 %v113
    %v1220 = vunpack.c.h.b16 %v113
    %v1221 = vunpack.c.l.b16 %v114
    %v1222 = vunpack.c.h.b16 %v114
    %v1223 = vunpack.c.l.b16 %v115
    %v1224 = vunpack.c.h.b16 %v115
    %v1225 = vunpack.c.l.b16 %v116
    %v1226 = vunpack.c.h.b16 %v116
    %v1227 = vunpack.c.l.b16 %v117
    %v1228 = vunpack.c.h.b16 %v117
    %v1229 = vunpack.c.l.b16 %v118
    %v1230 = vunpack.c.h.b16 %v118
    %v1231 = vunpack.c.l.b16 %v119
    %v1232 = vunpack.c.h.b16 %v119
    %v1233 = vunpack.c.l.b16 %v120
    %v1234 = vunpack.c.h.b16 %v120
    %v1235 = vunpack.c.l.b16 %v121
    %v1236 = vunpack.c.h.b16 %v121
    %v1237 = vunpack.c.l.b16 %v122
    %v1238 = vunpack.c.h.b16 %v122
    %v1239 = vunpack.c.l.b16 %v123
    %v1240 = vunpack.c.h.b16 %v123
    %v1241 = vunpack.c.l.b16 %v124
    %v1242 = vunpack.c.h.b16 %v124
    %v1243 = vunpack.c.l.b16 %v125
    %v1244 = vunpack.c.h.b16 %v125
    %v1245 = vunpack.c.l.b16 %v126
    %v1246 = vunpack.c.h.b16 %v126
    %v1247 = vunpack.c.l.b16 %v127
    %v1248 = vunpack.c.h.b16 %v127
    %v1249 = vunpack.c.l.b16 %v128
    %v1250 = vunpack.c.h.b16 %v128
    %v1251 = vunpack.c.l.b16 %v129
    %v1252 = vunpack.c.h.b16 %v129
    %v1253 = vunpack.c.l.b16 %v130
    %v1254 = vunpack.c.h.b16 %v130
    %v1255 = vunpack.c.l.b16 %v131
    %v1256 = vunpack.c.h.b16 %v131
    %v1257 = vunpack.c.l.b16 %v132
    %v1258 = vunpack.c.h.b16 %v132
    %v1259 = vunpack.c.l.b16 %v133
    %v1260 = vunpack.c.h.b16 %v133
    %v1261 = vunpack.c.l.b16 %v134
    %v1262 = vunpack.c.h.b16 %v134
    %v1263 = vunpack.c.l.b16 %v135
    %v1264 = vunpack.c.h.b16 %v135
    %v1265 = vunpack.c.l.b16 %v136
    %v1266 = vunpack.c.h.b16 %v136
    %v1267 = vunpack.c.l.b16 %v137
    %v1268 = vunpack.c.h.b16 %v137
    %v1269 = vunpack.c.l.b16 %v138
    %v1270 = vunpack.c.h.b16 %v138
    %v1271 = vunpack.c.l.b16 %v139
    %v1272 = vunpack.c.h.b16 %v139
    %v1273 = vunpack.c.l.b16 %v140
    %v1274 = vunpack.c.h.b16 %v140
    %v1275 = vunpack.c.l.b16 %v141
    %v1276 = vunpack.c.h.b16 %v141
    %v1277 = vunpack.c.l.b16 %v142
    %v1278 = vunpack.c.h.b16 %v142
    %v1279 = vunpack.c.l.b16 %v143
    %v1280 = vunpack.c.h.b16 %v143
    %v1281 = vunpack.c.l.b16 %v144
    %v1282 = vunpack.c.h.b16 %v144
    %v1283 = vunpack.c.l.b16 %v145
    %v1284 = vunpack.c.h.b16 %v145
    %v1285 = vunpack.c.l.b16 %v146
    %v1286 = vunpack.c.h.b16 %v146
    %v1287 = vunpack.c.l.b16 %v147
    %v1288 = vunpack.c.h.b16 %v147
    %v1289 = vunpack.c.l.b16 %v148
    %v1290 = vunpack.c.h.b16 %v148
    %v1291 = vunpack.c.l.b16 %v149
    %v1292 = vunpack.c.h.b16 %v149
    %v1293 = vunpack.c.l.b16 %v150
    %v1294 = vunpack.c.h.b16 %v150
    %v1295 = vunpack.c.l.b16 %v151
    %v1296 = vunpack.c.h.b16 %v151
    %v1297 = vunpack.c.l.b16 %v152
    %v1298 = vunpack.c.h.b16 %v152
    %v1299 = vunpack.c.l.b16 %v153
    %v1300 = vunpack.c.h.b16 %v153
    %v1301 = vunpack.c.l.b16 %v154
    %v1302 = vunpack.c.h.b16 %v154
    %v1303 = vunpack.c.l.b16 %v155
    %v1304 = vunpack.c.h.b16 %v155
    %v1305 = vunpack.c.l.b16 %v156
    %v1306 = vunpack.c.h.b16 %v156
    %v1307 = vunpack.c.l.b16 %v157
    %v1308 = vunpack.c.h.b16 %v157
    %v1309 = vunpack.c.l.b16 %v158
    %v1310 = vunpack.c.h.b16 %v158
    %v1311 = vunpack.c.l.b16 %v159
    %v1312 = vunpack.c.h.b16 %v159
    %v1313 = vunpack.c.l.b16 %v160
    %v1314 = vunpack.c.h.b16 %v160
    %v1315 = vunpack.c.l.b16 %v161
    %v1316 = vunpack.c.h.b16 %v161
    %v1317 = vunpack.c.l.b16 %v162
    %v1318 = vunpack.c.h.b16 %v162
    %v1319 = vunpack.c.l.b16 %v163
    %v1320 = vunpack.c.h.b16 %v163
    %v1321 = vunpack.c.l.b16 %v164
    %v1322 = vunpack.c.h.b16 %v164
    %v1323 = vunpack.c.l.b16 %v165
    %v1324 = vunpack.c.h.b16 %v165
    %v1325 = vunpack.c.l.b16 %v166
    %v1326 = vunpack.c.h.b16 %v166
    %v1327 = vunpack.c.l.b16 %v167
    %v1328 = vunpack.c.h.b16 %v167
    %v1329 = vunpack.c.l.b16 %v168
    %v1330 = vunpack.c.h.b16 %v168
    %v1331 = vunpack.c.l.b16 %v169
    %v1332 = vunpack.c.h.b16 %v169
    %v1333 = vunpack.c.l.b16 %v170
    %v1334 = vunpack.c.h.b16 %v170
    %v1335 = vunpack.c.l.b16 %v171
    %v1336 = vunpack.c.h.b16 %v171
    %v1337 = vunpack.c.l.b16 %v172
    %v1338 = vunpack.c.h.b16 %v172
    %v1339 = vunpack.c.l.b16 %v173
    %v1340 = vunpack.c.h.b16 %v173
    %v1341 = vunpack.c.l.b16 %v174
    %v1342 = vunpack.c.h.b16 %v174
    %v1343 = vunpack.c.l.b16 %v175
    %v1344 = vunpack.c.h.b16 %v175
    %v1345 = vunpack.c.l.b16 %v176
    %v1346 = vunpack.c.h.b16 %v176
    %v1347 = vunpack.c.l.b16 %v177
    %v1348 = vunpack.c.h.b16 %v177
    %v1349 = vunpack.c.l.b16 %v178
    %v1350 = vunpack.c.h.b16 %v178
    %v1351 = vunpack.c.l.b16 %v179
    %v1352 = vunpack.c.h.b16 %v179
    %v1353 = vunpack.c.l.b16 %v180
    %v1354 = vunpack.c.h.b16 %v180
    %v1355 = vunpack.c.l.b16 %v181
    %v1356 = vunpack.c.h.b16 %v181
    %v1357 = vunpack.c.l.b16 %v182
    %v1358 = vunpack.c.h.b16 %v182
    %v1359 = vunpack.c.l.b16 %v183
    %v1360 = vunpack.c.h.b16 %v183
    %v1361 = vunpack.c.l.b16 %v184
    %v1362 = vunpack.c.h.b16 %v184
    %v1363 = vunpack.c.l.b16 %v185
    %v1364 = vunpack.c.h.b16 %v185
    %v1365 = vunpack.c.l.b16 %v186
    %v1366 = vunpack.c.h.b16 %v186
    %v1367 = vunpack.c.l.b16 %v187
    %v1368 = vunpack.c.h.b16 %v187
    %v1369 = vunpack.c.l.b16 %v188
    %v1370 = vunpack.c.h.b16 %v188
    %v1371 = vunpack.c.l.b16 %v189
    %v1372 = vunpack.c.h.b16 %v189
    %v1373 = vunpack.c.l.b16 %v190
    %v1374 = vunpack.c.h.b16 %v190
    %v1375 = vunpack.c.l.b16 %v191
    %v1376 = vunpack.c.h.b16 %v191
    %v1377 = vunpack.c.l.b16 %v192
    %v1378 = vunpack.c.h.b16 %v192
    %v1379 = vunpack.c.l.b16 %v193
    %v1380 = vunpack.c.h.b16 %v193
    %v1381 = vunpack.c.l.b16 %v194
    %v1382 = vunpack.c.h.b16 %v194
    %v1383 = vunpack.c.l.b16 %v195
    %v1384 = vunpack.c.h.b16 %v195
    %v1385 = vunpack.c.l.b16 %v196
    %v1386 = vunpack.c.h.b16 %v196
    %v1387 = vunpack.c.l.b16 %v197
    %v1388 = vunpack.c.h.b16 %v197
    %v1389 = vunpack.c.l.b16 %v198
    %v1390 = vunpack.c.h.b16 %v198
    %v1391 = vunpack.c.l.b16 %v199
    %v1392 = vunpack.c.h.b16 %v199
    %v1393 = vunpack.c.l.b16 %v200
    %v1394 = vunpack.c.h.b16 %v200
    %v1395 = vunpack.c.l.b16 %v201
    %v1396 = vunpack.c.h.b16 %v201
    %v1397 = vunpack.c.l.b16 %v202
    %v1398 = vunpack.c.h.b16 %v202
    %v1399 = vunpack.c.l.b16 %v203
    %v1400 = vunpack.c.h.b16 %v203
    %v1401 = vunpack.c.l.b16 %v204
    %v1402 = vunpack.c.h.b16 %v204
    %v1403 = vunpack.c.l.b16 %v205
    %v1404 = vunpack.c.h.b16 %v205
    %v1405 = vunpack.c.l.b16 %v206
    %v1406 = vunpack.c.h.b16 %v206
    %v1407 = vunpack.c.l.b16 %v207
    %v1408 = vunpack.c.h.b16 %v207
    %v1409 = vunpack.c.l.b16 %v208
    %v1410 = vunpack.c.h.b16 %v208
    %v1411 = vunpack.c.l.b16 %v209
    %v1412 = vunpack.c.h.b16 %v209
    %v1413 = vunpack.c.l.b16 %v210
    %v1414 = vunpack.c.h.b16 %v210
    %v1415 = vunpack.c.l.b16 %v211
    %v1416 = vunpack.c.h.b16 %v211
    %v1417 = vunpack.c.l.b16 %v212
    %v1418 = vunpack.c.h.b16 %v212
    %v1419 = vunpack.c.l.b16 %v213
    %v1420 = vunpack.c.h.b16 %v213
    %v1421 = vunpack.c.l.b16 %v214
    %v1422 = vunpack.c.h.b16 %v214
    %v1423 = vunpack.c.l.b16 %v215
    %v1424 = vunpack.c.h.b16 %v215
    %v1425 = vunpack.c.l.b16 %v216
    %v1426 = vunpack.c.h.b16 %v216
    %v1427 = vunpack.c.l.b16 %v217
    %v1428 = vunpack.c.h.b16 %v217
    %v1429 = vunpack.c.l.b16 %v218
    %v1430 = vunpack.c.h.b16 %v218
    %v1431 = vunpack.c.l.b16 %v219
    %v1432 = vunpack.c.h.b16 %v219
    %v1433 = vunpack.c.l.b16 %v220
    %v1434 = vunpack.c.h.b16 %v220
    %v1435 = vunpack.c.l.b16 %v221
    %v1436 = vunpack.c.h.b16 %v221
    %v1437 = vunpack.c.l.b16 %v222
    %v1438 = vunpack.c.h.b16 %v222
    %v1439 = vunpack.c.l.b16 %v223
    %v1440 = vunpack.c.h.b16 %v223
    %v1441 = vunpack.c.l.b16 %v224
    %v1442 = vunpack.c.h.b16 %v224
    %v1443 = vunpack.c.l.b16 %v225
    %v1444 = vunpack.c.h.b16 %v225
    %v1445 = vunpack.c.l.b16 %v226
    %v1446 = vunpack.c.h.b16 %v226
    %v1447 = vunpack.c.l.b16 %v227
    %v1448 = vunpack.c.h.b16 %v227
    %v1449 = vunpack.c.l.b16 %v228
    %v1450 = vunpack.c.h.b16 %v228
    %v1451 = vunpack.c.l.b16 %v229
    %v1452 = vunpack.c.h.b16 %v229
    %v1453 = vunpack.c.l.b16 %v230
    %v1454 = vunpack.c.h.b16 %v230
    %v1455 = vunpack.c.l.b16 %v231
    %v1456 = vunpack.c.h.b16 %v231
    %v1457 = vunpack.c.l.b16 %v232
    %v1458 = vunpack.c.h.b16 %v232
    %v1459 = vunpack.c.l.b16 %v233
    %v1460 = vunpack.c.h.b16 %v233
    %v1461 = vunpack.c.l.b16 %v234
    %v1462 = vunpack.c.h.b16 %v234
    %v1463 = vunpack.c.l.b16 %v235
    %v1464 = vunpack.c.h.b16 %v235
    %v1465 = vunpack.c.l.b16 %v236
    %v1466 = vunpack.c.h.b16 %v236
    %v1467 = vunpack.c.l.b16 %v237
    %v1468 = vunpack.c.h.b16 %v237
    %v1469 = vunpack.c.l.b16 %v238
    %v1470 = vunpack.c.h.b16 %v238
    %v1471 = vunpack.c.l.b16 %v239
    %v1472 = vunpack.c.h.b16 %v239
    %v1473 = vunpack.c.l.b16 %v240
    %v1474 = vunpack.c.h.b16 %v240
    %v1475 = vunpack.c.l.b16 %v241
    %v1476 = vunpack.c.h.b16 %v241
    %v1477 = vunpack.c.l.b16 %v242
    %v1478 = vunpack.c.h.b16 %v242
    %v1479 = vunpack.c.l.b16 %v243
    %v1480 = vunpack.c.h.b16 %v243
    %v1481 = vunpack.c.l.b16 %v244
    %v1482 = vunpack.c.h.b16 %v244
    %v1483 = vunpack.c.l.b16 %v245
    %v1484 = vunpack.c.h.b16 %v245
    %v1485 = vunpack.c.l.b16 %v246
    %v1486 = vunpack.c.h.b16 %v246
    %v1487 = vunpack.c.l.b16 %v247
    %v1488 = vunpack.c.h.b16 %v247
    %v1489 = vunpack.c.l.b16 %v248
    %v1490 = vunpack.c.h.b16 %v248
    %v1491 = vunpack.c.l.b16 %v249
    %v1492 = vunpack.c.h.b16 %v249
    %v1493 = vunpack.c.l.b16 %v250
    %v1494 = vunpack.c.h.b16 %v250
    %v1495 = vunpack.c.l.b16 %v251
    %v1496 = vunpack.c.h.b16 %v251
    %v1497 = vunpack.c.l.b16 %v252
    %v1498 = vunpack.c.h.b16 %v252
    %v1499 = vunpack.c.l.b16 %v253
    %v1500 = vunpack.c.h.b16 %v253
    %v1501 = vunpack.c.l.b16 %v254
    %v1502 = vunpack.c.h.b16 %v254
    %v1503 = vunpack.c.l.b16 %v255
    %v1504 = vunpack.c.h.b16 %v255
    %v1505 = vunpack.c.l.b16 %v256
    %v1506 = vunpack.c.h.b16 %v256
    %v1507 = vunpack.c.l.b16 %v257
    %v1508 = vunpack.c.h.b16 %v257
    %v1509 = vunpack.c.l.b16 %v258
    %v1510 = vunpack.c.h.b16 %v258
    %v1511 = vunpack.c.l.b16 %v259
    %v1512 = vunpack.c.h.b16 %v259
    %v1513 = vunpack.c.l.b16 %v260
    %v1514 = vunpack.c.h.b16 %v260
    %v1515 = vunpack.c.l.b16 %v261
    %v1516 = vunpack.c.h.b16 %v261
    %v1517 = vunpack.c.l.b16 %v262
    %v1518 = vunpack.c.h.b16 %v262
    %v1519 = vunpack.c.l.b16 %v263
    %v1520 = vunpack.c.h.b16 %v263
    %v1521 = vunpack.c.l.b16 %v264
    %v1522 = vunpack.c.h.b16 %v264
    %v1523 = vunpack.c.l.b16 %v265
    %v1524 = vunpack.c.h.b16 %v265
    %v1525 = vunpack.c.l.b16 %v266
    %v1526 = vunpack.c.h.b16 %v266
    %v1527 = vunpack.c.l.b16 %v267
    %v1528 = vunpack.c.h.b16 %v267
    %v1529 = vunpack.c.l.b16 %v268
    %v1530 = vunpack.c.h.b16 %v268
    %v1531 = vunpack.c.l.b16 %v269
    %v1532 = vunpack.c.h.b16 %v269
    %v1533 = vunpack.c.l.b16 %v270
    %v1534 = vunpack.c.h.b16 %v270
    %v1535 = vunpack.c.l.b16 %v271
    %v1536 = vunpack.c.h.b16 %v271
    %v1537 = vunpack.c.l.b16 %v272
    %v1538 = vunpack.c.h.b16 %v272
    %v1539 = vunpack.c.l.b16 %v273
    %v1540 = vunpack.c.h.b16 %v273
    %v1541 = vunpack.c.l.b16 %v274
    %v1542 = vunpack.c.h.b16 %v274
    %v1543 = vunpack.c.l.b16 %v275
    %v1544 = vunpack.c.h.b16 %v275
    %v1545 = vunpack.c.l.b16 %v276
    %v1546 = vunpack.c.h.b16 %v276
    %v1547 = vunpack.c.l.b16 %v277
    %v1548 = vunpack.c.h.b16 %v277
    %v1549 = vunpack.c.l.b16 %v278
    %v1550 = vunpack.c.h.b16 %v278
    %v1551 = vunpack.c.l.b16 %v279
    %v1552 = vunpack.c.h.b16 %v279
    %v1553 = vunpack.c.l.b16 %v280
    %v1554 = vunpack.c.h.b16 %v280
    %v1555 = vunpack.c.l.b16 %v281
    %v1556 = vunpack.c.h.b16 %v281
    %v1557 = vunpack.c.l.b16 %v282
    %v1558 = vunpack.c.h.b16 %v282
    %v1559 = vunpack.c.l.b16 %v283
    %v1560 = vunpack.c.h.b16 %v283
    %v1561 = vunpack.c.l.b16 %v284
    %v1562 = vunpack.c.h.b16 %v284
    %v1563 = vunpack.c.l.b16 %v285
    %v1564 = vunpack.c.h.b16 %v285
    %v1565 = vunpack.c.l.b16 %v286
    %v1566 = vunpack.c.h.b16 %v286
    %v1567 = vunpack.c.l.b16 %v287
    %v1568 = vunpack.c.h.b16 %v287
    %v1569 = vunpack.c.l.b16 %v288
    %v1570 = vunpack.c.h.b16 %v288
    %v1571 = vunpack.c.l.b16 %v289
    %v1572 = vunpack.c.h.b16 %v289
    %v1573 = vunpack.c.l.b16 %v290
    %v1574 = vunpack.c.h.b16 %v290
    %v1575 = vunpack.c.l.b16 %v291
    %v1576 = vunpack.c.h.b16 %v291
    %v1577 = vunpack.c.l.b16 %v292
    %v1578 = vunpack.c.h.b16 %v292
    %v1579 = vunpack.c.l.b16 %v293
    %v1580 = vunpack.c.h.b16 %v293
    %v1581 = vunpack.c.l.b16 %v294
    %v1582 = vunpack.c.h.b16 %v294
    %v1583 = vunpack.c.l.b16 %v295
    %v1584 = vunpack.c.h.b16 %v295
    %v1585 = vunpack.c.l.b16 %v296
    %v1586 = vunpack.c.h.b16 %v296
    %v1587 = vunpack.c.l.b16 %v297
    %v1588 = vunpack.c.h.b16 %v297
    %v1589 = vunpack.c.l.b16 %v298
    %v1590 = vunpack.c.h.b16 %v298
    %v1591 = vunpack.c.l.b16 %v299
    %v1592 = vunpack.c.h.b16 %v299
    %v1593 = vunpack.c.l.b16 %v300
    %v1594 = vunpack.c.h.b16 %v300
    %v1595 = vunpack.c.l.b16 %v301
    %v1596 = vunpack.c.h.b16 %v301
    %v1597 = vunpack.c.l.b16 %v302
    %v1598 = vunpack.c.h.b16 %v302
    %v1599 = vunpack.c.l.b16 %v303
    %v1600 = vunpack.c.h.b16 %v303
    %v1601 = vunpack.c.l.b16 %v304
    %v1602 = vunpack.c.h.b16 %v304
    %v1603 = vunpack.c.l.b16 %v305
    %v1604 = vunpack.c.h.b16 %v305
    %v1605 = vunpack.c.l.b16 %v306
    %v1606 = vunpack.c.h.b16 %v306
    %v1607 = vunpack.c.l.b16 %v307
    %v1608 = vunpack.c.h.b16 %v307
    %v1609 = vunpack.c.l.b16 %v308
    %v1610 = vunpack.c.h.b16 %v308
    %v1611 = vunpack.c.l.b16 %v309
    %v1612 = vunpack.c.h.b16 %v309
    %v1613 = vunpack.c.l.b16 %v310
    %v1614 = vunpack.c.h.b16 %v310
    %v1615 = vunpack.c.l.b16 %v311
    %v1616 = vunpack.c.h.b16 %v311
    %v1617 = vunpack.c.l.b16 %v312
    %v1618 = vunpack.c.h.b16 %v312
    %v1619 = vunpack.c.l.b16 %v313
    %v1620 = vunpack.c.h.b16 %v313
    %v1621 = vunpack.c.l.b16 %v314
    %v1622 = vunpack.c.h.b16 %v314
    %v1623 = vunpack.c.l.b16 %v315
    %v1624 = vunpack.c.h.b16 %v315
    %v1625 = vunpack.c.l.b16 %v316
    %v1626 = vunpack.c.h.b16 %v316
    %v1627 = vunpack.c.l.b16 %v317
    %v1628 = vunpack.c.h.b16 %v317
    %v1629 = vunpack.c.l.b16 %v318
    %v1630 = vunpack.c.h.b16 %v318
    %v1631 = vunpack.c.l.b16 %v319
    %v1632 = vunpack.c.h.b16 %v319
    %v1633 = vunpack.c.l.b16 %v320
    %v1634 = vunpack.c.h.b16 %v320
    %v1635 = vunpack.c.l.b16 %v321
    %v1636 = vunpack.c.h.b16 %v321
    %v1637 = vunpack.c.l.b16 %v322
    %v1638 = vunpack.c.h.b16 %v322
    %v1639 = vunpack.c.l.b16 %v323
    %v1640 = vunpack.c.h.b16 %v323
    %v1641 = vunpack.c.l.b16 %v324
    %v1642 = vunpack.c.h.b16 %v324
    %v1643 = vunpack.c.l.b16 %v325
    %v1644 = vunpack.c.h.b16 %v325
    %v1645 = vunpack.c.l.b16 %v326
    %v1646 = vunpack.c.h.b16 %v326
    %v1647 = vunpack.c.l.b16 %v327
    %v1648 = vunpack.c.h.b16 %v327
    %v1649 = vunpack.c.l.b16 %v328
    %v1650 = vunpack.c.h.b16 %v328
    %v1651 = vunpack.c.l.b16 %v329
    %v1652 = vunpack.c.h.b16 %v329
    %v1653 = vunpack.c.l.b16 %v330
    %v1654 = vunpack.c.h.b16 %v330
    %v1655 = vunpack.c.l.b16 %v331
    %v1656 = vunpack.c.h.b16 %v331
    %v1657 = vunpack.c.l.b16 %v332
    %v1658 = vunpack.c.h.b16 %v332
    %v1659 = vunpack.c.l.b16 %v333
    %v1660 = vunpack.c.h.b16 %v333
    %v1661 = vunpack.c.l.b16 %v334
    %v1662 = vunpack.c.h.b16 %v334
    %v1663 = vunpack.c.l.b16 %v335
    %v1664 = vunpack.c.h.b16 %v335
    %v1665 = vunpack.c.l.b16 %v336
    %v1666 = vunpack.c.h.b16 %v336
    %v1667 = vunpack.c.l.b16 %v337
    %v1668 = vunpack.c.h.b16 %v337
    %v1669 = vunpack.c.l.b16 %v338
    %v1670 = vunpack.c.h.b16 %v338
    %v1671 = vunpack.c.l.b16 %v339
    %v1672 = vunpack.c.h.b16 %v339
    %v1673 = vunpack.c.l.b16 %v340
    %v1674 = vunpack.c.h.b16 %v340
    %v1675 = vunpack.c.l.b16 %v341
    %v1676 = vunpack.c.h.b16 %v341
    %v1677 = vunpack.c.l.b16 %v342
    %v1678 = vunpack.c.h.b16 %v342
    %v1679 = vunpack.c.l.b16 %v343
    %v1680 = vunpack.c.h.b16 %v343
    %v1681 = vunpack.c.l.b16 %v344
    %v1682 = vunpack.c.h.b16 %v344
    %v1683 = vunpack.c.l.b16 %v345
    %v1684 = vunpack.c.h.b16 %v345
    %v1685 = vunpack.c.l.b16 %v346
    %v1686 = vunpack.c.h.b16 %v346
    %v1687 = vunpack.c.l.b16 %v347
    %v1688 = vunpack.c.h.b16 %v347
    %v1689 = vunpack.c.l.b16 %v348
    %v1690 = vunpack.c.h.b16 %v348
    %v1691 = vunpack.c.l.b16 %v349
    %v1692 = vunpack.c.h.b16 %v349
    %v1693 = vunpack.c.l.b16 %v350
    %v1694 = vunpack.c.h.b16 %v350
    %v1695 = vunpack.c.l.b16 %v351
    %v1696 = vunpack.c.h.b16 %v351
    %v1697 = vunpack.c.l.b16 %v352
    %v1698 = vunpack.c.h.b16 %v352
    %v1699 = vunpack.c.l.b16 %v353
    %v1700 = vunpack.c.h.b16 %v353
    %v1701 = vunpack.c.l.b16 %v354
    %v1702 = vunpack.c.h.b16 %v354
    %v1703 = vunpack.c.l.b16 %v355
    %v1704 = vunpack.c.h.b16 %v355
    %v1705 = vunpack.c.l.b16 %v356
    %v1706 = vunpack.c.h.b16 %v356
    %v1707 = vunpack.c.l.b16 %v357
    %v1708 = vunpack.c.h.b16 %v357
    %v1709 = vunpack.c.l.b16 %v358
    %v1710 = vunpack.c.h.b16 %v358
    %v1711 = vunpack.c.l.b16 %v359
    %v1712 = vunpack.c.h.b16 %v359
    %v1713 = vunpack.c.l.b16 %v360
    %v1714 = vunpack.c.h.b16 %v360
    %v1715 = vunpack.c.l.b16 %v361
    %v1716 = vunpack.c.h.b16 %v361
    %v1717 = vunpack.c.l.b16 %v362
    %v1718 = vunpack.c.h.b16 %v362
    %v1719 = vunpack.c.l.b16 %v363
    %v1720 = vunpack.c.h.b16 %v363
    %v1721 = vunpack.c.l.b16 %v364
    %v1722 = vunpack.c.h.b16 %v364
    %v1723 = vunpack.c.l.b16 %v365
    %v1724 = vunpack.c.h.b16 %v365
    %v1725 = vunpack.c.l.b16 %v366
    %v1726 = vunpack.c.h.b16 %v366
    %v1727 = vunpack.c.l.b16 %v367
    %v1728 = vunpack.c.h.b16 %v367
    %v1729 = vunpack.c.l.b16 %v368
    %v1730 = vunpack.c.h.b16 %v368
    %v1731 = vunpack.c.l.b16 %v369
    %v1732 = vunpack.c.h.b16 %v369
    %v1733 = vunpack.c.l.b16 %v370
    %v1734 = vunpack.c.h.b16 %v370
    %v1735 = vunpack.c.l.b16 %v371
    %v1736 = vunpack.c.h.b16 %v371
    %v1737 = vunpack.c.l.b16 %v372
    %v1738 = vunpack.c.h.b16 %v372
    %v1739 = vunpack.c.l.b16 %v373
    %v1740 = vunpack.c.h.b16 %v373
    %v1741 = vunpack.c.l.b16 %v374
    %v1742 = vunpack.c.h.b16 %v374
    %v1743 = vunpack.c.l.b16 %v375
    %v1744 = vunpack.c.h.b16 %v375
    %v1745 = vunpack.c.l.b16 %v376
    %v1746 = vunpack.c.h.b16 %v376
    %v1747 = vunpack.c.l.b16 %v377
    %v1748 = vunpack.c.h.b16 %v377
    %v1749 = vunpack.c.l.b16 %v378
    %v1750 = vunpack.c.h.b16 %v378
    %v1751 = vunpack.c.l.b16 %v379
    %v1752 = vunpack.c.h.b16 %v379
    %v1753 = vunpack.c.l.b16 %v380
    %v1754 = vunpack.c.h.b16 %v380
    %v1755 = vunpack.c.l.b16 %v381
    %v1756 = vunpack.c.h.b16 %v381
    %v1757 = vunpack.c.l.b16 %v382
    %v1758 = vunpack.c.h.b16 %v382
    %v1759 = vunpack.c.l.b16 %v383
    %v1760 = vunpack.c.h.b16 %v383
    %v1761 = vunpack.c.l.b16 %v384
    %v1762 = vunpack.c.h.b16 %v384
    %v1763 = vunpack.c.l.b16 %v385
    %v1764 = vunpack.c.h.b16 %v385
    %v1765 = vunpack.c.l.b16 %v386
    %v1766 = vunpack.c.h.b16 %v386
    %v1767 = vunpack.c.l.b16 %v387
    %v1768 = vunpack.c.h.b16 %v387
    %v1769 = vunpack.c.l.b16 %v388
    %v1770 = vunpack.c.h.b16 %v388
    %v1771 = vunpack.c.l.b16 %v389
    %v1772 = vunpack.c.h.b16 %v389
    %v1773 = vunpack.c.l.b16 %v390
    %v1774 = vunpack.c.h.b16 %v390
    %v1775 = vunpack.c.l.b16 %v391
    %v1776 = vunpack.c.h.b16 %v391
    %v1777 = vunpack.c.l.b16 %v392
    %v1778 = vunpack.c.h.b16 %v392
    %v1779 = vunpack.c.l.b16 %v393
    %v1780 = vunpack.c.h.b16 %v393
    %v1781 = vunpack.c.l.b16 %v394
    %v1782 = vunpack.c.h.b16 %v394
    %v1783 = vunpack.c.l.b16 %v395
    %v1784 = vunpack.c.h.b16 %v395
    %v1785 = vunpack.c.l.b16 %v396
    %v1786 = vunpack.c.h.b16 %v396
    %v1787 = vunpack.c.l.b16 %v397
    %v1788 = vunpack.c.h.b16 %v397
    %v1789 = vunpack.c.l.b16 %v398
    %v1790 = vunpack.c.h.b16 %v398
    %v1791 = vunpack.c.l.b16 %v399
    %v1792 = vunpack.c.h.b16 %v399
    %v1793 = vunpack.c.l.b16 %v400
    %v1794 = vunpack.c.h.b16 %v400
    %v1795 = vunpack.c.l.b16 %v401
    %v1796 = vunpack.c.h.b16 %v401
    %v1797 = vunpack.c.l.b16 %v402
    %v1798 = vunpack.c.h.b16 %v402
    %v1799 = vunpack.c.l.b16 %v403
    %v1800 = vunpack.c.h.b16 %v403
    %v1801 = vunpack.c.l.b16 %v404
    %v1802 = vunpack.c.h.b16 %v404
    %v1803 = vunpack.c.l.b16 %v405
    %v1804 = vunpack.c.h.b16 %v405
    %v1805 = vunpack.c.l.b16 %v406
    %v1806 = vunpack.c.h.b16 %v406
    %v1807 = vunpack.c.l.b16 %v407
    %v1808 = vunpack.c.h.b16 %v407
    %v1809 = vunpack.c.l.b16 %v408
    %v1810 = vunpack.c.h.b16 %v408
    %v1811 = vunpack.c.l.b16 %v409
    %v1812 = vunpack.c.h.b16 %v409
    %v1813 = vunpack.c.l.b16 %v410
    %v1814 = vunpack.c.h.b16 %v410
    %v1815 = vunpack.c.l.b16 %v411
    %v1816 = vunpack.c.h.b16 %v411
    %v1817 = vunpack.c.l.b16 %v412
    %v1818 = vunpack.c.h.b16 %v412
    %v1819 = vunpack.c.l.b16 %v413
    %v1820 = vunpack.c.h.b16 %v413
    %v1821 = vunpack.c.l.b16 %v414
    %v1822 = vunpack.c.h.b16 %v414
    %v1823 = vunpack.c.l.b16 %v415
    %v1824 = vunpack.c.h.b16 %v415
    %v1825 = vunpack.c.l.b16 %v416
    %v1826 = vunpack.c.h.b16 %v416
    %v1827 = vunpack.c.l.b16 %v417
    %v1828 = vunpack.c.h.b16 %v417
    %v1829 = vunpack.c.l.b16 %v418
    %v1830 = vunpack.c.h.b16 %v418
    %v1831 = vunpack.c.l.b16 %v419
    %v1832 = vunpack.c.h.b16 %v419
    %v1833 = vunpack.c.l.b16 %v420
    %v1834 = vunpack.c.h.b16 %v420
    %v1835 = vunpack.c.l.b16 %v421
    %v1836 = vunpack.c.h.b16 %v421
    %v1837 = vunpack.c.l.b16 %v422
    %v1838 = vunpack.c.h.b16 %v422
    %v1839 = vunpack.c.l.b16 %v423
    %v1840 = vunpack.c.h.b16 %v423
    %v1841 = vunpack.c.l.b16 %v424
    %v1842 = vunpack.c.h.b16 %v424
    %v1843 = vunpack.c.l.b16 %v425
    %v1844 = vunpack.c.h.b16 %v425
    %v1845 = vunpack.c.l.b16 %v426
    %v1846 = vunpack.c.h.b16 %v426
    %v1847 = vunpack.c.l.b16 %v427
    %v1848 = vunpack.c.h.b16 %v427
    %v1849 = vunpack.c.l.b16 %v428
    %v1850 = vunpack.c.h.b16 %v428
    %v1851 = vunpack.c.l.b16 %v429
    %v1852 = vunpack.c.h.b16 %v429
    %v1853 = vunpack.c.l.b16 %v430
    %v1854 = vunpack.c.h.b16 %v430
    %v1855 = vunpack.c.l.b16 %v431
    %v1856 = vunpack.c.h.b16 %v431
    %v1857 = vunpack.c.l.b16 %v432
    %v1858 = vunpack.c.h.b16 %v432
    %v1859 = vunpack.c.l.b16 %v433
    %v1860 = vunpack.c.h.b16 %v433
    %v1861 = vunpack.c.l.b16 %v434
    %v1862 = vunpack.c.h.b16 %v434
    %v1863 = vunpack.c.l.b16 %v435
    %v1864 = vunpack.c.h.b16 %v435
    %v1865 = vunpack.c.l.b16 %v436
    %v1866 = vunpack.c.h.b16 %v436
    %v1867 = vunpack.c.l.b16 %v437
    %v1868 = vunpack.c.h.b16 %v437
    %v1869 = vunpack.c.l.b16 %v438
    %v1870 = vunpack.c.h.b16 %v438
    %v1871 = vunpack.c.l.b16 %v439
    %v1872 = vunpack.c.h.b16 %v439
    %v1873 = vunpack.c.l.b16 %v440
    %v1874 = vunpack.c.h.b16 %v440
    %v1875 = vunpack.c.l.b16 %v441
    %v1876 = vunpack.c.h.b16 %v441
    %v1877 = vunpack.c.l.b16 %v442
    %v1878 = vunpack.c.h.b16 %v442
    %v1879 = vunpack.c.l.b16 %v443
    %v1880 = vunpack.c.h.b16 %v443
    %v1881 = vunpack.c.l.b16 %v444
    %v1882 = vunpack.c.h.b16 %v444
    %v1883 = vunpack.c.l.b16 %v445
    %v1884 = vunpack.c.h.b16 %v445
    %v1885 = vunpack.c.l.b16 %v446
    %v1886 = vunpack.c.h.b16 %v446
    %v1887 = vunpack.c.l.b16 %v447
    %v1888 = vunpack.c.h.b16 %v447
    %v1889 = vunpack.c.l.b16 %v448
    %v1890 = vunpack.c.h.b16 %v448
    %v1891 = vunpack.c.l.b16 %v449
    %v1892 = vunpack.c.h.b16 %v449
    %v1893 = vunpack.c.l.b16 %v450
    %v1894 = vunpack.c.h.b16 %v450
    %v1895 = vunpack.c.l.b16 %v451
    %v1896 = vunpack.c.h.b16 %v451
    %v1897 = vunpack.c.l.b16 %v452
    %v1898 = vunpack.c.h.b16 %v452
    %v1899 = vunpack.c.l.b16 %v453
    %v1900 = vunpack.c.h.b16 %v453
    %v1901 = vunpack.c.l.b16 %v454
    %v1902 = vunpack.c.h.b16 %v454
    %v1903 = vunpack.c.l.b16 %v455
    %v1904 = vunpack.c.h.b16 %v455
    %v1905 = vunpack.c.l.b16 %v456
    %v1906 = vunpack.c.h.b16 %v456
    %v1907 = vunpack.c.l.b16 %v457
    %v1908 = vunpack.c.h.b16 %v457
    %v1909 = vunpack.c.l.b16 %v458
    %v1910 = vunpack.c.h.b16 %v458
    %v1911 = vunpack.c.l.b16 %v459
    %v1912 = vunpack.c.h.b16 %v459
    %v1913 = vunpack.c.l.b16 %v460
    %v1914 = vunpack.c.h.b16 %v460
    %v1915 = vunpack.c.l.b16 %v461
    %v1916 = vunpack.c.h.b16 %v461
    %v1917 = vunpack.c.l.b16 %v462
    %v1918 = vunpack.c.h.b16 %v462
    %v1919 = vunpack.c.l.b16 %v463
    %v1920 = vunpack.c.h.b16 %v463
    %v1921 = vunpack.c.l.b16 %v464
    %v1922 = vunpack.c.h.b16 %v464
    %v1923 = vunpack.c.l.b16 %v465
    %v1924 = vunpack.c.h.b16 %v465
    %v1925 = vunpack.c.l.b16 %v466
    %v1926 = vunpack.c.h.b16 %v466
    %v1927 = vunpack.c.l.b16 %v467
    %v1928 = vunpack.c.h.b16 %v467
    %v1929 = vunpack.c.l.b16 %v468
    %v1930 = vunpack.c.h.b16 %v468
    %v1931 = vunpack.c.l.b16 %v469
    %v1932 = vunpack.c.h.b16 %v469
    %v1933 = vunpack.c.l.b16 %v470
    %v1934 = vunpack.c.h.b16 %v470
    %v1935 = vunpack.c.l.b16 %v471
    %v1936 = vunpack.c.h.b16 %v471
    %v1937 = vunpack.c.l.b16 %v472
    %v1938 = vunpack.c.h.b16 %v472
    %v1939 = vunpack.c.l.b16 %v473
    %v1940 = vunpack.c.h.b16 %v473
    %v1941 = vunpack.c.l.b16 %v474
    %v1942 = vunpack.c.h.b16 %v474
    %v1943 = vunpack.c.l.b16 %v475
    %v1944 = vunpack.c.h.b16 %v475
    %v1945 = vunpack.c.l.b16 %v476
    %v1946 = vunpack.c.h.b16 %v476
    %v1947 = vunpack.c.l.b16 %v477
    %v1948 = vunpack.c.h.b16 %v477
    %v1949 = vunpack.c.l.b16 %v478
    %v1950 = vunpack.c.h.b16 %v478
    %v1951 = vunpack.c.l.b16 %v479
    %v1952 = vunpack.c.h.b16 %v479
    %v1953 = vunpack.c.l.b16 %v480
    %v1954 = vunpack.c.h.b16 %v480
    %v1955 = vunpack.c.l.b16 %v481
    %v1956 = vunpack.c.h.b16 %v481
    %v1957 = vunpack.c.l.b16 %v482
    %v1958 = vunpack.c.h.b16 %v482
    %v1959 = vunpack.c.l.b16 %v483
    %v1960 = vunpack.c.h.b16 %v483
    %v1961 = vunpack.c.l.b16 %v484
    %v1962 = vunpack.c.h.b16 %v484
    %v1963 = vunpack.c.l.b16 %v485
    %v1964 = vunpack.c.h.b16 %v485
    %v1965 = vunpack.c.l.b16 %v486
    %v1966 = vunpack.c.h.b16 %v486
    %v1967 = vunpack.c.l.b16 %v487
    %v1968 = vunpack.c.h.b16 %v487
    %v1969 = vunpack.c.l.b16 %v488
    %v1970 = vunpack.c.h.b16 %v488
    %v1971 = vunpack.c.l.b16 %v489
    %v1972 = vunpack.c.h.b16 %v489
    %v1973 = vunpack.c.l.b16 %v490
    %v1974 = vunpack.c.h.b16 %v490
    %v1975 = vunpack.c.l.b16 %v491
    %v1976 = vunpack.c.h.b16 %v491
    %v1977 = vunpack.c.l.b16 %v492
    %v1978 = vunpack.c.h.b16 %v492
    %v1979 = vunpack.c.l.b16 %v493
    %v1980 = vunpack.c.h.b16 %v493
    %v1981 = vunpack.c.l.b16 %v494
    %v1982 = vunpack.c.h.b16 %v494
    %v1983 = vunpack.c.l.b16 %v495
    %v1984 = vunpack.c.h.b16 %v495
    %v1985 = vunpack.c.l.b16 %v496
    %v1986 = vunpack.c.h.b16 %v496
    %v1987 = vunpack.c.l.b16 %v497
    %v1988 = vunpack.c.h.b16 %v497
    %v1989 = vunpack.c.l.b16 %v498
    %v1990 = vunpack.c.h.b16 %v498
    %v1991 = vunpack.c.l.b16 %v499
    %v1992 = vunpack.c.h.b16 %v499
    %v1993 = vunpack.c.l.b16 %v500
    %v1994 = vunpack.c.h.b16 %v500
    %v1995 = vunpack.c.l.b16 %v501
    %v1996 = vunpack.c.h.b16 %v501
    %v1997 = vunpack.c.l.b16 %v502
    %v1998 = vunpack.c.h.b16 %v502
    %v1999 = vunpack.c.l.b16 %v503
    %v2000 = vunpack.c.h.b16 %v503
    %v2001 = vunpack.c.l.b16 %v504
    %v2002 = vunpack.c.h.b16 %v504
    %v2003 = vunpack.c.l.b16 %v505
    %v2004 = vunpack.c.h.b16 %v505
    %v2005 = vunpack.c.l.b16 %v506
    %v2006 = vunpack.c.h.b16 %v506
    %v2007 = vunpack.c.l.b16 %v507
    %v2008 = vunpack.c.h.b16 %v507
    %v2009 = vunpack.c.l.b16 %v508
    %v2010 = vunpack.c.h.b16 %v508
    %v2011 = vunpack.c.l.b16 %v509
    %v2012 = vunpack.c.h.b16 %v509
    %v2013 = vunpack.c.l.b16 %v510
    %v2014 = vunpack.c.h.b16 %v510
    %v2015 = vunpack.c.l.b16 %v511
    %v2016 = vunpack.c.h.b16 %v511
    %v2017 = vunpack.c.l.b16 %v512
    %v2018 = vunpack.c.h.b16 %v512
    %v2019 = vunpack.c.l.b16 %v513
    %v2020 = vunpack.c.h.b16 %v513
    %v2021 = vunpack.c.l.b16 %v514
    %v2022 = vunpack.c.h.b16 %v514
    %v2023 = vunpack.c.l.b16 %v515
    %v2024 = vunpack.c.h.b16 %v515
    %v2025 = vunpack.c.l.b16 %v516
    %v2026 = vunpack.c.h.b16 %v516
    %v2027 = vunpack.c.l.b16 %v517
    %v2028 = vunpack.c.h.b16 %v517
    %v2029 = vunpack.c.l.b16 %v518
    %v2030 = vunpack.c.h.b16 %v518
    %v2031 = vunpack.c.l.b16 %v519
    %v2032 = vunpack.c.h.b16 %v519
    %v2033 = vunpack.c.l.b16 %v520
    %v2034 = vunpack.c.h.b16 %v520
    %v2035 = vunpack.c.l.b16 %v521
    %v2036 = vunpack.c.h.b16 %v521
    %v2037 = vunpack.c.l.b16 %v522
    %v2038 = vunpack.c.h.b16 %v522
    %v2039 = vunpack.c.l.b16 %v523
    %v2040 = vunpack.c.h.b16 %v523
    %v2041 = vunpack.c.l.b16 %v524
    %v2042 = vunpack.c.h.b16 %v524
    %v2043 = vunpack.c.l.b16 %v525
    %v2044 = vunpack.c.h.b16 %v525
    %v2045 = vunpack.c.l.b16 %v526
    %v2046 = vunpack.c.h.b16 %v526
    %v2047 = vunpack.c.l.b16 %v527
    %v2048 = vunpack.c.h.b16 %v527
    %v2049 = vunpack.c.l.b16 %v528
    %v2050 = vunpack.c.h.b16 %v528
    %v2051 = vunpack.c.l.b16 %v529
    %v2052 = vunpack.c.h.b16 %v529
    %v2053 = vunpack.c.l.b16 %v530
    %v2054 = vunpack.c.h.b16 %v530
    %v2055 = vunpack.c.l.b16 %v531
    %v2056 = vunpack.c.h.b16 %v531
    %v2057 = vunpack.c.l.b16 %v532
    %v2058 = vunpack.c.h.b16 %v532
    %v2059 = vunpack.c.l.b16 %v533
    %v2060 = vunpack.c.h.b16 %v533
    %v2061 = vunpack.c.l.b16 %v534
    %v2062 = vunpack.c.h.b16 %v534
    %v2063 = vunpack.c.l.b16 %v535
    %v2064 = vunpack.c.h.b16 %v535
    %v2065 = vunpack.c.l.b16 %v536
    %v2066 = vunpack.c.h.b16 %v536
    %v2067 = vunpack.c.l.b16 %v537
    %v2068 = vunpack.c.h.b16 %v537
    %v2069 = vunpack.c.l.b16 %v538
    %v2070 = vunpack.c.h.b16 %v538
    %v2071 = vunpack.c.l.b16 %v539
    %v2072 = vunpack.c.h.b16 %v539
    %v2073 = vunpack.c.l.b16 %v540
    %v2074 = vunpack.c.h.b16 %v540
    %v2075 = vunpack.c.l.b16 %v541
    %v2076 = vunpack.c.h.b16 %v541
    %v2077 = vunpack.c.l.b16 %v542
    %v2078 = vunpack.c.h.b16 %v542
    %v2079 = vunpack.c.l.b16 %v543
    %v2080 = vunpack.c.h.b16 %v543
    %v2081 = vunpack.c.l.b16 %v544
    %v2082 = vunpack.c.h.b16 %v544
    %v2083 = vunpack.c.l.b16 %v545
    %v2084 = vunpack.c.h.b16 %v545
    %v2085 = vunpack.c.l.b16 %v546
    %v2086 = vunpack.c.h.b16 %v546
    %v2087 = vunpack.c.l.b16 %v547
    %v2088 = vunpack.c.h.b16 %v547
    %v2089 = vunpack.c.l.b16 %v548
    %v2090 = vunpack.c.h.b16 %v548
    %v2091 = vunpack.c.l.b16 %v549
    %v2092 = vunpack.c.h.b16 %v549
    %v2093 = vunpack.c.l.b16 %v550
    %v2094 = vunpack.c.h.b16 %v550
    %v2095 = vunpack.c.l.b16 %v551
    %v2096 = vunpack.c.h.b16 %v551
    %v2097 = vunpack.c.l.b16 %v552
    %v2098 = vunpack.c.h.b16 %v552
    %v2099 = vunpack.c.l.b16 %v553
    %v2100 = vunpack.c.h.b16 %v553
    %v2101 = vunpack.c.l.b16 %v554
    %v2102 = vunpack.c.h.b16 %v554
    %v2103 = vunpack.c.l.b16 %v555
    %v2104 = vunpack.c.h.b16 %v555
    %v2105 = vunpack.c.l.b16 %v556
    %v2106 = vunpack.c.h.b16 %v556
    %v2107 = vunpack.c.l.b16 %v557
    %v2108 = vunpack.c.h.b16 %v557
    %v2109 = vunpack.c.l.b16 %v558
    %v2110 = vunpack.c.h.b16 %v558
    %v2111 = vunpack.c.l.b16 %v559
    %v2112 = vunpack.c.h.b16 %v559
    %v2113 = vunpack.c.l.b16 %v560
    %v2114 = vunpack.c.h.b16 %v560
    %v2115 = vunpack.c.l.b16 %v561
    %v2116 = vunpack.c.h.b16 %v561
    %v2117 = vunpack.c.l.b16 %v562
    %v2118 = vunpack.c.h.b16 %v562
    %v2119 = vunpack.c.l.b16 %v563
    %v2120 = vunpack.c.h.b16 %v563
    %v2121 = vunpack.c.l.b16 %v564
    %v2122 = vunpack.c.h.b16 %v564
    %v2123 = vunpack.c.l.b16 %v565
    %v2124 = vunpack.c.h.b16 %v565
    %v2125 = vunpack.c.l.b16 %v566
    %v2126 = vunpack.c.h.b16 %v566
    %v2127 = vunpack.c.l.b16 %v567
    %v2128 = vunpack.c.h.b16 %v567
    %v2129 = vunpack.c.l.b16 %v568
    %v2130 = vunpack.c.h.b16 %v568
    %v2131 = vunpack.c.l.b16 %v569
    %v2132 = vunpack.c.h.b16 %v569
    %v2133 = vunpack.c.l.b16 %v570
    %v2134 = vunpack.c.h.b16 %v570
    %v2135 = vunpack.c.l.b16 %v571
    %v2136 = vunpack.c.h.b16 %v571
    %v2137 = vunpack.c.l.b16 %v572
    %v2138 = vunpack.c.h.b16 %v572
    %v2139 = vunpack.c.l.b16 %v573
    %v2140 = vunpack.c.h.b16 %v573
    %v2141 = vunpack.c.l.b16 %v574
    %v2142 = vunpack.c.h.b16 %v574
    %v2143 = vunpack.c.l.b16 %v575
    %v2144 = vunpack.c.h.b16 %v575
    %v2145 = vunpack.c.l.b16 %v576
    %v2146 = vunpack.c.h.b16 %v576
    %v2147 = vunpack.c.l.b16 %v577
    %v2148 = vunpack.c.h.b16 %v577
    %v2149 = vunpack.c.l.b16 %v578
    %v2150 = vunpack.c.h.b16 %v578
    %v2151 = vunpack.c.l.b16 %v579
    %v2152 = vunpack.c.h.b16 %v579
    %v2153 = vunpack.c.l.b16 %v580
    %v2154 = vunpack.c.h.b16 %v580
    %v2155 = vunpack.c.l.b16 %v581
    %v2156 = vunpack.c.h.b16 %v581
    %v2157 = vunpack.c.l.b16 %v582
    %v2158 = vunpack.c.h.b16 %v582
    %v2159 = vunpack.c.l.b16 %v583
    %v2160 = vunpack.c.h.b16 %v583
    %v2161 = vunpack.c.l.b16 %v584
    %v2162 = vunpack.c.h.b16 %v584
    %v2163 = vunpack.c.l.b16 %v585
    %v2164 = vunpack.c.h.b16 %v585
    %v2165 = vunpack.c.l.b16 %v586
    %v2166 = vunpack.c.h.b16 %v586
    %v2167 = vunpack.c.l.b16 %v587
    %v2168 = vunpack.c.h.b16 %v587
    %v2169 = vunpack.c.l.b16 %v588
    %v2170 = vunpack.c.h.b16 %v588
    %v2171 = vunpack.c.l.b16 %v589
    %v2172 = vunpack.c.h.b16 %v589
    %v2173 = vunpack.c.l.b16 %v590
    %v2174 = vunpack.c.h.b16 %v590
    %v2175 = vunpack.c.l.b16 %v591
    %v2176 = vunpack.c.h.b16 %v591
    %v2177 = vunpack.c.l.b16 %v592
    %v2178 = vunpack.c.h.b16 %v592
    %v2179 = vunpack.c.l.b16 %v593
    %v2180 = vunpack.c.h.b16 %v593
    %v2181 = vunpack.c.l.b16 %v594
    %v2182 = vunpack.c.h.b16 %v594
    %v2183 = vunpack.c.l.b16 %v595
    %v2184 = vunpack.c.h.b16 %v595
    %v2185 = vunpack.c.l.b16 %v596
    %v2186 = vunpack.c.h.b16 %v596
    %v2187 = vunpack.c.l.b16 %v597
    %v2188 = vunpack.c.h.b16 %v597
    %v2189 = vunpack.c.l.b16 %v598
    %v2190 = vunpack.c.h.b16 %v598
    %v2191 = vunpack.c.l.b16 %v599
    %v2192 = vunpack.c.h.b16 %v599
    %v2193 = vunpack.c.l.b16 %v600
    %v2194 = vunpack.c.h.b16 %v600
    %v2195 = vunpack.c.l.b16 %v601
    %v2196 = vunpack.c.h.b16 %v601
    %v2197 = vunpack.c.l.b16 %v602
    %v2198 = vunpack.c.h.b16 %v602
    %v2199 = vunpack.c.l.b16 %v603
    %v2200 = vunpack.c.h.b16 %v603
    %v2201 = vunpack.c.l.b16 %v604
    %v2202 = vunpack.c.h.b16 %v604
    %v2203 = vunpack.c.l.b16 %v605
    %v2204 = vunpack.c.h.b16 %v605
    %v2205 = vunpack.c.l.b16 %v606
    %v2206 = vunpack.c.h.b16 %v606
    %v2207 = vunpack.c.l.b16 %v607
    %v2208 = vunpack.c.h.b16 %v607
    %v2209 = vunpack.c.l.b16 %v608
    %v2210 = vunpack.c.h.b16 %v608
    %v2211 = vunpack.c.l.b16 %v609
    %v2212 = vunpack.c.h.b16 %v609
    %v2213 = vunpack.c.l.b16 %v610
    %v2214 = vunpack.c.h.b16 %v610
    %v2215 = vunpack.c.l.b16 %v611
    %v2216 = vunpack.c.h.b16 %v611
    %v2217 = vunpack.c.l.b16 %v612
    %v2218 = vunpack.c.h.b16 %v612
    %v2219 = vunpack.c.l.b16 %v613
    %v2220 = vunpack.c.h.b16 %v613
    %v2221 = vunpack.c.l.b16 %v614
    %v2222 = vunpack.c.h.b16 %v614
    %v2223 = vunpack.c.l.b16 %v615
    %v2224 = vunpack.c.h.b16 %v615
    %v2225 = vunpack.c.l.b16 %v616
    %v2226 = vunpack.c.h.b16 %v616
    %v2227 = vunpack.c.l.b16 %v617
    %v2228 = vunpack.c.h.b16 %v617
    %v2229 = vunpack.c.l.b16 %v618
    %v2230 = vunpack.c.h.b16 %v618
    %v2231 = vunpack.c.l.b16 %v619
    %v2232 = vunpack.c.h.b16 %v619
    %v2233 = vunpack.c.l.b16 %v620
    %v2234 = vunpack.c.h.b16 %v620
    %v2235 = vunpack.c.l.b16 %v621
    %v2236 = vunpack.c.h.b16 %v621
    %v2237 = vunpack.c.l.b16 %v622
    %v2238 = vunpack.c.h.b16 %v622
    %v2239 = vunpack.c.l.b16 %v623
    %v2240 = vunpack.c.h.b16 %v623
    %v2241 = vunpack.c.l.b16 %v624
    %v2242 = vunpack.c.h.b16 %v624
    %v2243 = vpack.c.b16 %v1227, %v1219
    %v2244 = vpack.c.b16 %v1228, %v1220
    %v2245 = vpack.c.b16 %v1229, %v1221
    %v2246 = vpack.c.b16 %v1230, %v1222
    %v2247 = vpack.c.b16 %v1231, %v1223
    %v2248 = vpack.c.b16 %v1232, %v1224
    %v2249 = vpack.c.b16 %v1233, %v1225
    %v2250 = vpack.c.b16 %v1234, %v1226
    %v2251 = vpack.c.b16 %v1243, %v1235
    %v2252 = vpack.c.b16 %v1244, %v1236
    %v2253 = vpack.c.b16 %v1245, %v1237
    %v2254 = vpack.c.b16 %v1246, %v1238
    %v2255 = vpack.c.b16 %v1247, %v1239
    %v2256 = vpack.c.b16 %v1248, %v1240
    %v2257 = vpack.c.b16 %v1249, %v1241
    %v2258 = vpack.c.b16 %v1250, %v1242
    %v2259 = vpack.c.b16 %v1259, %v1251
    %v2260 = vpack.c.b16 %v1260, %v1252
    %v2261 = vpack.c.b16 %v1261, %v1253
    %v2262 = vpack.c.b16 %v1262, %v1254
    %v2263 = vpack.c.b16 %v1263, %v1255
    %v2264 = vpack.c.b16 %v1264, %v1256
    %v2265 = vpack.c.b16 %v1265, %v1257
    %v2266 = vpack.c.b16 %v1266, %v1258
    %v2267 = vpack.c.b16 %v1275, %v1267
    %v2268 = vpack.c.b16 %v1276, %v1268
    %v2269 = vpack.c.b16 %v1277, %v1269
    %v2270 = vpack.c.b16 %v1278, %v1270
    %v2271 = vpack.c.b16 %v1279, %v1271
    %v2272 = vpack.c.b16 %v1280, %v1272
    %v2273 = vpack.c.b16 %v1281, %v1273
    %v2274 = vpack.c.b16 %v1282, %v1274
    %v2275 = vpack.c.b16 %v1291, %v1283
    %v2276 = vpack.c.b16 %v1292, %v1284
    %v2277 = vpack.c.b16 %v1293, %v1285
    %v2278 = vpack.c.b16 %v1294, %v1286
    %v2279 = vpack.c.b16 %v1295, %v1287
    %v2280 = vpack.c.b16 %v1296, %v1288
    %v2281 = vpack.c.b16 %v1297, %v1289
    %v2282 = vpack.c.b16 %v1298, %v1290
    %v2283 = vpack.c.b16 %v1307, %v1299
    %v2284 = vpack.c.b16 %v1308, %v1300
    %v2285 = vpack.c.b16 %v1309, %v1301
    %v2286 = vpack.c.b16 %v1310, %v1302
    %v2287 = vpack.c.b16 %v1311, %v1303
    %v2288 = vpack.c.b16 %v1312, %v1304
    %v2289 = vpack.c.b16 %v1313, %v1305
    %v2290 = vpack.c.b16 %v1314, %v1306
    %v2291 = vpack.c.b16 %v1323, %v1315
    %v2292 = vpack.c.b16 %v1324, %v1316
    %v2293 = vpack.c.b16 %v1325, %v1317
    %v2294 = vpack.c.b16 %v1326, %v1318
    %v2295 = vpack.c.b16 %v1327, %v1319
    %v2296 = vpack.c.b16 %v1328, %v1320
    %v2297 = vpack.c.b16 %v1329, %v1321
    %v2298 = vpack.c.b16 %v1330, %v1322
    %v2299 = vpack.c.b16 %v1339, %v1331
    %v2300 = vpack.c.b16 %v1340, %v1332
    %v2301 = vpack.c.b16 %v1341, %v1333
    %v2302 = vpack.c.b16 %v1342, %v1334
    %v2303 = vpack.c.b16 %v1343, %v1335
    %v2304 = vpack.c.b16 %v1344, %v1336
    %v2305 = vpack.c.b16 %v1345, %v1337
    %v2306 = vpack.c.b16 %v1346, %v1338
    %v2307 = vpack.c.b16 %v1355, %v1347
    %v2308 = vpack.c.b16 %v1356, %v1348
    %v2309 = vpack.c.b16 %v1357, %v1349
    %v2310 = vpack.c.b16 %v1358, %v1350
    %v2311 = vpack.c.b16 %v1359, %v1351
    %v2312 = vpack.c.b16 %v1360, %v1352
    %v2313 = vpack.c.b16 %v1361, %v1353
    %v2314 = vpack.c.b16 %v1362, %v1354
    %v2315 = vpack.c.b16 %v1371, %v1363
    %v2316 = vpack.c.b16 %v1372, %v1364
    %v2317 = vpack.c.b16 %v1373, %v1365
    %v2318 = vpack.c.b16 %v1374, %v1366
    %v2319 = vpack.c.b16 %v1375, %v1367
    %v2320 = vpack.c.b16 %v1376, %v1368
    %v2321 = vpack.c.b16 %v1377, %v1369
    %v2322 = vpack.c.b16 %v1378, %v1370
    %v2323 = vpack.c.b16 %v1387, %v1379
    %v2324 = vpack.c.b16 %v1388, %v1380
    %v2325 = vpack.c.b16 %v1389, %v1381
    %v2326 = vpack.c.b16 %v1390, %v1382
    %v2327 = vpack.c.b16 %v1391, %v1383
    %v2328 = vpack.c.b16 %v1392, %v1384
    %v2329 = vpack.c.b16 %v1393, %v1385
    %v2330 = vpack.c.b16 %v1394, %v1386
    %v2331 = vpack.c.b16 %v1403, %v1395
    %v2332 = vpack.c.b16 %v1404, %v1396
    %v2333 = vpack.c.b16 %v1405, %v1397
    %v2334 = vpack.c.b16 %v1406, %v1398
    %v2335 = vpack.c.b16 %v1407, %v1399
    %v2336 = vpack.c.b16 %v1408, %v1400
    %v2337 = vpack.c.b16 %v1409, %v1401
    %v2338 = vpack.c.b16 %v1410, %v1402
    %v2339 = vpack.c.b16 %v1419, %v1411
    %v2340 = vpack.c.b16 %v1420, %v1412
    %v2341 = vpack.c.b16 %v1421, %v1413
    %v2342 = vpack.c.b16 %v1422, %v1414
    %v2343 = vpack.c.b16 %v1423, %v1415
    %v2344 = vpack.c.b16 %v1424, %v1416
    %v2345 = vpack.c.b16 %v1425, %v1417
    %v2346 = vpack.c.b16 %v1426, %v1418
    %v2347 = vpack.c.b16 %v1435, %v1427
    %v2348 = vpack.c.b16 %v1436, %v1428
    %v2349 = vpack.c.b16 %v1437, %v1429
    %v2350 = vpack.c.b16 %v1438, %v1430
    %v2351 = vpack.c.b16 %v1439, %v1431
    %v2352 = vpack.c.b16 %v1440, %v1432
    %v2353 = vpack.c.b16 %v1441, %v1433
    %v2354 = vpack.c.b16 %v1442, %v1434
    %v2355 = vpack.c.b16 %v1451, %v1443
    %v2356 = vpack.c.b16 %v1452, %v1444
    %v2357 = vpack.c.b16 %v1453, %v1445
    %v2358 = vpack.c.b16 %v1454, %v1446
    %v2359 = vpack.c.b16 %v1455, %v1447
    %v2360 = vpack.c.b16 %v1456, %v1448
    %v2361 = vpack.c.b16 %v1457, %v1449
    %v2362 = vpack.c.b16 %v1458, %v1450
    %v2363 = vpack.c.b16 %v1467, %v1459
    %v2364 = vpack.c.b16 %v1468, %v1460
    %v2365 = vpack.c.b16 %v1469, %v1461
    %v2366 = vpack.c.b16 %v1470, %v1462
    %v2367 = vpack.c.b16 %v1471, %v1463
    %v2368 = vpack.c.b16 %v1472, %v1464
    %v2369 = vpack.c.b16 %v1473, %v1465
    %v2370 = vpack.c.b16 %v1474, %v1466
    %v2371 = vpack.c.b16 %v1483, %v1475
    %v2372 = vpack.c.b16 %v1484, %v1476
    %v2373 = vpack.c.b16 %v1485, %v1477
    %v2374 = vpack.c.b16 %v1486, %v1478
    %v2375 = vpack.c.b16 %v1487, %v1479
    %v2376 = vpack.c.b16 %v1488, %v1480
    %v2377 = vpack.c.b16 %v1489, %v1481
    %v2378 = vpack.c.b16 %v1490, %v1482
    %v2379 = vpack.c.b16 %v1499, %v1491
    %v2380 = vpack.c.b16 %v1500, %v1492
    %v2381 = vpack.c.b16 %v1501, %v1493
    %v2382 = vpack.c.b16 %v1502, %v1494
    %v2383 = vpack.c.b16 %v1503, %v1495
    %v2384 = vpack.c.b16 %v1504, %v1496
    %v2385 = vpack.c.b16 %v1505, %v1497
    %v2386 = vpack.c.b16 %v1506, %v1498
    %v2387 = vpack.c.b16 %v1515, %v1507
    %v2388 = vpack.c.b16 %v1516, %v1508
    %v2389 = vpack.c.b16 %v1517, %v1509
    %v2390 = vpack.c.b16 %v1518, %v1510
    %v2391 = vpack.c.b16 %v1519, %v1511
    %v2392 = vpack.c.b16 %v1520, %v1512
    %v2393 = vpack.c.b16 %v1521, %v1513
    %v2394 = vpack.c.b16 %v1522, %v1514
    %v2395 = vpack.c.b16 %v1531, %v1523
    %v2396 = vpack.c.b16 %v1532, %v1524
    %v2397 = vpack.c.b16 %v1533, %v1525
    %v2398 = vpack.c.b16 %v1534, %v1526
    %v2399 = vpack.c.b16 %v1535, %v1527
    %v2400 = vpack.c.b16 %v1536, %v1528
    %v2401 = vpack.c.b16 %v1537, %v1529
    %v2402 = vpack.c.b16 %v1538, %v1530
    %v2403 = vpack.c.b16 %v1547, %v1539
    %v2404 = vpack.c.b16 %v1548, %v1540
    %v2405 = vpack.c.b16 %v1549, %v1541
    %v2406 = vpack.c.b16 %v1550, %v1542
    %v2407 = vpack.c.b16 %v1551, %v1543
    %v2408 = vpack.c.b16 %v1552, %v1544
    %v2409 = vpack.c.b16 %v1553, %v1545
    %v2410 = vpack.c.b16 %v1554, %v1546
    %v2411 = vpack.c.b16 %v1563, %v1555
    %v2412 = vpack.c.b16 %v1564, %v1556
    %v2413 = vpack.c.b16 %v1565, %v1557
    %v2414 = vpack.c.b16 %v1566, %v1558
    %v2415 = vpack.c.b16 %v1567, %v1559
    %v2416 = vpack.c.b16 %v1568, %v1560
    %v2417 = vpack.c.b16 %v1569, %v1561
    %v2418 = vpack.c.b16 %v1570, %v1562
    %v2419 = vpack.c.b16 %v1579, %v1571
    %v2420 = vpack.c.b16 %v1580, %v1572
    %v2421 = vpack.c.b16 %v1581, %v1573
    %v2422 = vpack.c.b16 %v1582, %v1574
    %v2423 = vpack.c.b16 %v1583, %v1575
    %v2424 = vpack.c.b16 %v1584, %v1576
    %v2425 = vpack.c.b16 %v1585, %v1577
    %v2426 = vpack.c.b16 %v1586, %v1578
    %v2427 = vpack.c.b16 %v1595, %v1587
    %v2428 = vpack.c.b16 %v1596, %v1588
    %v2429 = vpack.c.b16 %v1597, %v1589
    %v2430 = vpack.c.b16 %v1598, %v1590
    %v2431 = vpack.c.b16 %v1599, %v1591
    %v2432 = vpack.c.b16 %v1600, %v1592
    %v2433 = vpack.c.b16 %v1601, %v1593
    %v2434 = vpack.c.b16 %v1602, %v1594
    %v2435 = vpack.c.b16 %v1611, %v1603
    %v2436 = vpack.c.b16 %v1612, %v1604
    %v2437 = vpack.c.b16 %v1613, %v1605
    %v2438 = vpack.c.b16 %v1614, %v1606
    %v2439 = vpack.c.b16 %v1615, %v1607
    %v2440 = vpack.c.b16 %v1616, %v1608
    %v2441 = vpack.c.b16 %v1617, %v1609
    %v2442 = vpack.c.b16 %v1618, %v1610
    %v2443 = vpack.c.b16 %v1627, %v1619
    %v2444 = vpack.c.b16 %v1628, %v1620
    %v2445 = vpack.c.b16 %v1629, %v1621
    %v2446 = vpack.c.b16 %v1630, %v1622
    %v2447 = vpack.c.b16 %v1631, %v1623
    %v2448 = vpack.c.b16 %v1632, %v1624
    %v2449 = vpack.c.b16 %v1633, %v1625
    %v2450 = vpack.c.b16 %v1634, %v1626
    %v2451 = vpack.c.b16 %v1643, %v1635
    %v2452 = vpack.c.b16 %v1644, %v1636
    %v2453 = vpack.c.b16 %v1645, %v1637
    %v2454 = vpack.c.b16 %v1646, %v1638
    %v2455 = vpack.c.b16 %v1647, %v1639
    %v2456 = vpack.c.b16 %v1648, %v1640
    %v2457 = vpack.c.b16 %v1649, %v1641
    %v2458 = vpack.c.b16 %v1650, %v1642
    %v2459 = vpack.c.b16 %v1659, %v1651
    %v2460 = vpack.c.b16 %v1660, %v1652
    %v2461 = vpack.c.b16 %v1661, %v1653
    %v2462 = vpack.c.b16 %v1662, %v1654
    %v2463 = vpack.c.b16 %v1663, %v1655
    %v2464 = vpack.c.b16 %v1664, %v1656
    %v2465 = vpack.c.b16 %v1665, %v1657
    %v2466 = vpack.c.b16 %v1666, %v1658
    %v2467 = vpack.c.b16 %v1675, %v1667
    %v2468 = vpack.c.b16 %v1676, %v1668
    %v2469 = vpack.c.b16 %v1677, %v1669
    %v2470 = vpack.c.b16 %v1678, %v1670
    %v2471 = vpack.c.b16 %v1679, %v1671
    %v2472 = vpack.c.b16 %v1680, %v1672
    %v2473 = vpack.c.b16 %v1681, %v1673
    %v2474 = vpack.c.b16 %v1682, %v1674
    %v2475 = vpack.c.b16 %v1691, %v1683
    %v2476 = vpack.c.b16 %v1692, %v1684
    %v2477 = vpack.c.b16 %v1693, %v1685
    %v2478 = vpack.c.b16 %v1694, %v1686
    %v2479 = vpack.c.b16 %v1695, %v1687
    %v2480 = vpack.c.b16 %v1696, %v1688
    %v2481 = vpack.c.b16 %v1697, %v1689
    %v2482 = vpack.c.b16 %v1698, %v1690
    %v2483 = vpack.c.b16 %v1707, %v1699
    %v2484 = vpack.c.b16 %v1708, %v1700
    %v2485 = vpack.c.b16 %v1709, %v1701
    %v2486 = vpack.c.b16 %v1710, %v1702
    %v2487 = vpack.c.b16 %v1711, %v1703
    %v2488 = vpack.c.b16 %v1712, %v1704
    %v2489 = vpack.c.b16 %v1713, %v1705
    %v2490 = vpack.c.b16 %v1714, %v1706
    %v2491 = vpack.c.b16 %v1723, %v1715
    %v2492 = vpack.c.b16 %v1724, %v1716
    %v2493 = vpack.c.b16 %v1725, %v1717
    %v2494 = vpack.c.b16 %v1726, %v1718
    %v2495 = vpack.c.b16 %v1727, %v1719
    %v2496 = vpack.c.b16 %v1728, %v1720
    %v2497 = vpack.c.b16 %v1729, %v1721
    %v2498 = vpack.c.b16 %v1730, %v1722
    %v2499 = vpack.c.b16 %v1739, %v1731
    %v2500 = vpack.c.b16 %v1740, %v1732
    %v2501 = vpack.c.b16 %v1741, %v1733
    %v2502 = vpack.c.b16 %v1742, %v1734
    %v2503 = vpack.c.b16 %v1743, %v1735
    %v2504 = vpack.c.b16 %v1744, %v1736
    %v2505 = vpack.c.b16 %v1745, %v1737
    %v2506 = vpack.c.b16 %v1746, %v1738
    %v2507 = vpack.c.b16 %v1755, %v1747
    %v2508 = vpack.c.b16 %v1756, %v1748
    %v2509 = vpack.c.b16 %v1757, %v1749
    %v2510 = vpack.c.b16 %v1758, %v1750
    %v2511 = vpack.c.b16 %v1759, %v1751
    %v2512 = vpack.c.b16 %v1760, %v1752
    %v2513 = vpack.c.b16 %v1761, %v1753
    %v2514 = vpack.c.b16 %v1762, %v1754
    %v2515 = vpack.c.b16 %v1771, %v1763
    %v2516 = vpack.c.b16 %v1772, %v1764
    %v2517 = vpack.c.b16 %v1773, %v1765
    %v2518 = vpack.c.b16 %v1774, %v1766
    %v2519 = vpack.c.b16 %v1775, %v1767
    %v2520 = vpack.c.b16 %v1776, %v1768
    %v2521 = vpack.c.b16 %v1777, %v1769
    %v2522 = vpack.c.b16 %v1778, %v1770
    %v2523 = vpack.c.b16 %v1787, %v1779
    %v2524 = vpack.c.b16 %v1788, %v1780
    %v2525 = vpack.c.b16 %v1789, %v1781
    %v2526 = vpack.c.b16 %v1790, %v1782
    %v2527 = vpack.c.b16 %v1791, %v1783
    %v2528 = vpack.c.b16 %v1792, %v1784
    %v2529 = vpack.c.b16 %v1793, %v1785
    %v2530 = vpack.c.b16 %v1794, %v1786
    %v2531 = vpack.c.b16 %v1803, %v1795
    %v2532 = vpack.c.b16 %v1804, %v1796
    %v2533 = vpack.c.b16 %v1805, %v1797
    %v2534 = vpack.c.b16 %v1806, %v1798
    %v2535 = vpack.c.b16 %v1807, %v1799
    %v2536 = vpack.c.b16 %v1808, %v1800
    %v2537 = vpack.c.b16 %v1809, %v1801
    %v2538 = vpack.c.b16 %v1810, %v1802
    %v2539 = vpack.c.b16 %v1819, %v1811
    %v2540 = vpack.c.b16 %v1820, %v1812
    %v2541 = vpack.c.b16 %v1821, %v1813
    %v2542 = vpack.c.b16 %v1822, %v1814
    %v2543 = vpack.c.b16 %v1823, %v1815
    %v2544 = vpack.c.b16 %v1824, %v1816
    %v2545 = vpack.c.b16 %v1825, %v1817
    %v2546 = vpack.c.b16 %v1826, %v1818
    %v2547 = vpack.c.b16 %v1835, %v1827
    %v2548 = vpack.c.b16 %v1836, %v1828
    %v2549 = vpack.c.b16 %v1837, %v1829
    %v2550 = vpack.c.b16 %v1838, %v1830
    %v2551 = vpack.c.b16 %v1839, %v1831
    %v2552 = vpack.c.b16 %v1840, %v1832
    %v2553 = vpack.c.b16 %v1841, %v1833
    %v2554 = vpack.c.b16 %v1842, %v1834
    %v2555 = vpack.c.b16 %v1851, %v1843
    %v2556 = vpack.c.b16 %v1852, %v1844
    %v2557 = vpack.c.b16 %v1853, %v1845
    %v2558 = vpack.c.b16 %v1854, %v1846
    %v2559 = vpack.c.b16 %v1855, %v1847
    %v2560 = vpack.c.b16 %v1856, %v1848
    %v2561 = vpack.c.b16 %v1857, %v1849
    %v2562 = vpack.c.b16 %v1858, %v1850
    %v2563 = vpack.c.b16 %v1867, %v1859
    %v2564 = vpack.c.b16 %v1868, %v1860
    %v2565 = vpack.c.b16 %v1869, %v1861
    %v2566 = vpack.c.b16 %v1870, %v1862
    %v2567 = vpack.c.b16 %v1871, %v1863
    %v2568 = vpack.c.b16 %v1872, %v1864
    %v2569 = vpack.c.b16 %v1873, %v1865
    %v2570 = vpack.c.b16 %v1874, %v1866
    %v2571 = vpack.c.b16 %v1883, %v1875
    %v2572 = vpack.c.b16 %v1884, %v1876
    %v2573 = vpack.c.b16 %v1885, %v1877
    %v2574 = vpack.c.b16 %v1886, %v1878
    %v2575 = vpack.c.b16 %v1887, %v1879
    %v2576 = vpack.c.b16 %v1888, %v1880
    %v2577 = vpack.c.b16 %v1889, %v1881
    %v2578 = vpack.c.b16 %v1890, %v1882
    %v2579 = vpack.c.b16 %v1899, %v1891
    %v2580 = vpack.c.b16 %v1900, %v1892
    %v2581 = vpack.c.b16 %v1901, %v1893
    %v2582 = vpack.c.b16 %v1902, %v1894
    %v2583 = vpack.c.b16 %v1903, %v1895
    %v2584 = vpack.c.b16 %v1904, %v1896
    %v2585 = vpack.c.b16 %v1905, %v1897
    %v2586 = vpack.c.b16 %v1906, %v1898
    %v2587 = vpack.c.b16 %v1915, %v1907
    %v2588 = vpack.c.b16 %v1916, %v1908
    %v2589 = vpack.c.b16 %v1917, %v1909
    %v2590 = vpack.c.b16 %v1918, %v1910
    %v2591 = vpack.c.b16 %v1919, %v1911
    %v2592 = vpack.c.b16 %v1920, %v1912
    %v2593 = vpack.c.b16 %v1921, %v1913
    %v2594 = vpack.c.b16 %v1922, %v1914
    %v2595 = vpack.c.b16 %v1931, %v1923
    %v2596 = vpack.c.b16 %v1932, %v1924
    %v2597 = vpack.c.b16 %v1933, %v1925
    %v2598 = vpack.c.b16 %v1934, %v1926
    %v2599 = vpack.c.b16 %v1935, %v1927
    %v2600 = vpack.c.b16 %v1936, %v1928
    %v2601 = vpack.c.b16 %v1937, %v1929
    %v2602 = vpack.c.b16 %v1938, %v1930
    %v2603 = vpack.c.b16 %v1947, %v1939
    %v2604 = vpack.c.b16 %v1948, %v1940
    %v2605 = vpack.c.b16 %v1949, %v1941
    %v2606 = vpack.c.b16 %v1950, %v1942
    %v2607 = vpack.c.b16 %v1951, %v1943
    %v2608 = vpack.c.b16 %v1952, %v1944
    %v2609 = vpack.c.b16 %v1953, %v1945
    %v2610 = vpack.c.b16 %v1954, %v1946
    %v2611 = vpack.c.b16 %v1963, %v1955
    %v2612 = vpack.c.b16 %v1964, %v1956
    %v2613 = vpack.c.b16 %v1965, %v1957
    %v2614 = vpack.c.b16 %v1966, %v1958
    %v2615 = vpack.c.b16 %v1967, %v1959
    %v2616 = vpack.c.b16 %v1968, %v1960
    %v2617 = vpack.c.b16 %v1969, %v1961
    %v2618 = vpack.c.b16 %v1970, %v1962
    %v2619 = vpack.c.b16 %v1979, %v1971
    %v2620 = vpack.c.b16 %v1980, %v1972
    %v2621 = vpack.c.b16 %v1981, %v1973
    %v2622 = vpack.c.b16 %v1982, %v1974
    %v2623 = vpack.c.b16 %v1983, %v1975
    %v2624 = vpack.c.b16 %v1984, %v1976
    %v2625 = vpack.c.b16 %v1985, %v1977
    %v2626 = vpack.c.b16 %v1986, %v1978
    %v2627 = vpack.c.b16 %v1995, %v1987
    %v2628 = vpack.c.b16 %v1996, %v1988
    %v2629 = vpack.c.b16 %v1997, %v1989
    %v2630 = vpack.c.b16 %v1998, %v1990
    %v2631 = vpack.c.b16 %v1999, %v1991
    %v2632 = vpack.c.b16 %v2000, %v1992
    %v2633 = vpack.c.b16 %v2001, %v1993
    %v2634 = vpack.c.b16 %v2002, %v1994
    %v2635 = vpack.c.b16 %v2011, %v2003
    %v2636 = vpack.c.b16 %v2012, %v2004
    %v2637 = vpack.c.b16 %v2013, %v2005
    %v2638 = vpack.c.b16 %v2014, %v2006
    %v2639 = vpack.c.b16 %v2015, %v2007
    %v2640 = vpack.c.b16 %v2016, %v2008
    %v2641 = vpack.c.b16 %v2017, %v2009
    %v2642 = vpack.c.b16 %v2018, %v2010
    %v2643 = vpack.c.b16 %v2027, %v2019
    %v2644 = vpack.c.b16 %v2028, %v2020
    %v2645 = vpack.c.b16 %v2029, %v2021
    %v2646 = vpack.c.b16 %v2030, %v2022
    %v2647 = vpack.c.b16 %v2031, %v2023
    %v2648 = vpack.c.b16 %v2032, %v2024
    %v2649 = vpack.c.b16 %v2033, %v2025
    %v2650 = vpack.c.b16 %v2034, %v2026
    %v2651 = vpack.c.b16 %v2043, %v2035
    %v2652 = vpack.c.b16 %v2044, %v2036
    %v2653 = vpack.c.b16 %v2045, %v2037
    %v2654 = vpack.c.b16 %v2046, %v2038
    %v2655 = vpack.c.b16 %v2047, %v2039
    %v2656 = vpack.c.b16 %v2048, %v2040
    %v2657 = vpack.c.b16 %v2049, %v2041
    %v2658 = vpack.c.b16 %v2050, %v2042
    %v2659 = vpack.c.b16 %v2059, %v2051
    %v2660 = vpack.c.b16 %v2060, %v2052
    %v2661 = vpack.c.b16 %v2061, %v2053
    %v2662 = vpack.c.b16 %v2062, %v2054
    %v2663 = vpack.c.b16 %v2063, %v2055
    %v2664 = vpack.c.b16 %v2064, %v2056
    %v2665 = vpack.c.b16 %v2065, %v2057
    %v2666 = vpack.c.b16 %v2066, %v2058
    %v2667 = vpack.c.b16 %v2075, %v2067
    %v2668 = vpack.c.b16 %v2076, %v2068
    %v2669 = vpack.c.b16 %v2077, %v2069
    %v2670 = vpack.c.b16 %v2078, %v2070
    %v2671 = vpack.c.b16 %v2079, %v2071
    %v2672 = vpack.c.b16 %v2080, %v2072
    %v2673 = vpack.c.b16 %v2081, %v2073
    %v2674 = vpack.c.b16 %v2082, %v2074
    %v2675 = vpack.c.b16 %v2091, %v2083
    %v2676 = vpack.c.b16 %v2092, %v2084
    %v2677 = vpack.c.b16 %v2093, %v2085
    %v2678 = vpack.c.b16 %v2094, %v2086
    %v2679 = vpack.c.b16 %v2095, %v2087
    %v2680 = vpack.c.b16 %v2096, %v2088
    %v2681 = vpack.c.b16 %v2097, %v2089
    %v2682 = vpack.c.b16 %v2098, %v2090
    %v2683 = vpack.c.b16 %v2107, %v2099
    %v2684 = vpack.c.b16 %v2108, %v2100
    %v2685 = vpack.c.b16 %v2109, %v2101
    %v2686 = vpack.c.b16 %v2110, %v2102
    %v2687 = vpack.c.b16 %v2111, %v2103
    %v2688 = vpack.c.b16 %v2112, %v2104
    %v2689 = vpack.c.b16 %v2113, %v2105
    %v2690 = vpack.c.b16 %v2114, %v2106
    %v2691 = vpack.c.b16 %v2123, %v2115
    %v2692 = vpack.c.b16 %v2124, %v2116
    %v2693 = vpack.c.b16 %v2125, %v2117
    %v2694 = vpack.c.b16 %v2126, %v2118
    %v2695 = vpack.c.b16 %v2127, %v2119
    %v2696 = vpack.c.b16 %v2128, %v2120
    %v2697 = vpack.c.b16 %v2129, %v2121
    %v2698 = vpack.c.b16 %v2130, %v2122
    %v2699 = vpack.c.b16 %v2139, %v2131
    %v2700 = vpack.c.b16 %v2140, %v2132
    %v2701 = vpack.c.b16 %v2141, %v2133
    %v2702 = vpack.c.b16 %v2142, %v2134
    %v2703 = vpack.c.b16 %v2143, %v2135
    %v2704 = vpack.c.b16 %v2144, %v2136
    %v2705 = vpack.c.b16 %v2145, %v2137
    %v2706 = vpack.c.b16 %v2146, %v2138
    %v2707 = vpack.c.b16 %v2155, %v2147
    %v2708 = vpack.c.b16 %v2156, %v2148
    %v2709 = vpack.c.b16 %v2157, %v2149
    %v2710 = vpack.c.b16 %v2158, %v2150
    %v2711 = vpack.c.b16 %v2159, %v2151
    %v2712 = vpack.c.b16 %v2160, %v2152
    %v2713 = vpack.c.b16 %v2161, %v2153
    %v2714 = vpack.c.b16 %v2162, %v2154
    %v2715 = vpack.c.b16 %v2171, %v2163
    %v2716 = vpack.c.b16 %v2172, %v2164
    %v2717 = vpack.c.b16 %v2173, %v2165
    %v2718 = vpack.c.b16 %v2174, %v2166
    %v2719 = vpack.c.b16 %v2175, %v2167
    %v2720 = vpack.c.b16 %v2176, %v2168
    %v2721 = vpack.c.b16 %v2177, %v2169
    %v2722 = vpack.c.b16 %v2178, %v2170
    %v2723 = vpack.c.b16 %v2187, %v2179
    %v2724 = vpack.c.b16 %v2188, %v2180
    %v2725 = vpack.c.b16 %v2189, %v2181
    %v2726 = vpack.c.b16 %v2190, %v2182
    %v2727 = vpack.c.b16 %v2191, %v2183
    %v2728 = vpack.c.b16 %v2192, %v2184
    %v2729 = vpack.c.b16 %v2193, %v2185
    %v2730 = vpack.c.b16 %v2194, %v2186
    %v2731 = vpack.c.b16 %v2203, %v2195
    %v2732 = vpack.c.b16 %v2204, %v2196
    %v2733 = vpack.c.b16 %v2205, %v2197
    %v2734 = vpack.c.b16 %v2206, %v2198
    %v2735 = vpack.c.b16 %v2207, %v2199
    %v2736 = vpack.c.b16 %v2208, %v2200
    %v2737 = vpack.c.b16 %v2209, %v2201
    %v2738 = vpack.c.b16 %v2210, %v2202
    %v2739 = vpack.c.b16 %v2219, %v2211
    %v2740 = vpack.c.b16 %v2220, %v2212
    %v2741 = vpack.c.b16 %v2221, %v2213
    %v2742 = vpack.c.b16 %v2222, %v2214
    %v2743 = vpack.c.b16 %v2223, %v2215
    %v2744 = vpack.c.b16 %v2224, %v2216
    %v2745 = vpack.c.b16 %v2225, %v2217
    %v2746 = vpack.c.b16 %v2226, %v2218
    %v2747 = vpack.c.b16 %v2235, %v2227
    %v2748 = vpack.c.b16 %v2236, %v2228
    %v2749 = vpack.c.b16 %v2237, %v2229
    %v2750 = vpack.c.b16 %v2238, %v2230
    %v2751 = vpack.c.b16 %v2239, %v2231
    %v2752 = vpack.c.b16 %v2240, %v2232
    %v2753 = vpack.c.b16 %v2241, %v2233
    %v2754 = vpack.c.b16 %v2242, %v2234
    %3267 = vmatprep.subr.bf16.mxu0 %v2244
    %3268 = vmatpush1.bf16.msra.mxu0 %v2243
    %3269 = vmatprep.subr.bf16.mxu0 %v2252
    %3270 = vmatpush1.bf16.msra.mxu0 %v2251
    %3271 = vmatprep.subr.bf16.mxu0 %v2260
    %3272 = vmatpush1.bf16.msra.mxu0 %v2259
    %3273 = vmatprep.subr.bf16.mxu0 %v2268
    %3274 = vmatpush1.bf16.msra.mxu0 %v2267
    %3275 = vmatprep.subr.bf16.mxu0 %v2276
    %3276 = vmatpush1.bf16.msra.mxu0 %v2275
    %3277 = vmatprep.subr.bf16.mxu0 %v2284
    %3278 = vmatpush1.bf16.msra.mxu0 %v2283
    %3279 = vmatprep.subr.bf16.mxu0 %v2292
    %3280 = vmatpush1.bf16.msra.mxu0 %v2291
    %3281 = vmatprep.subr.bf16.mxu0 %v2300
    %3282 = vmatpush1.bf16.msra.mxu0 %v2299
    %3283 = vmatprep.subr.bf16.mxu0 %v2308
    %3284 = vmatpush1.bf16.msra.mxu0 %v2307
    %3285 = vmatprep.subr.bf16.mxu0 %v2316
    %3286 = vmatpush1.bf16.msra.mxu0 %v2315
    %3287 = vmatprep.subr.bf16.mxu0 %v2324
    %3288 = vmatpush1.bf16.msra.mxu0 %v2323
    %3289 = vmatprep.subr.bf16.mxu0 %v2332
    %3290 = vmatpush1.bf16.msra.mxu0 %v2331
    %3291 = vmatprep.subr.bf16.mxu0 %v2340
    %3292 = vmatpush1.bf16.msra.mxu0 %v2339
    %3293 = vmatprep.subr.bf16.mxu0 %v2348
    %3294 = vmatpush1.bf16.msra.mxu0 %v2347
    %3295 = vmatprep.subr.bf16.mxu0 %v2356
    %3296 = vmatpush1.bf16.msra.mxu0 %v2355
    %3297 = vmatprep.subr.bf16.mxu0 %v2364
    %3298 = vmatpush1.bf16.msra.mxu0 %v2363
    %3299 = vmatprep.mubr.bf16.mxu0 %v692
    %3300 = vmatmul.mubr.bf16.gmra.mrb[0].mxu0 %v691
    %v3301 = vpop.f32.mrb[0].mxu0
    %v3302 = vadd.f32 %v630, %v3301
    %v3303 = vpop.f32.mrb[0].mxu0
    %v3304 = vadd.f32 %v634, %v3303
    %v3305 = vpop.f32.mrb[0].mxu0
    %v3306 = vadd.f32 %v630, %v3305
    %v3307 = vpop.f32.mrb[0].mxu0
    %v3308 = vadd.f32 %v634, %v3307
    %3309 = vdwg.mxu0
    %3310 = vmatprep.subr.bf16.mxu0 %v2372
    %3311 = vmatpush1.bf16.msra.mxu0 %v2371
    %3312 = vmatprep.subr.bf16.mxu0 %v2380
    %3313 = vmatpush1.bf16.msra.mxu0 %v2379
    %3314 = vmatprep.subr.bf16.mxu0 %v2388
    %3315 = vmatpush1.bf16.msra.mxu0 %v2387
    %3316 = vmatprep.subr.bf16.mxu0 %v2396
    %3317 = vmatpush1.bf16.msra.mxu0 %v2395
    %3318 = vmatprep.subr.bf16.mxu0 %v2404
    %3319 = vmatpush1.bf16.msra.mxu0 %v2403
    %3320 = vmatprep.subr.bf16.mxu0 %v2412
    %3321 = vmatpush1.bf16.msra.mxu0 %v2411
    %3322 = vmatprep.subr.bf16.mxu0 %v2420
    %3323 = vmatpush1.bf16.msra.mxu0 %v2419
    %3324 = vmatprep.subr.bf16.mxu0 %v2428
    %3325 = vmatpush1.bf16.msra.mxu0 %v2427
    %3326 = vmatprep.subr.bf16.mxu0 %v2436
    %3327 = vmatpush1.bf16.msra.mxu0 %v2435
    %3328 = vmatprep.subr.bf16.mxu0 %v2444
    %3329 = vmatpush1.bf16.msra.mxu0 %v2443
    %3330 = vmatprep.subr.bf16.mxu0 %v2452
    %3331 = vmatpush1.bf16.msra.mxu0 %v2451
    %3332 = vmatprep.subr.bf16.mxu0 %v2460
    %3333 = vmatpush1.bf16.msra.mxu0 %v2459
    %3334 = vmatprep.subr.bf16.mxu0 %v2468
    %3335 = vmatpush1.bf16.msra.mxu0 %v2467
    %3336 = vmatprep.subr.bf16.mxu0 %v2476
    %3337 = vmatpush1.bf16.msra.mxu0 %v2475
    %3338 = vmatprep.subr.bf16.mxu0 %v2484
    %3339 = vmatpush1.bf16.msra.mxu0 %v2483
    %3340 = vmatprep.subr.bf16.mxu0 %v2492
    %3341 = vmatpush1.bf16.msra.mxu0 %v2491
    %3342 = vmatprep.mubr.bf16.mxu0 %v694
    %3343 = vmatmul.mubr.bf16.gmra.mrb[0].mxu0 %v693
    %v3344 = vpop.f32.mrb[0].mxu0
    %v3345 = vadd.f32 %v3302, %v3344
    %v3346 = vpop.f32.mrb[0].mxu0
    %v3347 = vadd.f32 %v3304, %v3346
    %v3348 = vpop.f32.mrb[0].mxu0
    %v3349 = vadd.f32 %v3306, %v3348
    %v3350 = vpop.f32.mrb[0].mxu0
    %v3351 = vadd.f32 %v3308, %v3350
    %3352 = vdwg.mxu0
    %3353 = vmatprep.subr.bf16.mxu0 %v2500
    %3354 = vmatpush1.bf16.msra.mxu0 %v2499
    %3355 = vmatprep.subr.bf16.mxu0 %v2508
    %3356 = vmatpush1.bf16.msra.mxu0 %v2507
    %3357 = vmatprep.subr.bf16.mxu0 %v2516
    %3358 = vmatpush1.bf16.msra.mxu0 %v2515
    %3359 = vmatprep.subr.bf16.mxu0 %v2524
    %3360 = vmatpush1.bf16.msra.mxu0 %v2523
    %3361 = vmatprep.subr.bf16.mxu0 %v2532
    %3362 = vmatpush1.bf16.msra.mxu0 %v2531
    %3363 = vmatprep.subr.bf16.mxu0 %v2540
    %3364 = vmatpush1.bf16.msra.mxu0 %v2539
    %3365 = vmatprep.subr.bf16.mxu0 %v2548
    %3366 = vmatpush1.bf16.msra.mxu0 %v2547
    %3367 = vmatprep.subr.bf16.mxu0 %v2556
    %3368 = vmatpush1.bf16.msra.mxu0 %v2555
    %3369 = vmatprep.subr.bf16.mxu0 %v2564
    %3370 = vmatpush1.bf16.msra.mxu0 %v2563
    %3371 = vmatprep.subr.bf16.mxu0 %v2572
    %3372 = vmatpush1.bf16.msra.mxu0 %v2571
    %3373 = vmatprep.subr.bf16.mxu0 %v2580
    %3374 = vmatpush1.bf16.msra.mxu0 %v2579
    %3375 = vmatprep.subr.bf16.mxu0 %v2588
    %3376 = vmatpush1.bf16.msra.mxu0 %v2587
    %3377 = vmatprep.subr.bf16.mxu0 %v2596
    %3378 = vmatpush1.bf16.msra.mxu0 %v2595
    %3379 = vmatprep.subr.bf16.mxu0 %v2604
    %3380 = vmatpush1.bf16.msra.mxu0 %v2603
    %3381 = vmatprep.subr.bf16.mxu0 %v2612
    %3382 = vmatpush1.bf16.msra.mxu0 %v2611
    %3383 = vmatprep.subr.bf16.mxu0 %v2620
    %3384 = vmatpush1.bf16.msra.mxu0 %v2619
    %3385 = vmatprep.mubr.bf16.mxu0 %v696
    %3386 = vmatmul.mubr.bf16.gmra.mrb[0].mxu0 %v695
    %v3387 = vpop.f32.mrb[0].mxu0
    %v3388 = vadd.f32 %v3345, %v3387
    %v3389 = vpop.f32.mrb[0].mxu0
    %v3390 = vadd.f32 %v3347, %v3389
    %v3391 = vpop.f32.mrb[0].mxu0
    %v3392 = vadd.f32 %v3349, %v3391
    %v3393 = vpop.f32.mrb[0].mxu0
    %v3394 = vadd.f32 %v3351, %v3393
    %3395 = vdwg.mxu0
    %3396 = vmatprep.subr.bf16.mxu0 %v2628
    %3397 = vmatpush1.bf16.msra.mxu0 %v2627
    %3398 = vmatprep.subr.bf16.mxu0 %v2636
    %3399 = vmatpush1.bf16.msra.mxu0 %v2635
    %3400 = vmatprep.subr.bf16.mxu0 %v2644
    %3401 = vmatpush1.bf16.msra.mxu0 %v2643
    %3402 = vmatprep.subr.bf16.mxu0 %v2652
    %3403 = vmatpush1.bf16.msra.mxu0 %v2651
    %3404 = vmatprep.subr.bf16.mxu0 %v2660
    %3405 = vmatpush1.bf16.msra.mxu0 %v2659
    %3406 = vmatprep.subr.bf16.mxu0 %v2668
    %3407 = vmatpush1.bf16.msra.mxu0 %v2667
    %3408 = vmatprep.subr.bf16.mxu0 %v2676
    %3409 = vmatpush1.bf16.msra.mxu0 %v2675
    %3410 = vmatprep.subr.bf16.mxu0 %v2684
    %3411 = vmatpush1.bf16.msra.mxu0 %v2683
    %3412 = vmatprep.subr.bf16.mxu0 %v2692
    %3413 = vmatpush1.bf16.msra.mxu0 %v2691
    %3414 = vmatprep.subr.bf16.mxu0 %v2700
    %3415 = vmatpush1.bf16.msra.mxu0 %v2699
    %3416 = vmatprep.subr.bf16.mxu0 %v2708
    %3417 = vmatpush1.bf16.msra.mxu0 %v2707
    %3418 = vmatprep.subr.bf16.mxu0 %v2716
    %3419 = vmatpush1.bf16.msra.mxu0 %v2715
    %3420 = vmatprep.subr.bf16.mxu0 %v2724
    %3421 = vmatpush1.bf16.msra.mxu0 %v2723
    %3422 = vmatprep.subr.bf16.mxu0 %v2732
    %3423 = vmatpush1.bf16.msra.mxu0 %v2731
    %3424 = vmatprep.subr.bf16.mxu0 %v2740
    %3425 = vmatpush1.bf16.msra.mxu0 %v2739
    %3426 = vmatprep.subr.bf16.mxu0 %v2748
    %3427 = vmatpush1.bf16.msra.mxu0 %v2747
    %3428 = vmatprep.mubr.bf16.mxu0 %v698
    %3429 = vmatmul.mubr.bf16.gmra.mrb[0].mxu0 %v697
    %v3430 = vpop.f32.mrb[0].mxu0
    %v3431 = vadd.f32 %v3388, %v3430
    %v3432 = vpop.f32.mrb[0].mxu0
    %v3433 = vadd.f32 %v3390, %v3432
    %v3434 = vpop.f32.mrb[0].mxu0
    %v3435 = vadd.f32 %v3392, %v3434
    %v3436 = vpop.f32.mrb[0].mxu0
    %v3437 = vadd.f32 %v3394, %v3436
    %3438 = vdwg.mxu0
    %3439 = vmatprep.subr.bf16.mxu0 %v2246
    %3440 = vmatpush1.bf16.msra.mxu0 %v2245
    %3441 = vmatprep.subr.bf16.mxu0 %v2254
    %3442 = vmatpush1.bf16.msra.mxu0 %v2253
    %3443 = vmatprep.subr.bf16.mxu0 %v2262
    %3444 = vmatpush1.bf16.msra.mxu0 %v2261
    %3445 = vmatprep.subr.bf16.mxu0 %v2270
    %3446 = vmatpush1.bf16.msra.mxu0 %v2269
    %3447 = vmatprep.subr.bf16.mxu0 %v2278
    %3448 = vmatpush1.bf16.msra.mxu0 %v2277
    %3449 = vmatprep.subr.bf16.mxu0 %v2286
    %3450 = vmatpush1.bf16.msra.mxu0 %v2285
    %3451 = vmatprep.subr.bf16.mxu0 %v2294
    %3452 = vmatpush1.bf16.msra.mxu0 %v2293
    %3453 = vmatprep.subr.bf16.mxu0 %v2302
    %3454 = vmatpush1.bf16.msra.mxu0 %v2301
    %3455 = vmatprep.subr.bf16.mxu0 %v2310
    %3456 = vmatpush1.bf16.msra.mxu0 %v2309
    %3457 = vmatprep.subr.bf16.mxu0 %v2318
    %3458 = vmatpush1.bf16.msra.mxu0 %v2317
    %3459 = vmatprep.subr.bf16.mxu0 %v2326
    %3460 = vmatpush1.bf16.msra.mxu0 %v2325
    %3461 = vmatprep.subr.bf16.mxu0 %v2334
    %3462 = vmatpush1.bf16.msra.mxu0 %v2333
    %3463 = vmatprep.subr.bf16.mxu0 %v2342
    %3464 = vmatpush1.bf16.msra.mxu0 %v2341
    %3465 = vmatprep.subr.bf16.mxu0 %v2350
    %3466 = vmatpush1.bf16.msra.mxu0 %v2349
    %3467 = vmatprep.subr.bf16.mxu0 %v2358
    %3468 = vmatpush1.bf16.msra.mxu0 %v2357
    %3469 = vmatprep.subr.bf16.mxu0 %v2366
    %3470 = vmatpush1.bf16.msra.mxu0 %v2365
    %3471 = vmatprep.mubr.bf16.mxu0 %v692
    %3472 = vmatmul.mubr.bf16.gmra.mrb[0].mxu0 %v691
    %v3473 = vpop.f32.mrb[0].mxu0
    %v3474 = vadd.f32 %v638, %v3473
    %v3475 = vpop.f32.mrb[0].mxu0
    %v3476 = vadd.f32 %v642, %v3475
    %v3477 = vpop.f32.mrb[0].mxu0
    %v3478 = vadd.f32 %v638, %v3477
    %v3479 = vpop.f32.mrb[0].mxu0
    %v3480 = vadd.f32 %v642, %v3479
    %3481 = vdwg.mxu0
    %3482 = vmatprep.subr.bf16.mxu0 %v2374
    %3483 = vmatpush1.bf16.msra.mxu0 %v2373
    %3484 = vmatprep.subr.bf16.mxu0 %v2382
    %3485 = vmatpush1.bf16.msra.mxu0 %v2381
    %3486 = vmatprep.subr.bf16.mxu0 %v2390
    %3487 = vmatpush1.bf16.msra.mxu0 %v2389
    %3488 = vmatprep.subr.bf16.mxu0 %v2398
    %3489 = vmatpush1.bf16.msra.mxu0 %v2397
    %3490 = vmatprep.subr.bf16.mxu0 %v2406
    %3491 = vmatpush1.bf16.msra.mxu0 %v2405
    %3492 = vmatprep.subr.bf16.mxu0 %v2414
    %3493 = vmatpush1.bf16.msra.mxu0 %v2413
    %3494 = vmatprep.subr.bf16.mxu0 %v2422
    %3495 = vmatpush1.bf16.msra.mxu0 %v2421
    %3496 = vmatprep.subr.bf16.mxu0 %v2430
    %3497 = vmatpush1.bf16.msra.mxu0 %v2429
    %3498 = vmatprep.subr.bf16.mxu0 %v2438
    %3499 = vmatpush1.bf16.msra.mxu0 %v2437
    %3500 = vmatprep.subr.bf16.mxu0 %v2446
    %3501 = vmatpush1.bf16.msra.mxu0 %v2445
    %3502 = vmatprep.subr.bf16.mxu0 %v2454
    %3503 = vmatpush1.bf16.msra.mxu0 %v2453
    %3504 = vmatprep.subr.bf16.mxu0 %v2462
    %3505 = vmatpush1.bf16.msra.mxu0 %v2461
    %3506 = vmatprep.subr.bf16.mxu0 %v2470
    %3507 = vmatpush1.bf16.msra.mxu0 %v2469
    %3508 = vmatprep.subr.bf16.mxu0 %v2478
    %3509 = vmatpush1.bf16.msra.mxu0 %v2477
    %3510 = vmatprep.subr.bf16.mxu0 %v2486
    %3511 = vmatpush1.bf16.msra.mxu0 %v2485
    %3512 = vmatprep.subr.bf16.mxu0 %v2494
    %3513 = vmatpush1.bf16.msra.mxu0 %v2493
    %3514 = vmatprep.mubr.bf16.mxu0 %v694
    %3515 = vmatmul.mubr.bf16.gmra.mrb[0].mxu0 %v693
    %v3516 = vpop.f32.mrb[0].mxu0
    %v3517 = vadd.f32 %v3474, %v3516
    %v3518 = vpop.f32.mrb[0].mxu0
    %v3519 = vadd.f32 %v3476, %v3518
    %v3520 = vpop.f32.mrb[0].mxu0
    %v3521 = vadd.f32 %v3478, %v3520
    %v3522 = vpop.f32.mrb[0].mxu0
    %v3523 = vadd.f32 %v3480, %v3522
    %3524 = vdwg.mxu0
    %3525 = vmatprep.subr.bf16.mxu0 %v2502
    %3526 = vmatpush1.bf16.msra.mxu0 %v2501
    %3527 = vmatprep.subr.bf16.mxu0 %v2510
    %3528 = vmatpush1.bf16.msra.mxu0 %v2509
    %3529 = vmatprep.subr.bf16.mxu0 %v2518
    %3530 = vmatpush1.bf16.msra.mxu0 %v2517
    %3531 = vmatprep.subr.bf16.mxu0 %v2526
    %3532 = vmatpush1.bf16.msra.mxu0 %v2525
    %3533 = vmatprep.subr.bf16.mxu0 %v2534
    %3534 = vmatpush1.bf16.msra.mxu0 %v2533
    %3535 = vmatprep.subr.bf16.mxu0 %v2542
    %3536 = vmatpush1.bf16.msra.mxu0 %v2541
    %3537 = vmatprep.subr.bf16.mxu0 %v2550
    %3538 = vmatpush1.bf16.msra.mxu0 %v2549
    %3539 = vmatprep.subr.bf16.mxu0 %v2558
    %3540 = vmatpush1.bf16.msra.mxu0 %v2557
    %3541 = vmatprep.subr.bf16.mxu0 %v2566
    %3542 = vmatpush1.bf16.msra.mxu0 %v2565
    %3543 = vmatprep.subr.bf16.mxu0 %v2574
    %3544 = vmatpush1.bf16.msra.mxu0 %v2573
    %3545 = vmatprep.subr.bf16.mxu0 %v2582
    %3546 = vmatpush1.bf16.msra.mxu0 %v2581
    %3547 = vmatprep.subr.bf16.mxu0 %v2590
    %3548 = vmatpush1.bf16.msra.mxu0 %v2589
    %3549 = vmatprep.subr.bf16.mxu0 %v2598
    %3550 = vmatpush1.bf16.msra.mxu0 %v2597
    %3551 = vmatprep.subr.bf16.mxu0 %v2606
    %3552 = vmatpush1.bf16.msra.mxu0 %v2605
    %3553 = vmatprep.subr.bf16.mxu0 %v2614
    %3554 = vmatpush1.bf16.msra.mxu0 %v2613
    %3555 = vmatprep.subr.bf16.mxu0 %v2622
    %3556 = vmatpush1.bf16.msra.mxu0 %v2621
    %3557 = vmatprep.mubr.bf16.mxu0 %v696
    %3558 = vmatmul.mubr.bf16.gmra.mrb[0].mxu0 %v695
    %v3559 = vpop.f32.mrb[0].mxu0
    %v3560 = vadd.f32 %v3517, %v3559
    %v3561 = vpop.f32.mrb[0].mxu0
    %v3562 = vadd.f32 %v3519, %v3561
    %v3563 = vpop.f32.mrb[0].mxu0
    %v3564 = vadd.f32 %v3521, %v3563
    %v3565 = vpop.f32.mrb[0].mxu0
    %v3566 = vadd.f32 %v3523, %v3565
    %3567 = vdwg.mxu0
    %3568 = vmatprep.subr.bf16.mxu0 %v2630
    %3569 = vmatpush1.bf16.msra.mxu0 %v2629
    %3570 = vmatprep.subr.bf16.mxu0 %v2638
    %3571 = vmatpush1.bf16.msra.mxu0 %v2637
    %3572 = vmatprep.subr.bf16.mxu0 %v2646
    %3573 = vmatpush1.bf16.msra.mxu0 %v2645
    %3574 = vmatprep.subr.bf16.mxu0 %v2654
    %3575 = vmatpush1.bf16.msra.mxu0 %v2653
    %3576 = vmatprep.subr.bf16.mxu0 %v2662
    %3577 = vmatpush1.bf16.msra.mxu0 %v2661
    %3578 = vmatprep.subr.bf16.mxu0 %v2670
    %3579 = vmatpush1.bf16.msra.mxu0 %v2669
    %3580 = vmatprep.subr.bf16.mxu0 %v2678
    %3581 = vmatpush1.bf16.msra.mxu0 %v2677
    %3582 = vmatprep.subr.bf16.mxu0 %v2686
    %3583 = vmatpush1.bf16.msra.mxu0 %v2685
    %3584 = vmatprep.subr.bf16.mxu0 %v2694
    %3585 = vmatpush1.bf16.msra.mxu0 %v2693
    %3586 = vmatprep.subr.bf16.mxu0 %v2702
    %3587 = vmatpush1.bf16.msra.mxu0 %v2701
    %3588 = vmatprep.subr.bf16.mxu0 %v2710
    %3589 = vmatpush1.bf16.msra.mxu0 %v2709
    %3590 = vmatprep.subr.bf16.mxu0 %v2718
    %3591 = vmatpush1.bf16.msra.mxu0 %v2717
    %3592 = vmatprep.subr.bf16.mxu0 %v2726
    %3593 = vmatpush1.bf16.msra.mxu0 %v2725
    %3594 = vmatprep.subr.bf16.mxu0 %v2734
    %3595 = vmatpush1.bf16.msra.mxu0 %v2733
    %3596 = vmatprep.subr.bf16.mxu0 %v2742
    %3597 = vmatpush1.bf16.msra.mxu0 %v2741
    %3598 = vmatprep.subr.bf16.mxu0 %v2750
    %3599 = vmatpush1.bf16.msra.mxu0 %v2749
    %3600 = vmatprep.mubr.bf16.mxu0 %v698
    %3601 = vmatmul.mubr.bf16.gmra.mrb[0].mxu0 %v697
    %v3602 = vpop.f32.mrb[0].mxu0
    %v3603 = vadd.f32 %v3560, %v3602
    %v3604 = vpop.f32.mrb[0].mxu0
    %v3605 = vadd.f32 %v3562, %v3604
    %v3606 = vpop.f32.mrb[0].mxu0
    %v3607 = vadd.f32 %v3564, %v3606
    %v3608 = vpop.f32.mrb[0].mxu0
    %v3609 = vadd.f32 %v3566, %v3608
    %3610 = vdwg.mxu0
    %3611 = vmatprep.subr.bf16.mxu0 %v2248
    %3612 = vmatpush1.bf16.msra.mxu0 %v2247
    %3613 = vmatprep.subr.bf16.mxu0 %v2256
    %3614 = vmatpush1.bf16.msra.mxu0 %v2255
    %3615 = vmatprep.subr.bf16.mxu0 %v2264
    %3616 = vmatpush1.bf16.msra.mxu0 %v2263
    %3617 = vmatprep.subr.bf16.mxu0 %v2272
    %3618 = vmatpush1.bf16.msra.mxu0 %v2271
    %3619 = vmatprep.subr.bf16.mxu0 %v2280
    %3620 = vmatpush1.bf16.msra.mxu0 %v2279
    %3621 = vmatprep.subr.bf16.mxu0 %v2288
    %3622 = vmatpush1.bf16.msra.mxu0 %v2287
    %3623 = vmatprep.subr.bf16.mxu0 %v2296
    %3624 = vmatpush1.bf16.msra.mxu0 %v2295
    %3625 = vmatprep.subr.bf16.mxu0 %v2304
    %3626 = vmatpush1.bf16.msra.mxu0 %v2303
    %3627 = vmatprep.subr.bf16.mxu0 %v2312
    %3628 = vmatpush1.bf16.msra.mxu0 %v2311
    %3629 = vmatprep.subr.bf16.mxu0 %v2320
    %3630 = vmatpush1.bf16.msra.mxu0 %v2319
    %3631 = vmatprep.subr.bf16.mxu0 %v2328
    %3632 = vmatpush1.bf16.msra.mxu0 %v2327
    %3633 = vmatprep.subr.bf16.mxu0 %v2336
    %3634 = vmatpush1.bf16.msra.mxu0 %v2335
    %3635 = vmatprep.subr.bf16.mxu0 %v2344
    %3636 = vmatpush1.bf16.msra.mxu0 %v2343
    %3637 = vmatprep.subr.bf16.mxu0 %v2352
    %3638 = vmatpush1.bf16.msra.mxu0 %v2351
    %3639 = vmatprep.subr.bf16.mxu0 %v2360
    %3640 = vmatpush1.bf16.msra.mxu0 %v2359
    %3641 = vmatprep.subr.bf16.mxu0 %v2368
    %3642 = vmatpush1.bf16.msra.mxu0 %v2367
    %3643 = vmatprep.mubr.bf16.mxu0 %v692
    %3644 = vmatmul.mubr.bf16.gmra.mrb[0].mxu0 %v691
    %v3645 = vpop.f32.mrb[0].mxu0
    %v3646 = vadd.f32 %v646, %v3645
    %v3647 = vpop.f32.mrb[0].mxu0
    %v3648 = vadd.f32 %v650, %v3647
    %v3649 = vpop.f32.mrb[0].mxu0
    %v3650 = vadd.f32 %v646, %v3649
    %v3651 = vpop.f32.mrb[0].mxu0
    %v3652 = vadd.f32 %v650, %v3651
    %3653 = vdwg.mxu0
    %3654 = vmatprep.subr.bf16.mxu0 %v2376
    %3655 = vmatpush1.bf16.msra.mxu0 %v2375
    %3656 = vmatprep.subr.bf16.mxu0 %v2384
    %3657 = vmatpush1.bf16.msra.mxu0 %v2383
    %3658 = vmatprep.subr.bf16.mxu0 %v2392
    %3659 = vmatpush1.bf16.msra.mxu0 %v2391
    %3660 = vmatprep.subr.bf16.mxu0 %v2400
    %3661 = vmatpush1.bf16.msra.mxu0 %v2399
    %3662 = vmatprep.subr.bf16.mxu0 %v2408
    %3663 = vmatpush1.bf16.msra.mxu0 %v2407
    %3664 = vmatprep.subr.bf16.mxu0 %v2416
    %3665 = vmatpush1.bf16.msra.mxu0 %v2415
    %3666 = vmatprep.subr.bf16.mxu0 %v2424
    %3667 = vmatpush1.bf16.msra.mxu0 %v2423
    %3668 = vmatprep.subr.bf16.mxu0 %v2432
    %3669 = vmatpush1.bf16.msra.mxu0 %v2431
    %3670 = vmatprep.subr.bf16.mxu0 %v2440
    %3671 = vmatpush1.bf16.msra.mxu0 %v2439
    %3672 = vmatprep.subr.bf16.mxu0 %v2448
    %3673 = vmatpush1.bf16.msra.mxu0 %v2447
    %3674 = vmatprep.subr.bf16.mxu0 %v2456
    %3675 = vmatpush1.bf16.msra.mxu0 %v2455
    %3676 = vmatprep.subr.bf16.mxu0 %v2464
    %3677 = vmatpush1.bf16.msra.mxu0 %v2463
    %3678 = vmatprep.subr.bf16.mxu0 %v2472
    %3679 = vmatpush1.bf16.msra.mxu0 %v2471
    %3680 = vmatprep.subr.bf16.mxu0 %v2480
    %3681 = vmatpush1.bf16.msra.mxu0 %v2479
    %3682 = vmatprep.subr.bf16.mxu0 %v2488
    %3683 = vmatpush1.bf16.msra.mxu0 %v2487
    %3684 = vmatprep.subr.bf16.mxu0 %v2496
    %3685 = vmatpush1.bf16.msra.mxu0 %v2495
    %3686 = vmatprep.mubr.bf16.mxu0 %v694
    %3687 = vmatmul.mubr.bf16.gmra.mrb[0].mxu0 %v693
    %v3688 = vpop.f32.mrb[0].mxu0
    %v3689 = vadd.f32 %v3646, %v3688
    %v3690 = vpop.f32.mrb[0].mxu0
    %v3691 = vadd.f32 %v3648, %v3690
    %v3692 = vpop.f32.mrb[0].mxu0
    %v3693 = vadd.f32 %v3650, %v3692
    %v3694 = vpop.f32.mrb[0].mxu0
    %v3695 = vadd.f32 %v3652, %v3694
    %3696 = vdwg.mxu0
    %3697 = vmatprep.subr.bf16.mxu0 %v2504
    %3698 = vmatpush1.bf16.msra.mxu0 %v2503
    %3699 = vmatprep.subr.bf16.mxu0 %v2512
    %3700 = vmatpush1.bf16.msra.mxu0 %v2511
    %3701 = vmatprep.subr.bf16.mxu0 %v2520
    %3702 = vmatpush1.bf16.msra.mxu0 %v2519
    %3703 = vmatprep.subr.bf16.mxu0 %v2528
    %3704 = vmatpush1.bf16.msra.mxu0 %v2527
    %3705 = vmatprep.subr.bf16.mxu0 %v2536
    %3706 = vmatpush1.bf16.msra.mxu0 %v2535
    %3707 = vmatprep.subr.bf16.mxu0 %v2544
    %3708 = vmatpush1.bf16.msra.mxu0 %v2543
    %3709 = vmatprep.subr.bf16.mxu0 %v2552
    %3710 = vmatpush1.bf16.msra.mxu0 %v2551
    %3711 = vmatprep.subr.bf16.mxu0 %v2560
    %3712 = vmatpush1.bf16.msra.mxu0 %v2559
    %3713 = vmatprep.subr.bf16.mxu0 %v2568
    %3714 = vmatpush1.bf16.msra.mxu0 %v2567
    %3715 = vmatprep.subr.bf16.mxu0 %v2576
    %3716 = vmatpush1.bf16.msra.mxu0 %v2575
    %3717 = vmatprep.subr.bf16.mxu0 %v2584
    %3718 = vmatpush1.bf16.msra.mxu0 %v2583
    %3719 = vmatprep.subr.bf16.mxu0 %v2592
    %3720 = vmatpush1.bf16.msra.mxu0 %v2591
    %3721 = vmatprep.subr.bf16.mxu0 %v2600
    %3722 = vmatpush1.bf16.msra.mxu0 %v2599
    %3723 = vmatprep.subr.bf16.mxu0 %v2608
    %3724 = vmatpush1.bf16.msra.mxu0 %v2607
    %3725 = vmatprep.subr.bf16.mxu0 %v2616
    %3726 = vmatpush1.bf16.msra.mxu0 %v2615
    %3727 = vmatprep.subr.bf16.mxu0 %v2624
    %3728 = vmatpush1.bf16.msra.mxu0 %v2623
    %3729 = vmatprep.mubr.bf16.mxu0 %v696
    %3730 = vmatmul.mubr.bf16.gmra.mrb[0].mxu0 %v695
    %v3731 = vpop.f32.mrb[0].mxu0
    %v3732 = vadd.f32 %v3689, %v3731
    %v3733 = vpop.f32.mrb[0].mxu0
    %v3734 = vadd.f32 %v3691, %v3733
    %v3735 = vpop.f32.mrb[0].mxu0
    %v3736 = vadd.f32 %v3693, %v3735
    %v3737 = vpop.f32.mrb[0].mxu0
    %v3738 = vadd.f32 %v3695, %v3737
    %3739 = vdwg.mxu0
    %3740 = vmatprep.subr.bf16.mxu0 %v2632
    %3741 = vmatpush1.bf16.msra.mxu0 %v2631
    %3742 = vmatprep.subr.bf16.mxu0 %v2640
    %3743 = vmatpush1.bf16.msra.mxu0 %v2639
    %3744 = vmatprep.subr.bf16.mxu0 %v2648
    %3745 = vmatpush1.bf16.msra.mxu0 %v2647
    %3746 = vmatprep.subr.bf16.mxu0 %v2656
    %3747 = vmatpush1.bf16.msra.mxu0 %v2655
    %3748 = vmatprep.subr.bf16.mxu0 %v2664
    %3749 = vmatpush1.bf16.msra.mxu0 %v2663
    %3750 = vmatprep.subr.bf16.mxu0 %v2672
    %3751 = vmatpush1.bf16.msra.mxu0 %v2671
    %3752 = vmatprep.subr.bf16.mxu0 %v2680
    %3753 = vmatpush1.bf16.msra.mxu0 %v2679
    %3754 = vmatprep.subr.bf16.mxu0 %v2688
    %3755 = vmatpush1.bf16.msra.mxu0 %v2687
    %3756 = vmatprep.subr.bf16.mxu0 %v2696
    %3757 = vmatpush1.bf16.msra.mxu0 %v2695
    %3758 = vmatprep.subr.bf16.mxu0 %v2704
    %3759 = vmatpush1.bf16.msra.mxu0 %v2703
    %3760 = vmatprep.subr.bf16.mxu0 %v2712
    %3761 = vmatpush1.bf16.msra.mxu0 %v2711
    %3762 = vmatprep.subr.bf16.mxu0 %v2720
    %3763 = vmatpush1.bf16.msra.mxu0 %v2719
    %3764 = vmatprep.subr.bf16.mxu0 %v2728
    %3765 = vmatpush1.bf16.msra.mxu0 %v2727
    %3766 = vmatprep.subr.bf16.mxu0 %v2736
    %3767 = vmatpush1.bf16.msra.mxu0 %v2735
    %3768 = vmatprep.subr.bf16.mxu0 %v2744
    %3769 = vmatpush1.bf16.msra.mxu0 %v2743
    %3770 = vmatprep.subr.bf16.mxu0 %v2752
    %3771 = vmatpush1.bf16.msra.mxu0 %v2751
    %3772 = vmatprep.mubr.bf16.mxu0 %v698
    %3773 = vmatmul.mubr.bf16.gmra.mrb[0].mxu0 %v697
    %v3774 = vpop.f32.mrb[0].mxu0
    %v3775 = vadd.f32 %v3732, %v3774
    %v3776 = vpop.f32.mrb[0].mxu0
    %v3777 = vadd.f32 %v3734, %v3776
    %v3778 = vpop.f32.mrb[0].mxu0
    %v3779 = vadd.f32 %v3736, %v3778
    %v3780 = vpop.f32.mrb[0].mxu0
    %v3781 = vadd.f32 %v3738, %v3780
    %3782 = vdwg.mxu0
    %3783 = vmatprep.subr.bf16.mxu0 %v2250
    %3784 = vmatpush1.bf16.msra.mxu0 %v2249
    %3785 = vmatprep.subr.bf16.mxu0 %v2258
    %3786 = vmatpush1.bf16.msra.mxu0 %v2257
    %3787 = vmatprep.subr.bf16.mxu0 %v2266
    %3788 = vmatpush1.bf16.msra.mxu0 %v2265
    %3789 = vmatprep.subr.bf16.mxu0 %v2274
    %3790 = vmatpush1.bf16.msra.mxu0 %v2273
    %3791 = vmatprep.subr.bf16.mxu0 %v2282
    %3792 = vmatpush1.bf16.msra.mxu0 %v2281
    %3793 = vmatprep.subr.bf16.mxu0 %v2290
    %3794 = vmatpush1.bf16.msra.mxu0 %v2289
    %3795 = vmatprep.subr.bf16.mxu0 %v2298
    %3796 = vmatpush1.bf16.msra.mxu0 %v2297
    %3797 = vmatprep.subr.bf16.mxu0 %v2306
    %3798 = vmatpush1.bf16.msra.mxu0 %v2305
    %3799 = vmatprep.subr.bf16.mxu0 %v2314
    %3800 = vmatpush1.bf16.msra.mxu0 %v2313
    %3801 = vmatprep.subr.bf16.mxu0 %v2322
    %3802 = vmatpush1.bf16.msra.mxu0 %v2321
    %3803 = vmatprep.subr.bf16.mxu0 %v2330
    %3804 = vmatpush1.bf16.msra.mxu0 %v2329
    %3805 = vmatprep.subr.bf16.mxu0 %v2338
    %3806 = vmatpush1.bf16.msra.mxu0 %v2337
    %3807 = vmatprep.subr.bf16.mxu0 %v2346
    %3808 = vmatpush1.bf16.msra.mxu0 %v2345
    %3809 = vmatprep.subr.bf16.mxu0 %v2354
    %3810 = vmatpush1.bf16.msra.mxu0 %v2353
    %3811 = vmatprep.subr.bf16.mxu0 %v2362
    %3812 = vmatpush1.bf16.msra.mxu0 %v2361
    %3813 = vmatprep.subr.bf16.mxu0 %v2370
    %3814 = vmatpush1.bf16.msra.mxu0 %v2369
    %3815 = vmatprep.mubr.bf16.mxu0 %v692
    %3816 = vmatmul.mubr.bf16.gmra.mrb[0].mxu0 %v691
    %v3817 = vpop.f32.mrb[0].mxu0
    %v3818 = vadd.f32 %v654, %v3817
    %v3819 = vpop.f32.mrb[0].mxu0
    %v3820 = vadd.f32 %v658, %v3819
    %v3821 = vpop.f32.mrb[0].mxu0
    %v3822 = vadd.f32 %v654, %v3821
    %v3823 = vpop.f32.mrb[0].mxu0
    %v3824 = vadd.f32 %v658, %v3823
    %3825 = vdwg.mxu0
    %3826 = vmatprep.subr.bf16.mxu0 %v2378
    %3827 = vmatpush1.bf16.msra.mxu0 %v2377
    %3828 = vmatprep.subr.bf16.mxu0 %v2386
    %3829 = vmatpush1.bf16.msra.mxu0 %v2385
    %3830 = vmatprep.subr.bf16.mxu0 %v2394
    %3831 = vmatpush1.bf16.msra.mxu0 %v2393
    %3832 = vmatprep.subr.bf16.mxu0 %v2402
    %3833 = vmatpush1.bf16.msra.mxu0 %v2401
    %3834 = vmatprep.subr.bf16.mxu0 %v2410
    %3835 = vmatpush1.bf16.msra.mxu0 %v2409
    %3836 = vmatprep.subr.bf16.mxu0 %v2418
    %3837 = vmatpush1.bf16.msra.mxu0 %v2417
    %3838 = vmatprep.subr.bf16.mxu0 %v2426
    %3839 = vmatpush1.bf16.msra.mxu0 %v2425
    %3840 = vmatprep.subr.bf16.mxu0 %v2434
    %3841 = vmatpush1.bf16.msra.mxu0 %v2433
    %3842 = vmatprep.subr.bf16.mxu0 %v2442
    %3843 = vmatpush1.bf16.msra.mxu0 %v2441
    %3844 = vmatprep.subr.bf16.mxu0 %v2450
    %3845 = vmatpush1.bf16.msra.mxu0 %v2449
    %3846 = vmatprep.subr.bf16.mxu0 %v2458
    %3847 = vmatpush1.bf16.msra.mxu0 %v2457
    %3848 = vmatprep.subr.bf16.mxu0 %v2466
    %3849 = vmatpush1.bf16.msra.mxu0 %v2465
    %3850 = vmatprep.subr.bf16.mxu0 %v2474
    %3851 = vmatpush1.bf16.msra.mxu0 %v2473
    %3852 = vmatprep.subr.bf16.mxu0 %v2482
    %3853 = vmatpush1.bf16.msra.mxu0 %v2481
    %3854 = vmatprep.subr.bf16.mxu0 %v2490
    %3855 = vmatpush1.bf16.msra.mxu0 %v2489
    %3856 = vmatprep.subr.bf16.mxu0 %v2498
    %3857 = vmatpush1.bf16.msra.mxu0 %v2497
    %3858 = vmatprep.mubr.bf16.mxu0 %v694
    %3859 = vmatmul.mubr.bf16.gmra.mrb[0].mxu0 %v693
    %v3860 = vpop.f32.mrb[0].mxu0
    %v3861 = vadd.f32 %v3818, %v3860
    %v3862 = vpop.f32.mrb[0].mxu0
    %v3863 = vadd.f32 %v3820, %v3862
    %v3864 = vpop.f32.mrb[0].mxu0
    %v3865 = vadd.f32 %v3822, %v3864
    %v3866 = vpop.f32.mrb[0].mxu0
    %v3867 = vadd.f32 %v3824, %v3866
    %3868 = vdwg.mxu0
    %3869 = vmatprep.subr.bf16.mxu0 %v2506
    %3870 = vmatpush1.bf16.msra.mxu0 %v2505
    %3871 = vmatprep.subr.bf16.mxu0 %v2514
    %3872 = vmatpush1.bf16.msra.mxu0 %v2513
    %3873 = vmatprep.subr.bf16.mxu0 %v2522
    %3874 = vmatpush1.bf16.msra.mxu0 %v2521
    %3875 = vmatprep.subr.bf16.mxu0 %v2530
    %3876 = vmatpush1.bf16.msra.mxu0 %v2529
    %3877 = vmatprep.subr.bf16.mxu0 %v2538
    %3878 = vmatpush1.bf16.msra.mxu0 %v2537
    %3879 = vmatprep.subr.bf16.mxu0 %v2546
    %3880 = vmatpush1.bf16.msra.mxu0 %v2545
    %3881 = vmatprep.subr.bf16.mxu0 %v2554
    %3882 = vmatpush1.bf16.msra.mxu0 %v2553
    %3883 = vmatprep.subr.bf16.mxu0 %v2562
    %3884 = vmatpush1.bf16.msra.mxu0 %v2561
    %3885 = vmatprep.subr.bf16.mxu0 %v2570
    %3886 = vmatpush1.bf16.msra.mxu0 %v2569
    %3887 = vmatprep.subr.bf16.mxu0 %v2578
    %3888 = vmatpush1.bf16.msra.mxu0 %v2577
    %3889 = vmatprep.subr.bf16.mxu0 %v2586
    %3890 = vmatpush1.bf16.msra.mxu0 %v2585
    %3891 = vmatprep.subr.bf16.mxu0 %v2594
    %3892 = vmatpush1.bf16.msra.mxu0 %v2593
    %3893 = vmatprep.subr.bf16.mxu0 %v2602
    %3894 = vmatpush1.bf16.msra.mxu0 %v2601
    %3895 = vmatprep.subr.bf16.mxu0 %v2610
    %3896 = vmatpush1.bf16.msra.mxu0 %v2609
    %3897 = vmatprep.subr.bf16.mxu0 %v2618
    %3898 = vmatpush1.bf16.msra.mxu0 %v2617
    %3899 = vmatprep.subr.bf16.mxu0 %v2626
    %3900 = vmatpush1.bf16.msra.mxu0 %v2625
    %3901 = vmatprep.mubr.bf16.mxu0 %v696
    %3902 = vmatmul.mubr.bf16.gmra.mrb[0].mxu0 %v695
    %v3903 = vpop.f32.mrb[0].mxu0
    %v3904 = vadd.f32 %v3861, %v3903
    %v3905 = vpop.f32.mrb[0].mxu0
    %v3906 = vadd.f32 %v3863, %v3905
    %v3907 = vpop.f32.mrb[0].mxu0
    %v3908 = vadd.f32 %v3865, %v3907
    %v3909 = vpop.f32.mrb[0].mxu0
    %v3910 = vadd.f32 %v3867, %v3909
    %3911 = vdwg.mxu0
    %3912 = vmatprep.subr.bf16.mxu0 %v2634
    %3913 = vmatpush1.bf16.msra.mxu0 %v2633
    %3914 = vmatprep.subr.bf16.mxu0 %v2642
    %3915 = vmatpush1.bf16.msra.mxu0 %v2641
    %3916 = vmatprep.subr.bf16.mxu0 %v2650
    %3917 = vmatpush1.bf16.msra.mxu0 %v2649
    %3918 = vmatprep.subr.bf16.mxu0 %v2658
    %3919 = vmatpush1.bf16.msra.mxu0 %v2657
    %3920 = vmatprep.subr.bf16.mxu0 %v2666
    %3921 = vmatpush1.bf16.msra.mxu0 %v2665
    %3922 = vmatprep.subr.bf16.mxu0 %v2674
    %3923 = vmatpush1.bf16.msra.mxu0 %v2673
    %3924 = vmatprep.subr.bf16.mxu0 %v2682
    %3925 = vmatpush1.bf16.msra.mxu0 %v2681
    %3926 = vmatprep.subr.bf16.mxu0 %v2690
    %3927 = vmatpush1.bf16.msra.mxu0 %v2689
    %3928 = vmatprep.subr.bf16.mxu0 %v2698
    %3929 = vmatpush1.bf16.msra.mxu0 %v2697
    %3930 = vmatprep.subr.bf16.mxu0 %v2706
    %3931 = vmatpush1.bf16.msra.mxu0 %v2705
    %3932 = vmatprep.subr.bf16.mxu0 %v2714
    %3933 = vmatpush1.bf16.msra.mxu0 %v2713
    %3934 = vmatprep.subr.bf16.mxu0 %v2722
    %3935 = vmatpush1.bf16.msra.mxu0 %v2721
    %3936 = vmatprep.subr.bf16.mxu0 %v2730
    %3937 = vmatpush1.bf16.msra.mxu0 %v2729
    %3938 = vmatprep.subr.bf16.mxu0 %v2738
    %3939 = vmatpush1.bf16.msra.mxu0 %v2737
    %3940 = vmatprep.subr.bf16.mxu0 %v2746
    %3941 = vmatpush1.bf16.msra.mxu0 %v2745
    %3942 = vmatprep.subr.bf16.mxu0 %v2754
    %3943 = vmatpush1.bf16.msra.mxu0 %v2753
    %3944 = vmatprep.mubr.bf16.mxu0 %v698
    %3945 = vmatmul.mubr.bf16.gmra.mrb[0].mxu0 %v697
    %v3946 = vpop.f32.mrb[0].mxu0
    %v3947 = vadd.f32 %v3904, %v3946
    %v3948 = vpop.f32.mrb[0].mxu0
    %v3949 = vadd.f32 %v3906, %v3948
    %v3950 = vpop.f32.mrb[0].mxu0
    %v3951 = vadd.f32 %v3908, %v3950
    %v3952 = vpop.f32.mrb[0].mxu0
    %v3953 = vadd.f32 %v3910, %v3952
    %3954 = vdwg.mxu0
    %v3955 = vmax.f32 %v3431, 0.0
    %v3956 = vmax.f32 %v3433, 0.0
    %v3957 = vmax.f32 %v3603, 0.0
    %v3958 = vmax.f32 %v3605, 0.0
    %v3959 = vmax.f32 %v3775, 0.0
    %v3960 = vmax.f32 %v3777, 0.0
    %v3961 = vmax.f32 %v3947, 0.0
    %v3962 = vmax.f32 %v3949, 0.0
    %v3963 = vmax.f32 %v3435, 0.0
    %v3964 = vmax.f32 %v3437, 0.0
    %v3965 = vmax.f32 %v3607, 0.0
    %v3966 = vmax.f32 %v3609, 0.0
    %v3967 = vmax.f32 %v3779, 0.0
    %v3968 = vmax.f32 %v3781, 0.0
    %v3969 = vmax.f32 %v3951, 0.0
    %v3970 = vmax.f32 %v3953, 0.0
    %v3971 = vpack.c.bf16 %v3963, %v3955
    %v3972 = vpack.c.bf16 %v3964, %v3956
    %v3973 = vpack.c.bf16 %v3965, %v3957
    %v3974 = vpack.c.bf16 %v3966, %v3958
    %v3975 = vpack.c.bf16 %v3967, %v3959
    %v3976 = vpack.c.bf16 %v3968, %v3960
    %v3977 = vpack.c.bf16 %v3969, %v3961
    %v3978 = vpack.c.bf16 %v3970, %v3962
    %v3979 = vld [vmem:[#allocation9] sm:$0xff]
    %v3980 = vld [vmem:[#allocation9 + $0x8] sm:$0xff]
    %v3981 = vld [vmem:[#allocation9 + $0x10] sm:$0xff]
    %v3982 = vld [vmem:[#allocation9 + $0x18] sm:$0xff]
    %v3983 = vld [vmem:[#allocation9 + $0x20] sm:$0xff]
    %v3984 = vld [vmem:[#allocation9 + $0x28] sm:$0xff]
    %v3985 = vld [vmem:[#allocation9 + $0x30] sm:$0xff]
    %v3986 = vld [vmem:[#allocation9 + $0x38] sm:$0xff]
    %v3987 = vld [vmem:[#allocation9 + $0x40] sm:$0xff]
    %v3988 = vld [vmem:[#allocation9 + $0x48] sm:$0xff]
    %v3989 = vld [vmem:[#allocation9 + $0x50] sm:$0xff]
    %v3990 = vld [vmem:[#allocation9 + $0x58] sm:$0xff]
    %v3991 = vld [vmem:[#allocation9 + $0x60] sm:$0xff]
    %v3992 = vld [vmem:[#allocation9 + $0x68] sm:$0xff]
    %v3993 = vld [vmem:[#allocation9 + $0x70] sm:$0xff]
    %v3994 = vld [vmem:[#allocation9 + $0x78] sm:$0xff]
    %v3995 = vld [vmem:[#allocation9 + $0x80] sm:$0xff]
    %v3996 = vld [vmem:[#allocation9 + $0x88] sm:$0xff]
    %v3997 = vld [vmem:[#allocation9 + $0x90] sm:$0xff]
    %v3998 = vld [vmem:[#allocation9 + $0x98] sm:$0xff]
    %v3999 = vld [vmem:[#allocation9 + $0xa0] sm:$0xff]
    %v4000 = vld [vmem:[#allocation9 + $0xa8] sm:$0xff]
    %v4001 = vld [vmem:[#allocation9 + $0xb0] sm:$0xff]
    %v4002 = vld [vmem:[#allocation9 + $0xb8] sm:$0xff]
    %v4003 = vld [vmem:[#allocation9 + $0xc0] sm:$0xff]
    %v4004 = vld [vmem:[#allocation9 + $0xc8] sm:$0xff]
    %v4005 = vld [vmem:[#allocation9 + $0xd0] sm:$0xff]
    %v4006 = vld [vmem:[#allocation9 + $0xd8] sm:$0xff]
    %v4007 = vld [vmem:[#allocation9 + $0xe0] sm:$0xff]
    %v4008 = vld [vmem:[#allocation9 + $0xe8] sm:$0xff]
    %v4009 = vld [vmem:[#allocation9 + $0xf0] sm:$0xff]
    %v4010 = vld [vmem:[#allocation9 + $0xf8] sm:$0xff]
    %v4011 = vld [vmem:[#allocation9 + $0x100] sm:$0xff]
    %v4012 = vld [vmem:[#allocation9 + $0x108] sm:$0xff]
    %v4013 = vld [vmem:[#allocation9 + $0x110] sm:$0xff]
    %v4014 = vld [vmem:[#allocation9 + $0x118] sm:$0xff]
    %v4015 = vld [vmem:[#allocation9 + $0x120] sm:$0xff]
    %v4016 = vld [vmem:[#allocation9 + $0x128] sm:$0xff]
    %v4017 = vld [vmem:[#allocation9 + $0x130] sm:$0xff]
    %v4018 = vld [vmem:[#allocation9 + $0x138] sm:$0xff]
    %v4019 = vld [vmem:[#allocation9 + $0x140] sm:$0xff]
    %v4020 = vld [vmem:[#allocation9 + $0x148] sm:$0xff]
    %v4021 = vld [vmem:[#allocation9 + $0x150] sm:$0xff]
    %v4022 = vld [vmem:[#allocation9 + $0x158] sm:$0xff]
    %v4023 = vld [vmem:[#allocation9 + $0x160] sm:$0xff]
    %v4024 = vld [vmem:[#allocation9 + $0x168] sm:$0xff]
    %v4025 = vld [vmem:[#allocation9 + $0x170] sm:$0xff]
    %v4026 = vld [vmem:[#allocation9 + $0x178] sm:$0xff]
    %v4027 = vld [vmem:[#allocation9 + $0x180] sm:$0xff]
    %v4028 = vld [vmem:[#allocation9 + $0x188] sm:$0xff]
    %v4029 = vld [vmem:[#allocation9 + $0x190] sm:$0xff]
    %v4030 = vld [vmem:[#allocation9 + $0x198] sm:$0xff]
    %v4031 = vld [vmem:[#allocation9 + $0x1a0] sm:$0xff]
    %v4032 = vld [vmem:[#allocation9 + $0x1a8] sm:$0xff]
    %v4033 = vld [vmem:[#allocation9 + $0x1b0] sm:$0xff]
    %v4034 = vld [vmem:[#allocation9 + $0x1b8] sm:$0xff]
    %v4035 = vld [vmem:[#allocation9 + $0x1c0] sm:$0xff]
    %v4036 = vld [vmem:[#allocation9 + $0x1c8] sm:$0xff]
    %v4037 = vld [vmem:[#allocation9 + $0x1d0] sm:$0xff]
    %v4038 = vld [vmem:[#allocation9 + $0x1d8] sm:$0xff]
    %v4039 = vld [vmem:[#allocation9 + $0x1e0] sm:$0xff]
    %v4040 = vld [vmem:[#allocation9 + $0x1e8] sm:$0xff]
    %v4041 = vld [vmem:[#allocation9 + $0x1f0] sm:$0xff]
    %v4042 = vld [vmem:[#allocation9 + $0x1f8] sm:$0xff]
    %v4043 = vld [vmem:[#allocation9 + $0x200] sm:$0xff]
    %v4044 = vld [vmem:[#allocation9 + $0x208] sm:$0xff]
    %v4045 = vld [vmem:[#allocation9 + $0x210] sm:$0xff]
    %v4046 = vld [vmem:[#allocation9 + $0x218] sm:$0xff]
    %v4047 = vld [vmem:[#allocation9 + $0x220] sm:$0xff]
    %v4048 = vld [vmem:[#allocation9 + $0x228] sm:$0xff]
    %v4049 = vld [vmem:[#allocation9 + $0x230] sm:$0xff]
    %v4050 = vld [vmem:[#allocation9 + $0x238] sm:$0xff]
    %v4051 = vld [vmem:[#allocation9 + $0x240] sm:$0xff]
    %v4052 = vld [vmem:[#allocation9 + $0x248] sm:$0xff]
    %v4053 = vld [vmem:[#allocation9 + $0x250] sm:$0xff]
    %v4054 = vld [vmem:[#allocation9 + $0x258] sm:$0xff]
    %v4055 = vld [vmem:[#allocation9 + $0x260] sm:$0xff]
    %v4056 = vld [vmem:[#allocation9 + $0x268] sm:$0xff]
    %v4057 = vld [vmem:[#allocation9 + $0x270] sm:$0xff]
    %v4058 = vld [vmem:[#allocation9 + $0x278] sm:$0xff]
    %v4059 = vld [vmem:[#allocation9 + $0x280] sm:$0xff]
    %v4060 = vld [vmem:[#allocation9 + $0x288] sm:$0xff]
    %v4061 = vld [vmem:[#allocation9 + $0x290] sm:$0xff]
    %v4062 = vld [vmem:[#allocation9 + $0x298] sm:$0xff]
    %v4063 = vld [vmem:[#allocation9 + $0x2a0] sm:$0xff]
    %v4064 = vld [vmem:[#allocation9 + $0x2a8] sm:$0xff]
    %v4065 = vld [vmem:[#allocation9 + $0x2b0] sm:$0xff]
    %v4066 = vld [vmem:[#allocation9 + $0x2b8] sm:$0xff]
    %v4067 = vld [vmem:[#allocation9 + $0x2c0] sm:$0xff]
    %v4068 = vld [vmem:[#allocation9 + $0x2c8] sm:$0xff]
    %v4069 = vld [vmem:[#allocation9 + $0x2d0] sm:$0xff]
    %v4070 = vld [vmem:[#allocation9 + $0x2d8] sm:$0xff]
    %v4071 = vld [vmem:[#allocation9 + $0x2e0] sm:$0xff]
    %v4072 = vld [vmem:[#allocation9 + $0x2e8] sm:$0xff]
    %v4073 = vld [vmem:[#allocation9 + $0x2f0] sm:$0xff]
    %v4074 = vld [vmem:[#allocation9 + $0x2f8] sm:$0xff]
    %v4075 = vld [vmem:[#allocation9 + $0x300] sm:$0xff]
    %v4076 = vld [vmem:[#allocation9 + $0x308] sm:$0xff]
    %v4077 = vld [vmem:[#allocation9 + $0x310] sm:$0xff]
    %v4078 = vld [vmem:[#allocation9 + $0x318] sm:$0xff]
    %v4079 = vld [vmem:[#allocation9 + $0x320] sm:$0xff]
    %v4080 = vld [vmem:[#allocation9 + $0x328] sm:$0xff]
    %v4081 = vld [vmem:[#allocation9 + $0x330] sm:$0xff]
    %v4082 = vld [vmem:[#allocation9 + $0x338] sm:$0xff]
    %v4083 = vld [vmem:[#allocation9 + $0x340] sm:$0xff]
    %v4084 = vld [vmem:[#allocation9 + $0x348] sm:$0xff]
    %v4085 = vld [vmem:[#allocation9 + $0x350] sm:$0xff]
    %v4086 = vld [vmem:[#allocation9 + $0x358] sm:$0xff]
    %v4087 = vld [vmem:[#allocation9 + $0x360] sm:$0xff]
    %v4088 = vld [vmem:[#allocation9 + $0x368] sm:$0xff]
    %v4089 = vld [vmem:[#allocation9 + $0x370] sm:$0xff]
    %v4090 = vld [vmem:[#allocation9 + $0x378] sm:$0xff]
    %v4091 = vld [vmem:[#allocation9 + $0x380] sm:$0xff]
    %v4092 = vld [vmem:[#allocation9 + $0x388] sm:$0xff]
    %v4093 = vld [vmem:[#allocation9 + $0x390] sm:$0xff]
    %v4094 = vld [vmem:[#allocation9 + $0x398] sm:$0xff]
    %v4095 = vld [vmem:[#allocation9 + $0x3a0] sm:$0xff]
    %v4096 = vld [vmem:[#allocation9 + $0x3a8] sm:$0xff]
    %v4097 = vld [vmem:[#allocation9 + $0x3b0] sm:$0xff]
    %v4098 = vld [vmem:[#allocation9 + $0x3b8] sm:$0xff]
    %v4099 = vld [vmem:[#allocation9 + $0x3c0] sm:$0xff]
    %v4100 = vld [vmem:[#allocation9 + $0x3c8] sm:$0xff]
    %v4101 = vld [vmem:[#allocation9 + $0x3d0] sm:$0xff]
    %v4102 = vld [vmem:[#allocation9 + $0x3d8] sm:$0xff]
    %v4103 = vld [vmem:[#allocation9 + $0x3e0] sm:$0xff]
    %v4104 = vld [vmem:[#allocation9 + $0x3e8] sm:$0xff]
    %v4105 = vld [vmem:[#allocation9 + $0x3f0] sm:$0xff]
    %v4106 = vld [vmem:[#allocation9 + $0x3f8] sm:$0xff]
    %v4107 = vld [vmem:[#allocation9 + $0x400] sm:$0xff]
    %v4108 = vld [vmem:[#allocation9 + $0x408] sm:$0xff]
    %v4109 = vld [vmem:[#allocation9 + $0x410] sm:$0xff]
    %v4110 = vld [vmem:[#allocation9 + $0x418] sm:$0xff]
    %v4111 = vld [vmem:[#allocation9 + $0x420] sm:$0xff]
    %v4112 = vld [vmem:[#allocation9 + $0x428] sm:$0xff]
    %v4113 = vld [vmem:[#allocation9 + $0x430] sm:$0xff]
    %v4114 = vld [vmem:[#allocation9 + $0x438] sm:$0xff]
    %v4115 = vld [vmem:[#allocation9 + $0x440] sm:$0xff]
    %v4116 = vld [vmem:[#allocation9 + $0x448] sm:$0xff]
    %v4117 = vld [vmem:[#allocation9 + $0x450] sm:$0xff]
    %v4118 = vld [vmem:[#allocation9 + $0x458] sm:$0xff]
    %v4119 = vld [vmem:[#allocation9 + $0x460] sm:$0xff]
    %v4120 = vld [vmem:[#allocation9 + $0x468] sm:$0xff]
    %v4121 = vld [vmem:[#allocation9 + $0x470] sm:$0xff]
    %v4122 = vld [vmem:[#allocation9 + $0x478] sm:$0xff]
    %v4123 = vld [vmem:[#allocation9 + $0x480] sm:$0xff]
    %v4124 = vld [vmem:[#allocation9 + $0x488] sm:$0xff]
    %v4125 = vld [vmem:[#allocation9 + $0x490] sm:$0xff]
    %v4126 = vld [vmem:[#allocation9 + $0x498] sm:$0xff]
    %v4127 = vld [vmem:[#allocation9 + $0x4a0] sm:$0xff]
    %v4128 = vld [vmem:[#allocation9 + $0x4a8] sm:$0xff]
    %v4129 = vld [vmem:[#allocation9 + $0x4b0] sm:$0xff]
    %v4130 = vld [vmem:[#allocation9 + $0x4b8] sm:$0xff]
    %v4131 = vld [vmem:[#allocation9 + $0x4c0] sm:$0xff]
    %v4132 = vld [vmem:[#allocation9 + $0x4c8] sm:$0xff]
    %v4133 = vld [vmem:[#allocation9 + $0x4d0] sm:$0xff]
    %v4134 = vld [vmem:[#allocation9 + $0x4d8] sm:$0xff]
    %v4135 = vld [vmem:[#allocation9 + $0x4e0] sm:$0xff]
    %v4136 = vld [vmem:[#allocation9 + $0x4e8] sm:$0xff]
    %v4137 = vld [vmem:[#allocation9 + $0x4f0] sm:$0xff]
    %v4138 = vld [vmem:[#allocation9 + $0x4f8] sm:$0xff]
    %v4139 = vld [vmem:[#allocation9 + $0x500] sm:$0xff]
    %v4140 = vld [vmem:[#allocation9 + $0x508] sm:$0xff]
    %v4141 = vld [vmem:[#allocation9 + $0x510] sm:$0xff]
    %v4142 = vld [vmem:[#allocation9 + $0x518] sm:$0xff]
    %v4143 = vld [vmem:[#allocation9 + $0x520] sm:$0xff]
    %v4144 = vld [vmem:[#allocation9 + $0x528] sm:$0xff]
    %v4145 = vld [vmem:[#allocation9 + $0x530] sm:$0xff]
    %v4146 = vld [vmem:[#allocation9 + $0x538] sm:$0xff]
    %v4147 = vld [vmem:[#allocation9 + $0x540] sm:$0xff]
    %v4148 = vld [vmem:[#allocation9 + $0x548] sm:$0xff]
    %v4149 = vld [vmem:[#allocation9 + $0x550] sm:$0xff]
    %v4150 = vld [vmem:[#allocation9 + $0x558] sm:$0xff]
    %v4151 = vld [vmem:[#allocation9 + $0x560] sm:$0xff]
    %v4152 = vld [vmem:[#allocation9 + $0x568] sm:$0xff]
    %v4153 = vld [vmem:[#allocation9 + $0x570] sm:$0xff]
    %v4154 = vld [vmem:[#allocation9 + $0x578] sm:$0xff]
    %v4155 = vld [vmem:[#allocation9 + $0x580] sm:$0xff]
    %v4156 = vld [vmem:[#allocation9 + $0x588] sm:$0xff]
    %v4157 = vld [vmem:[#allocation9 + $0x590] sm:$0xff]
    %v4158 = vld [vmem:[#allocation9 + $0x598] sm:$0xff]
    %v4159 = vld [vmem:[#allocation9 + $0x5a0] sm:$0xff]
    %v4160 = vld [vmem:[#allocation9 + $0x5a8] sm:$0xff]
    %v4161 = vld [vmem:[#allocation9 + $0x5b0] sm:$0xff]
    %v4162 = vld [vmem:[#allocation9 + $0x5b8] sm:$0xff]
    %v4163 = vld [vmem:[#allocation9 + $0x5c0] sm:$0xff]
    %v4164 = vld [vmem:[#allocation9 + $0x5c8] sm:$0xff]
    %v4165 = vld [vmem:[#allocation9 + $0x5d0] sm:$0xff]
    %v4166 = vld [vmem:[#allocation9 + $0x5d8] sm:$0xff]
    %v4167 = vld [vmem:[#allocation9 + $0x5e0] sm:$0xff]
    %v4168 = vld [vmem:[#allocation9 + $0x5e8] sm:$0xff]
    %v4169 = vld [vmem:[#allocation9 + $0x5f0] sm:$0xff]
    %v4170 = vld [vmem:[#allocation9 + $0x5f8] sm:$0xff]
    %v4171 = vld [vmem:[#allocation9 + $0x600] sm:$0xff]
    %v4172 = vld [vmem:[#allocation9 + $0x608] sm:$0xff]
    %v4173 = vld [vmem:[#allocation9 + $0x610] sm:$0xff]
    %v4174 = vld [vmem:[#allocation9 + $0x618] sm:$0xff]
    %v4175 = vld [vmem:[#allocation9 + $0x620] sm:$0xff]
    %v4176 = vld [vmem:[#allocation9 + $0x628] sm:$0xff]
    %v4177 = vld [vmem:[#allocation9 + $0x630] sm:$0xff]
    %v4178 = vld [vmem:[#allocation9 + $0x638] sm:$0xff]
    %v4179 = vld [vmem:[#allocation9 + $0x640] sm:$0xff]
    %v4180 = vld [vmem:[#allocation9 + $0x648] sm:$0xff]
    %v4181 = vld [vmem:[#allocation9 + $0x650] sm:$0xff]
    %v4182 = vld [vmem:[#allocation9 + $0x658] sm:$0xff]
    %v4183 = vld [vmem:[#allocation9 + $0x660] sm:$0xff]
    %v4184 = vld [vmem:[#allocation9 + $0x668] sm:$0xff]
    %v4185 = vld [vmem:[#allocation9 + $0x670] sm:$0xff]
    %v4186 = vld [vmem:[#allocation9 + $0x678] sm:$0xff]
    %v4187 = vld [vmem:[#allocation9 + $0x680] sm:$0xff]
    %v4188 = vld [vmem:[#allocation9 + $0x688] sm:$0xff]
    %v4189 = vld [vmem:[#allocation9 + $0x690] sm:$0xff]
    %v4190 = vld [vmem:[#allocation9 + $0x698] sm:$0xff]
    %v4191 = vld [vmem:[#allocation9 + $0x6a0] sm:$0xff]
    %v4192 = vld [vmem:[#allocation9 + $0x6a8] sm:$0xff]
    %v4193 = vld [vmem:[#allocation9 + $0x6b0] sm:$0xff]
    %v4194 = vld [vmem:[#allocation9 + $0x6b8] sm:$0xff]
    %v4195 = vld [vmem:[#allocation9 + $0x6c0] sm:$0xff]
    %v4196 = vld [vmem:[#allocation9 + $0x6c8] sm:$0xff]
    %v4197 = vld [vmem:[#allocation9 + $0x6d0] sm:$0xff]
    %v4198 = vld [vmem:[#allocation9 + $0x6d8] sm:$0xff]
    %v4199 = vld [vmem:[#allocation9 + $0x6e0] sm:$0xff]
    %v4200 = vld [vmem:[#allocation9 + $0x6e8] sm:$0xff]
    %v4201 = vld [vmem:[#allocation9 + $0x6f0] sm:$0xff]
    %v4202 = vld [vmem:[#allocation9 + $0x6f8] sm:$0xff]
    %v4203 = vld [vmem:[#allocation9 + $0x700] sm:$0xff]
    %v4204 = vld [vmem:[#allocation9 + $0x708] sm:$0xff]
    %v4205 = vld [vmem:[#allocation9 + $0x710] sm:$0xff]
    %v4206 = vld [vmem:[#allocation9 + $0x718] sm:$0xff]
    %v4207 = vld [vmem:[#allocation9 + $0x720] sm:$0xff]
    %v4208 = vld [vmem:[#allocation9 + $0x728] sm:$0xff]
    %v4209 = vld [vmem:[#allocation9 + $0x730] sm:$0xff]
    %v4210 = vld [vmem:[#allocation9 + $0x738] sm:$0xff]
    %v4211 = vld [vmem:[#allocation9 + $0x740] sm:$0xff]
    %v4212 = vld [vmem:[#allocation9 + $0x748] sm:$0xff]
    %v4213 = vld [vmem:[#allocation9 + $0x750] sm:$0xff]
    %v4214 = vld [vmem:[#allocation9 + $0x758] sm:$0xff]
    %v4215 = vld [vmem:[#allocation9 + $0x760] sm:$0xff]
    %v4216 = vld [vmem:[#allocation9 + $0x768] sm:$0xff]
    %v4217 = vld [vmem:[#allocation9 + $0x770] sm:$0xff]
    %v4218 = vld [vmem:[#allocation9 + $0x778] sm:$0xff]
    %v4219 = vld [vmem:[#allocation9 + $0x780] sm:$0xff]
    %v4220 = vld [vmem:[#allocation9 + $0x788] sm:$0xff]
    %v4221 = vld [vmem:[#allocation9 + $0x790] sm:$0xff]
    %v4222 = vld [vmem:[#allocation9 + $0x798] sm:$0xff]
    %v4223 = vld [vmem:[#allocation9 + $0x7a0] sm:$0xff]
    %v4224 = vld [vmem:[#allocation9 + $0x7a8] sm:$0xff]
    %v4225 = vld [vmem:[#allocation9 + $0x7b0] sm:$0xff]
    %v4226 = vld [vmem:[#allocation9 + $0x7b8] sm:$0xff]
    %v4227 = vld [vmem:[#allocation9 + $0x7c0] sm:$0xff]
    %v4228 = vld [vmem:[#allocation9 + $0x7c8] sm:$0xff]
    %v4229 = vld [vmem:[#allocation9 + $0x7d0] sm:$0xff]
    %v4230 = vld [vmem:[#allocation9 + $0x7d8] sm:$0xff]
    %v4231 = vld [vmem:[#allocation9 + $0x7e0] sm:$0xff]
    %v4232 = vld [vmem:[#allocation9 + $0x7e8] sm:$0xff]
    %v4233 = vld [vmem:[#allocation9 + $0x7f0] sm:$0xff]
    %v4234 = vld [vmem:[#allocation9 + $0x7f8] sm:$0xff]
    %v4235 = vld [vmem:[#allocation11] sm:$0xf]
    %v4237 = vlaneseq
    %v4238 = vshrl.u32 %v4237, 7
    %v4239 = vsub.s32 0, %v4238
    %v4240 = vrot.slane %v4235, %v4239
    %v4241 = vlaneseq
    %v4242 = vshrl.u32 %v4241, 7
    %v4243 = vsub.s32 1, %v4242
    %v4244 = vrot.slane %v4235, %v4243
    %v4245 = vlaneseq
    %v4246 = vshrl.u32 %v4245, 7
    %v4247 = vsub.s32 2, %v4246
    %v4248 = vrot.slane %v4235, %v4247
    %v4249 = vlaneseq
    %v4250 = vshrl.u32 %v4249, 7
    %v4251 = vsub.s32 3, %v4250
    %v4252 = vrot.slane %v4235, %v4251
    %v4513 = vunpack.c.l.b16 %v3979
    %v4514 = vunpack.c.h.b16 %v3979
    %v4515 = vunpack.c.l.b16 %v3980
    %v4516 = vunpack.c.h.b16 %v3980
    %v4517 = vunpack.c.l.b16 %v3981
    %v4518 = vunpack.c.h.b16 %v3981
    %v4519 = vunpack.c.l.b16 %v3982
    %v4520 = vunpack.c.h.b16 %v3982
    %v4521 = vunpack.c.l.b16 %v3983
    %v4522 = vunpack.c.h.b16 %v3983
    %v4523 = vunpack.c.l.b16 %v3984
    %v4524 = vunpack.c.h.b16 %v3984
    %v4525 = vunpack.c.l.b16 %v3985
    %v4526 = vunpack.c.h.b16 %v3985
    %v4527 = vunpack.c.l.b16 %v3986
    %v4528 = vunpack.c.h.b16 %v3986
    %v4529 = vunpack.c.l.b16 %v3987
    %v4530 = vunpack.c.h.b16 %v3987
    %v4531 = vunpack.c.l.b16 %v3988
    %v4532 = vunpack.c.h.b16 %v3988
    %v4533 = vunpack.c.l.b16 %v3989
    %v4534 = vunpack.c.h.b16 %v3989
    %v4535 = vunpack.c.l.b16 %v3990
    %v4536 = vunpack.c.h.b16 %v3990
    %v4537 = vunpack.c.l.b16 %v3991
    %v4538 = vunpack.c.h.b16 %v3991
    %v4539 = vunpack.c.l.b16 %v3992
    %v4540 = vunpack.c.h.b16 %v3992
    %v4541 = vunpack.c.l.b16 %v3993
    %v4542 = vunpack.c.h.b16 %v3993
    %v4543 = vunpack.c.l.b16 %v3994
    %v4544 = vunpack.c.h.b16 %v3994
    %v4545 = vunpack.c.l.b16 %v3995
    %v4546 = vunpack.c.h.b16 %v3995
    %v4547 = vunpack.c.l.b16 %v3996
    %v4548 = vunpack.c.h.b16 %v3996
    %v4549 = vunpack.c.l.b16 %v3997
    %v4550 = vunpack.c.h.b16 %v3997
    %v4551 = vunpack.c.l.b16 %v3998
    %v4552 = vunpack.c.h.b16 %v3998
    %v4553 = vunpack.c.l.b16 %v3999
    %v4554 = vunpack.c.h.b16 %v3999
    %v4555 = vunpack.c.l.b16 %v4000
    %v4556 = vunpack.c.h.b16 %v4000
    %v4557 = vunpack.c.l.b16 %v4001
    %v4558 = vunpack.c.h.b16 %v4001
    %v4559 = vunpack.c.l.b16 %v4002
    %v4560 = vunpack.c.h.b16 %v4002
    %v4561 = vunpack.c.l.b16 %v4003
    %v4562 = vunpack.c.h.b16 %v4003
    %v4563 = vunpack.c.l.b16 %v4004
    %v4564 = vunpack.c.h.b16 %v4004
    %v4565 = vunpack.c.l.b16 %v4005
    %v4566 = vunpack.c.h.b16 %v4005
    %v4567 = vunpack.c.l.b16 %v4006
    %v4568 = vunpack.c.h.b16 %v4006
    %v4569 = vunpack.c.l.b16 %v4007
    %v4570 = vunpack.c.h.b16 %v4007
    %v4571 = vunpack.c.l.b16 %v4008
    %v4572 = vunpack.c.h.b16 %v4008
    %v4573 = vunpack.c.l.b16 %v4009
    %v4574 = vunpack.c.h.b16 %v4009
    %v4575 = vunpack.c.l.b16 %v4010
    %v4576 = vunpack.c.h.b16 %v4010
    %v4577 = vunpack.c.l.b16 %v4011
    %v4578 = vunpack.c.h.b16 %v4011
    %v4579 = vunpack.c.l.b16 %v4012
    %v4580 = vunpack.c.h.b16 %v4012
    %v4581 = vunpack.c.l.b16 %v4013
    %v4582 = vunpack.c.h.b16 %v4013
    %v4583 = vunpack.c.l.b16 %v4014
    %v4584 = vunpack.c.h.b16 %v4014
    %v4585 = vunpack.c.l.b16 %v4015
    %v4586 = vunpack.c.h.b16 %v4015
    %v4587 = vunpack.c.l.b16 %v4016
    %v4588 = vunpack.c.h.b16 %v4016
    %v4589 = vunpack.c.l.b16 %v4017
    %v4590 = vunpack.c.h.b16 %v4017
    %v4591 = vunpack.c.l.b16 %v4018
    %v4592 = vunpack.c.h.b16 %v4018
    %v4593 = vunpack.c.l.b16 %v4019
    %v4594 = vunpack.c.h.b16 %v4019
    %v4595 = vunpack.c.l.b16 %v4020
    %v4596 = vunpack.c.h.b16 %v4020
    %v4597 = vunpack.c.l.b16 %v4021
    %v4598 = vunpack.c.h.b16 %v4021
    %v4599 = vunpack.c.l.b16 %v4022
    %v4600 = vunpack.c.h.b16 %v4022
    %v4601 = vunpack.c.l.b16 %v4023
    %v4602 = vunpack.c.h.b16 %v4023
    %v4603 = vunpack.c.l.b16 %v4024
    %v4604 = vunpack.c.h.b16 %v4024
    %v4605 = vunpack.c.l.b16 %v4025
    %v4606 = vunpack.c.h.b16 %v4025
    %v4607 = vunpack.c.l.b16 %v4026
    %v4608 = vunpack.c.h.b16 %v4026
    %v4609 = vunpack.c.l.b16 %v4027
    %v4610 = vunpack.c.h.b16 %v4027
    %v4611 = vunpack.c.l.b16 %v4028
    %v4612 = vunpack.c.h.b16 %v4028
    %v4613 = vunpack.c.l.b16 %v4029
    %v4614 = vunpack.c.h.b16 %v4029
    %v4615 = vunpack.c.l.b16 %v4030
    %v4616 = vunpack.c.h.b16 %v4030
    %v4617 = vunpack.c.l.b16 %v4031
    %v4618 = vunpack.c.h.b16 %v4031
    %v4619 = vunpack.c.l.b16 %v4032
    %v4620 = vunpack.c.h.b16 %v4032
    %v4621 = vunpack.c.l.b16 %v4033
    %v4622 = vunpack.c.h.b16 %v4033
    %v4623 = vunpack.c.l.b16 %v4034
    %v4624 = vunpack.c.h.b16 %v4034
    %v4625 = vunpack.c.l.b16 %v4035
    %v4626 = vunpack.c.h.b16 %v4035
    %v4627 = vunpack.c.l.b16 %v4036
    %v4628 = vunpack.c.h.b16 %v4036
    %v4629 = vunpack.c.l.b16 %v4037
    %v4630 = vunpack.c.h.b16 %v4037
    %v4631 = vunpack.c.l.b16 %v4038
    %v4632 = vunpack.c.h.b16 %v4038
    %v4633 = vunpack.c.l.b16 %v4039
    %v4634 = vunpack.c.h.b16 %v4039
    %v4635 = vunpack.c.l.b16 %v4040
    %v4636 = vunpack.c.h.b16 %v4040
    %v4637 = vunpack.c.l.b16 %v4041
    %v4638 = vunpack.c.h.b16 %v4041
    %v4639 = vunpack.c.l.b16 %v4042
    %v4640 = vunpack.c.h.b16 %v4042
    %v4641 = vunpack.c.l.b16 %v4043
    %v4642 = vunpack.c.h.b16 %v4043
    %v4643 = vunpack.c.l.b16 %v4044
    %v4644 = vunpack.c.h.b16 %v4044
    %v4645 = vunpack.c.l.b16 %v4045
    %v4646 = vunpack.c.h.b16 %v4045
    %v4647 = vunpack.c.l.b16 %v4046
    %v4648 = vunpack.c.h.b16 %v4046
    %v4649 = vunpack.c.l.b16 %v4047
    %v4650 = vunpack.c.h.b16 %v4047
    %v4651 = vunpack.c.l.b16 %v4048
    %v4652 = vunpack.c.h.b16 %v4048
    %v4653 = vunpack.c.l.b16 %v4049
    %v4654 = vunpack.c.h.b16 %v4049
    %v4655 = vunpack.c.l.b16 %v4050
    %v4656 = vunpack.c.h.b16 %v4050
    %v4657 = vunpack.c.l.b16 %v4051
    %v4658 = vunpack.c.h.b16 %v4051
    %v4659 = vunpack.c.l.b16 %v4052
    %v4660 = vunpack.c.h.b16 %v4052
    %v4661 = vunpack.c.l.b16 %v4053
    %v4662 = vunpack.c.h.b16 %v4053
    %v4663 = vunpack.c.l.b16 %v4054
    %v4664 = vunpack.c.h.b16 %v4054
    %v4665 = vunpack.c.l.b16 %v4055
    %v4666 = vunpack.c.h.b16 %v4055
    %v4667 = vunpack.c.l.b16 %v4056
    %v4668 = vunpack.c.h.b16 %v4056
    %v4669 = vunpack.c.l.b16 %v4057
    %v4670 = vunpack.c.h.b16 %v4057
    %v4671 = vunpack.c.l.b16 %v4058
    %v4672 = vunpack.c.h.b16 %v4058
    %v4673 = vunpack.c.l.b16 %v4059
    %v4674 = vunpack.c.h.b16 %v4059
    %v4675 = vunpack.c.l.b16 %v4060
    %v4676 = vunpack.c.h.b16 %v4060
    %v4677 = vunpack.c.l.b16 %v4061
    %v4678 = vunpack.c.h.b16 %v4061
    %v4679 = vunpack.c.l.b16 %v4062
    %v4680 = vunpack.c.h.b16 %v4062
    %v4681 = vunpack.c.l.b16 %v4063
    %v4682 = vunpack.c.h.b16 %v4063
    %v4683 = vunpack.c.l.b16 %v4064
    %v4684 = vunpack.c.h.b16 %v4064
    %v4685 = vunpack.c.l.b16 %v4065
    %v4686 = vunpack.c.h.b16 %v4065
    %v4687 = vunpack.c.l.b16 %v4066
    %v4688 = vunpack.c.h.b16 %v4066
    %v4689 = vunpack.c.l.b16 %v4067
    %v4690 = vunpack.c.h.b16 %v4067
    %v4691 = vunpack.c.l.b16 %v4068
    %v4692 = vunpack.c.h.b16 %v4068
    %v4693 = vunpack.c.l.b16 %v4069
    %v4694 = vunpack.c.h.b16 %v4069
    %v4695 = vunpack.c.l.b16 %v4070
    %v4696 = vunpack.c.h.b16 %v4070
    %v4697 = vunpack.c.l.b16 %v4071
    %v4698 = vunpack.c.h.b16 %v4071
    %v4699 = vunpack.c.l.b16 %v4072
    %v4700 = vunpack.c.h.b16 %v4072
    %v4701 = vunpack.c.l.b16 %v4073
    %v4702 = vunpack.c.h.b16 %v4073
    %v4703 = vunpack.c.l.b16 %v4074
    %v4704 = vunpack.c.h.b16 %v4074
    %v4705 = vunpack.c.l.b16 %v4075
    %v4706 = vunpack.c.h.b16 %v4075
    %v4707 = vunpack.c.l.b16 %v4076
    %v4708 = vunpack.c.h.b16 %v4076
    %v4709 = vunpack.c.l.b16 %v4077
    %v4710 = vunpack.c.h.b16 %v4077
    %v4711 = vunpack.c.l.b16 %v4078
    %v4712 = vunpack.c.h.b16 %v4078
    %v4713 = vunpack.c.l.b16 %v4079
    %v4714 = vunpack.c.h.b16 %v4079
    %v4715 = vunpack.c.l.b16 %v4080
    %v4716 = vunpack.c.h.b16 %v4080
    %v4717 = vunpack.c.l.b16 %v4081
    %v4718 = vunpack.c.h.b16 %v4081
    %v4719 = vunpack.c.l.b16 %v4082
    %v4720 = vunpack.c.h.b16 %v4082
    %v4721 = vunpack.c.l.b16 %v4083
    %v4722 = vunpack.c.h.b16 %v4083
    %v4723 = vunpack.c.l.b16 %v4084
    %v4724 = vunpack.c.h.b16 %v4084
    %v4725 = vunpack.c.l.b16 %v4085
    %v4726 = vunpack.c.h.b16 %v4085
    %v4727 = vunpack.c.l.b16 %v4086
    %v4728 = vunpack.c.h.b16 %v4086
    %v4729 = vunpack.c.l.b16 %v4087
    %v4730 = vunpack.c.h.b16 %v4087
    %v4731 = vunpack.c.l.b16 %v4088
    %v4732 = vunpack.c.h.b16 %v4088
    %v4733 = vunpack.c.l.b16 %v4089
    %v4734 = vunpack.c.h.b16 %v4089
    %v4735 = vunpack.c.l.b16 %v4090
    %v4736 = vunpack.c.h.b16 %v4090
    %v4737 = vunpack.c.l.b16 %v4091
    %v4738 = vunpack.c.h.b16 %v4091
    %v4739 = vunpack.c.l.b16 %v4092
    %v4740 = vunpack.c.h.b16 %v4092
    %v4741 = vunpack.c.l.b16 %v4093
    %v4742 = vunpack.c.h.b16 %v4093
    %v4743 = vunpack.c.l.b16 %v4094
    %v4744 = vunpack.c.h.b16 %v4094
    %v4745 = vunpack.c.l.b16 %v4095
    %v4746 = vunpack.c.h.b16 %v4095
    %v4747 = vunpack.c.l.b16 %v4096
    %v4748 = vunpack.c.h.b16 %v4096
    %v4749 = vunpack.c.l.b16 %v4097
    %v4750 = vunpack.c.h.b16 %v4097
    %v4751 = vunpack.c.l.b16 %v4098
    %v4752 = vunpack.c.h.b16 %v4098
    %v4753 = vunpack.c.l.b16 %v4099
    %v4754 = vunpack.c.h.b16 %v4099
    %v4755 = vunpack.c.l.b16 %v4100
    %v4756 = vunpack.c.h.b16 %v4100
    %v4757 = vunpack.c.l.b16 %v4101
    %v4758 = vunpack.c.h.b16 %v4101
    %v4759 = vunpack.c.l.b16 %v4102
    %v4760 = vunpack.c.h.b16 %v4102
    %v4761 = vunpack.c.l.b16 %v4103
    %v4762 = vunpack.c.h.b16 %v4103
    %v4763 = vunpack.c.l.b16 %v4104
    %v4764 = vunpack.c.h.b16 %v4104
    %v4765 = vunpack.c.l.b16 %v4105
    %v4766 = vunpack.c.h.b16 %v4105
    %v4767 = vunpack.c.l.b16 %v4106
    %v4768 = vunpack.c.h.b16 %v4106
    %v4769 = vunpack.c.l.b16 %v4107
    %v4770 = vunpack.c.h.b16 %v4107
    %v4771 = vunpack.c.l.b16 %v4108
    %v4772 = vunpack.c.h.b16 %v4108
    %v4773 = vunpack.c.l.b16 %v4109
    %v4774 = vunpack.c.h.b16 %v4109
    %v4775 = vunpack.c.l.b16 %v4110
    %v4776 = vunpack.c.h.b16 %v4110
    %v4777 = vunpack.c.l.b16 %v4111
    %v4778 = vunpack.c.h.b16 %v4111
    %v4779 = vunpack.c.l.b16 %v4112
    %v4780 = vunpack.c.h.b16 %v4112
    %v4781 = vunpack.c.l.b16 %v4113
    %v4782 = vunpack.c.h.b16 %v4113
    %v4783 = vunpack.c.l.b16 %v4114
    %v4784 = vunpack.c.h.b16 %v4114
    %v4785 = vunpack.c.l.b16 %v4115
    %v4786 = vunpack.c.h.b16 %v4115
    %v4787 = vunpack.c.l.b16 %v4116
    %v4788 = vunpack.c.h.b16 %v4116
    %v4789 = vunpack.c.l.b16 %v4117
    %v4790 = vunpack.c.h.b16 %v4117
    %v4791 = vunpack.c.l.b16 %v4118
    %v4792 = vunpack.c.h.b16 %v4118
    %v4793 = vunpack.c.l.b16 %v4119
    %v4794 = vunpack.c.h.b16 %v4119
    %v4795 = vunpack.c.l.b16 %v4120
    %v4796 = vunpack.c.h.b16 %v4120
    %v4797 = vunpack.c.l.b16 %v4121
    %v4798 = vunpack.c.h.b16 %v4121
    %v4799 = vunpack.c.l.b16 %v4122
    %v4800 = vunpack.c.h.b16 %v4122
    %v4801 = vunpack.c.l.b16 %v4123
    %v4802 = vunpack.c.h.b16 %v4123
    %v4803 = vunpack.c.l.b16 %v4124
    %v4804 = vunpack.c.h.b16 %v4124
    %v4805 = vunpack.c.l.b16 %v4125
    %v4806 = vunpack.c.h.b16 %v4125
    %v4807 = vunpack.c.l.b16 %v4126
    %v4808 = vunpack.c.h.b16 %v4126
    %v4809 = vunpack.c.l.b16 %v4127
    %v4810 = vunpack.c.h.b16 %v4127
    %v4811 = vunpack.c.l.b16 %v4128
    %v4812 = vunpack.c.h.b16 %v4128
    %v4813 = vunpack.c.l.b16 %v4129
    %v4814 = vunpack.c.h.b16 %v4129
    %v4815 = vunpack.c.l.b16 %v4130
    %v4816 = vunpack.c.h.b16 %v4130
    %v4817 = vunpack.c.l.b16 %v4131
    %v4818 = vunpack.c.h.b16 %v4131
    %v4819 = vunpack.c.l.b16 %v4132
    %v4820 = vunpack.c.h.b16 %v4132
    %v4821 = vunpack.c.l.b16 %v4133
    %v4822 = vunpack.c.h.b16 %v4133
    %v4823 = vunpack.c.l.b16 %v4134
    %v4824 = vunpack.c.h.b16 %v4134
    %v4825 = vunpack.c.l.b16 %v4135
    %v4826 = vunpack.c.h.b16 %v4135
    %v4827 = vunpack.c.l.b16 %v4136
    %v4828 = vunpack.c.h.b16 %v4136
    %v4829 = vunpack.c.l.b16 %v4137
    %v4830 = vunpack.c.h.b16 %v4137
    %v4831 = vunpack.c.l.b16 %v4138
    %v4832 = vunpack.c.h.b16 %v4138
    %v4833 = vunpack.c.l.b16 %v4139
    %v4834 = vunpack.c.h.b16 %v4139
    %v4835 = vunpack.c.l.b16 %v4140
    %v4836 = vunpack.c.h.b16 %v4140
    %v4837 = vunpack.c.l.b16 %v4141
    %v4838 = vunpack.c.h.b16 %v4141
    %v4839 = vunpack.c.l.b16 %v4142
    %v4840 = vunpack.c.h.b16 %v4142
    %v4841 = vunpack.c.l.b16 %v4143
    %v4842 = vunpack.c.h.b16 %v4143
    %v4843 = vunpack.c.l.b16 %v4144
    %v4844 = vunpack.c.h.b16 %v4144
    %v4845 = vunpack.c.l.b16 %v4145
    %v4846 = vunpack.c.h.b16 %v4145
    %v4847 = vunpack.c.l.b16 %v4146
    %v4848 = vunpack.c.h.b16 %v4146
    %v4849 = vunpack.c.l.b16 %v4147
    %v4850 = vunpack.c.h.b16 %v4147
    %v4851 = vunpack.c.l.b16 %v4148
    %v4852 = vunpack.c.h.b16 %v4148
    %v4853 = vunpack.c.l.b16 %v4149
    %v4854 = vunpack.c.h.b16 %v4149
    %v4855 = vunpack.c.l.b16 %v4150
    %v4856 = vunpack.c.h.b16 %v4150
    %v4857 = vunpack.c.l.b16 %v4151
    %v4858 = vunpack.c.h.b16 %v4151
    %v4859 = vunpack.c.l.b16 %v4152
    %v4860 = vunpack.c.h.b16 %v4152
    %v4861 = vunpack.c.l.b16 %v4153
    %v4862 = vunpack.c.h.b16 %v4153
    %v4863 = vunpack.c.l.b16 %v4154
    %v4864 = vunpack.c.h.b16 %v4154
    %v4865 = vunpack.c.l.b16 %v4155
    %v4866 = vunpack.c.h.b16 %v4155
    %v4867 = vunpack.c.l.b16 %v4156
    %v4868 = vunpack.c.h.b16 %v4156
    %v4869 = vunpack.c.l.b16 %v4157
    %v4870 = vunpack.c.h.b16 %v4157
    %v4871 = vunpack.c.l.b16 %v4158
    %v4872 = vunpack.c.h.b16 %v4158
    %v4873 = vunpack.c.l.b16 %v4159
    %v4874 = vunpack.c.h.b16 %v4159
    %v4875 = vunpack.c.l.b16 %v4160
    %v4876 = vunpack.c.h.b16 %v4160
    %v4877 = vunpack.c.l.b16 %v4161
    %v4878 = vunpack.c.h.b16 %v4161
    %v4879 = vunpack.c.l.b16 %v4162
    %v4880 = vunpack.c.h.b16 %v4162
    %v4881 = vunpack.c.l.b16 %v4163
    %v4882 = vunpack.c.h.b16 %v4163
    %v4883 = vunpack.c.l.b16 %v4164
    %v4884 = vunpack.c.h.b16 %v4164
    %v4885 = vunpack.c.l.b16 %v4165
    %v4886 = vunpack.c.h.b16 %v4165
    %v4887 = vunpack.c.l.b16 %v4166
    %v4888 = vunpack.c.h.b16 %v4166
    %v4889 = vunpack.c.l.b16 %v4167
    %v4890 = vunpack.c.h.b16 %v4167
    %v4891 = vunpack.c.l.b16 %v4168
    %v4892 = vunpack.c.h.b16 %v4168
    %v4893 = vunpack.c.l.b16 %v4169
    %v4894 = vunpack.c.h.b16 %v4169
    %v4895 = vunpack.c.l.b16 %v4170
    %v4896 = vunpack.c.h.b16 %v4170
    %v4897 = vunpack.c.l.b16 %v4171
    %v4898 = vunpack.c.h.b16 %v4171
    %v4899 = vunpack.c.l.b16 %v4172
    %v4900 = vunpack.c.h.b16 %v4172
    %v4901 = vunpack.c.l.b16 %v4173
    %v4902 = vunpack.c.h.b16 %v4173
    %v4903 = vunpack.c.l.b16 %v4174
    %v4904 = vunpack.c.h.b16 %v4174
    %v4905 = vunpack.c.l.b16 %v4175
    %v4906 = vunpack.c.h.b16 %v4175
    %v4907 = vunpack.c.l.b16 %v4176
    %v4908 = vunpack.c.h.b16 %v4176
    %v4909 = vunpack.c.l.b16 %v4177
    %v4910 = vunpack.c.h.b16 %v4177
    %v4911 = vunpack.c.l.b16 %v4178
    %v4912 = vunpack.c.h.b16 %v4178
    %v4913 = vunpack.c.l.b16 %v4179
    %v4914 = vunpack.c.h.b16 %v4179
    %v4915 = vunpack.c.l.b16 %v4180
    %v4916 = vunpack.c.h.b16 %v4180
    %v4917 = vunpack.c.l.b16 %v4181
    %v4918 = vunpack.c.h.b16 %v4181
    %v4919 = vunpack.c.l.b16 %v4182
    %v4920 = vunpack.c.h.b16 %v4182
    %v4921 = vunpack.c.l.b16 %v4183
    %v4922 = vunpack.c.h.b16 %v4183
    %v4923 = vunpack.c.l.b16 %v4184
    %v4924 = vunpack.c.h.b16 %v4184
    %v4925 = vunpack.c.l.b16 %v4185
    %v4926 = vunpack.c.h.b16 %v4185
    %v4927 = vunpack.c.l.b16 %v4186
    %v4928 = vunpack.c.h.b16 %v4186
    %v4929 = vunpack.c.l.b16 %v4187
    %v4930 = vunpack.c.h.b16 %v4187
    %v4931 = vunpack.c.l.b16 %v4188
    %v4932 = vunpack.c.h.b16 %v4188
    %v4933 = vunpack.c.l.b16 %v4189
    %v4934 = vunpack.c.h.b16 %v4189
    %v4935 = vunpack.c.l.b16 %v4190
    %v4936 = vunpack.c.h.b16 %v4190
    %v4937 = vunpack.c.l.b16 %v4191
    %v4938 = vunpack.c.h.b16 %v4191
    %v4939 = vunpack.c.l.b16 %v4192
    %v4940 = vunpack.c.h.b16 %v4192
    %v4941 = vunpack.c.l.b16 %v4193
    %v4942 = vunpack.c.h.b16 %v4193
    %v4943 = vunpack.c.l.b16 %v4194
    %v4944 = vunpack.c.h.b16 %v4194
    %v4945 = vunpack.c.l.b16 %v4195
    %v4946 = vunpack.c.h.b16 %v4195
    %v4947 = vunpack.c.l.b16 %v4196
    %v4948 = vunpack.c.h.b16 %v4196
    %v4949 = vunpack.c.l.b16 %v4197
    %v4950 = vunpack.c.h.b16 %v4197
    %v4951 = vunpack.c.l.b16 %v4198
    %v4952 = vunpack.c.h.b16 %v4198
    %v4953 = vunpack.c.l.b16 %v4199
    %v4954 = vunpack.c.h.b16 %v4199
    %v4955 = vunpack.c.l.b16 %v4200
    %v4956 = vunpack.c.h.b16 %v4200
    %v4957 = vunpack.c.l.b16 %v4201
    %v4958 = vunpack.c.h.b16 %v4201
    %v4959 = vunpack.c.l.b16 %v4202
    %v4960 = vunpack.c.h.b16 %v4202
    %v4961 = vunpack.c.l.b16 %v4203
    %v4962 = vunpack.c.h.b16 %v4203
    %v4963 = vunpack.c.l.b16 %v4204
    %v4964 = vunpack.c.h.b16 %v4204
    %v4965 = vunpack.c.l.b16 %v4205
    %v4966 = vunpack.c.h.b16 %v4205
    %v4967 = vunpack.c.l.b16 %v4206
    %v4968 = vunpack.c.h.b16 %v4206
    %v4969 = vunpack.c.l.b16 %v4207
    %v4970 = vunpack.c.h.b16 %v4207
    %v4971 = vunpack.c.l.b16 %v4208
    %v4972 = vunpack.c.h.b16 %v4208
    %v4973 = vunpack.c.l.b16 %v4209
    %v4974 = vunpack.c.h.b16 %v4209
    %v4975 = vunpack.c.l.b16 %v4210
    %v4976 = vunpack.c.h.b16 %v4210
    %v4977 = vunpack.c.l.b16 %v4211
    %v4978 = vunpack.c.h.b16 %v4211
    %v4979 = vunpack.c.l.b16 %v4212
    %v4980 = vunpack.c.h.b16 %v4212
    %v4981 = vunpack.c.l.b16 %v4213
    %v4982 = vunpack.c.h.b16 %v4213
    %v4983 = vunpack.c.l.b16 %v4214
    %v4984 = vunpack.c.h.b16 %v4214
    %v4985 = vunpack.c.l.b16 %v4215
    %v4986 = vunpack.c.h.b16 %v4215
    %v4987 = vunpack.c.l.b16 %v4216
    %v4988 = vunpack.c.h.b16 %v4216
    %v4989 = vunpack.c.l.b16 %v4217
    %v4990 = vunpack.c.h.b16 %v4217
    %v4991 = vunpack.c.l.b16 %v4218
    %v4992 = vunpack.c.h.b16 %v4218
    %v4993 = vunpack.c.l.b16 %v4219
    %v4994 = vunpack.c.h.b16 %v4219
    %v4995 = vunpack.c.l.b16 %v4220
    %v4996 = vunpack.c.h.b16 %v4220
    %v4997 = vunpack.c.l.b16 %v4221
    %v4998 = vunpack.c.h.b16 %v4221
    %v4999 = vunpack.c.l.b16 %v4222
    %v5000 = vunpack.c.h.b16 %v4222
    %v5001 = vunpack.c.l.b16 %v4223
    %v5002 = vunpack.c.h.b16 %v4223
    %v5003 = vunpack.c.l.b16 %v4224
    %v5004 = vunpack.c.h.b16 %v4224
    %v5005 = vunpack.c.l.b16 %v4225
    %v5006 = vunpack.c.h.b16 %v4225
    %v5007 = vunpack.c.l.b16 %v4226
    %v5008 = vunpack.c.h.b16 %v4226
    %v5009 = vunpack.c.l.b16 %v4227
    %v5010 = vunpack.c.h.b16 %v4227
    %v5011 = vunpack.c.l.b16 %v4228
    %v5012 = vunpack.c.h.b16 %v4228
    %v5013 = vunpack.c.l.b16 %v4229
    %v5014 = vunpack.c.h.b16 %v4229
    %v5015 = vunpack.c.l.b16 %v4230
    %v5016 = vunpack.c.h.b16 %v4230
    %v5017 = vunpack.c.l.b16 %v4231
    %v5018 = vunpack.c.h.b16 %v4231
    %v5019 = vunpack.c.l.b16 %v4232
    %v5020 = vunpack.c.h.b16 %v4232
    %v5021 = vunpack.c.l.b16 %v4233
    %v5022 = vunpack.c.h.b16 %v4233
    %v5023 = vunpack.c.l.b16 %v4234
    %v5024 = vunpack.c.h.b16 %v4234
    %v5025 = vpack.c.b16 %v4517, %v4513
    %v5026 = vpack.c.b16 %v4518, %v4514
    %v5027 = vpack.c.b16 %v4519, %v4515
    %v5028 = vpack.c.b16 %v4520, %v4516
    %v5029 = vpack.c.b16 %v4525, %v4521
    %v5030 = vpack.c.b16 %v4526, %v4522
    %v5031 = vpack.c.b16 %v4527, %v4523
    %v5032 = vpack.c.b16 %v4528, %v4524
    %v5033 = vpack.c.b16 %v4533, %v4529
    %v5034 = vpack.c.b16 %v4534, %v4530
    %v5035 = vpack.c.b16 %v4535, %v4531
    %v5036 = vpack.c.b16 %v4536, %v4532
    %v5037 = vpack.c.b16 %v4541, %v4537
    %v5038 = vpack.c.b16 %v4542, %v4538
    %v5039 = vpack.c.b16 %v4543, %v4539
    %v5040 = vpack.c.b16 %v4544, %v4540
    %v5041 = vpack.c.b16 %v4549, %v4545
    %v5042 = vpack.c.b16 %v4550, %v4546
    %v5043 = vpack.c.b16 %v4551, %v4547
    %v5044 = vpack.c.b16 %v4552, %v4548
    %v5045 = vpack.c.b16 %v4557, %v4553
    %v5046 = vpack.c.b16 %v4558, %v4554
    %v5047 = vpack.c.b16 %v4559, %v4555
    %v5048 = vpack.c.b16 %v4560, %v4556
    %v5049 = vpack.c.b16 %v4565, %v4561
    %v5050 = vpack.c.b16 %v4566, %v4562
    %v5051 = vpack.c.b16 %v4567, %v4563
    %v5052 = vpack.c.b16 %v4568, %v4564
    %v5053 = vpack.c.b16 %v4573, %v4569
    %v5054 = vpack.c.b16 %v4574, %v4570
    %v5055 = vpack.c.b16 %v4575, %v4571
    %v5056 = vpack.c.b16 %v4576, %v4572
    %v5057 = vpack.c.b16 %v4581, %v4577
    %v5058 = vpack.c.b16 %v4582, %v4578
    %v5059 = vpack.c.b16 %v4583, %v4579
    %v5060 = vpack.c.b16 %v4584, %v4580
    %v5061 = vpack.c.b16 %v4589, %v4585
    %v5062 = vpack.c.b16 %v4590, %v4586
    %v5063 = vpack.c.b16 %v4591, %v4587
    %v5064 = vpack.c.b16 %v4592, %v4588
    %v5065 = vpack.c.b16 %v4597, %v4593
    %v5066 = vpack.c.b16 %v4598, %v4594
    %v5067 = vpack.c.b16 %v4599, %v4595
    %v5068 = vpack.c.b16 %v4600, %v4596
    %v5069 = vpack.c.b16 %v4605, %v4601
    %v5070 = vpack.c.b16 %v4606, %v4602
    %v5071 = vpack.c.b16 %v4607, %v4603
    %v5072 = vpack.c.b16 %v4608, %v4604
    %v5073 = vpack.c.b16 %v4613, %v4609
    %v5074 = vpack.c.b16 %v4614, %v4610
    %v5075 = vpack.c.b16 %v4615, %v4611
    %v5076 = vpack.c.b16 %v4616, %v4612
    %v5077 = vpack.c.b16 %v4621, %v4617
    %v5078 = vpack.c.b16 %v4622, %v4618
    %v5079 = vpack.c.b16 %v4623, %v4619
    %v5080 = vpack.c.b16 %v4624, %v4620
    %v5081 = vpack.c.b16 %v4629, %v4625
    %v5082 = vpack.c.b16 %v4630, %v4626
    %v5083 = vpack.c.b16 %v4631, %v4627
    %v5084 = vpack.c.b16 %v4632, %v4628
    %v5085 = vpack.c.b16 %v4637, %v4633
    %v5086 = vpack.c.b16 %v4638, %v4634
    %v5087 = vpack.c.b16 %v4639, %v4635
    %v5088 = vpack.c.b16 %v4640, %v4636
    %v5089 = vpack.c.b16 %v4645, %v4641
    %v5090 = vpack.c.b16 %v4646, %v4642
    %v5091 = vpack.c.b16 %v4647, %v4643
    %v5092 = vpack.c.b16 %v4648, %v4644
    %v5093 = vpack.c.b16 %v4653, %v4649
    %v5094 = vpack.c.b16 %v4654, %v4650
    %v5095 = vpack.c.b16 %v4655, %v4651
    %v5096 = vpack.c.b16 %v4656, %v4652
    %v5097 = vpack.c.b16 %v4661, %v4657
    %v5098 = vpack.c.b16 %v4662, %v4658
    %v5099 = vpack.c.b16 %v4663, %v4659
    %v5100 = vpack.c.b16 %v4664, %v4660
    %v5101 = vpack.c.b16 %v4669, %v4665
    %v5102 = vpack.c.b16 %v4670, %v4666
    %v5103 = vpack.c.b16 %v4671, %v4667
    %v5104 = vpack.c.b16 %v4672, %v4668
    %v5105 = vpack.c.b16 %v4677, %v4673
    %v5106 = vpack.c.b16 %v4678, %v4674
    %v5107 = vpack.c.b16 %v4679, %v4675
    %v5108 = vpack.c.b16 %v4680, %v4676
    %v5109 = vpack.c.b16 %v4685, %v4681
    %v5110 = vpack.c.b16 %v4686, %v4682
    %v5111 = vpack.c.b16 %v4687, %v4683
    %v5112 = vpack.c.b16 %v4688, %v4684
    %v5113 = vpack.c.b16 %v4693, %v4689
    %v5114 = vpack.c.b16 %v4694, %v4690
    %v5115 = vpack.c.b16 %v4695, %v4691
    %v5116 = vpack.c.b16 %v4696, %v4692
    %v5117 = vpack.c.b16 %v4701, %v4697
    %v5118 = vpack.c.b16 %v4702, %v4698
    %v5119 = vpack.c.b16 %v4703, %v4699
    %v5120 = vpack.c.b16 %v4704, %v4700
    %v5121 = vpack.c.b16 %v4709, %v4705
    %v5122 = vpack.c.b16 %v4710, %v4706
    %v5123 = vpack.c.b16 %v4711, %v4707
    %v5124 = vpack.c.b16 %v4712, %v4708
    %v5125 = vpack.c.b16 %v4717, %v4713
    %v5126 = vpack.c.b16 %v4718, %v4714
    %v5127 = vpack.c.b16 %v4719, %v4715
    %v5128 = vpack.c.b16 %v4720, %v4716
    %v5129 = vpack.c.b16 %v4725, %v4721
    %v5130 = vpack.c.b16 %v4726, %v4722
    %v5131 = vpack.c.b16 %v4727, %v4723
    %v5132 = vpack.c.b16 %v4728, %v4724
    %v5133 = vpack.c.b16 %v4733, %v4729
    %v5134 = vpack.c.b16 %v4734, %v4730
    %v5135 = vpack.c.b16 %v4735, %v4731
    %v5136 = vpack.c.b16 %v4736, %v4732
    %v5137 = vpack.c.b16 %v4741, %v4737
    %v5138 = vpack.c.b16 %v4742, %v4738
    %v5139 = vpack.c.b16 %v4743, %v4739
    %v5140 = vpack.c.b16 %v4744, %v4740
    %v5141 = vpack.c.b16 %v4749, %v4745
    %v5142 = vpack.c.b16 %v4750, %v4746
    %v5143 = vpack.c.b16 %v4751, %v4747
    %v5144 = vpack.c.b16 %v4752, %v4748
    %v5145 = vpack.c.b16 %v4757, %v4753
    %v5146 = vpack.c.b16 %v4758, %v4754
    %v5147 = vpack.c.b16 %v4759, %v4755
    %v5148 = vpack.c.b16 %v4760, %v4756
    %v5149 = vpack.c.b16 %v4765, %v4761
    %v5150 = vpack.c.b16 %v4766, %v4762
    %v5151 = vpack.c.b16 %v4767, %v4763
    %v5152 = vpack.c.b16 %v4768, %v4764
    %v5153 = vpack.c.b16 %v4773, %v4769
    %v5154 = vpack.c.b16 %v4774, %v4770
    %v5155 = vpack.c.b16 %v4775, %v4771
    %v5156 = vpack.c.b16 %v4776, %v4772
    %v5157 = vpack.c.b16 %v4781, %v4777
    %v5158 = vpack.c.b16 %v4782, %v4778
    %v5159 = vpack.c.b16 %v4783, %v4779
    %v5160 = vpack.c.b16 %v4784, %v4780
    %v5161 = vpack.c.b16 %v4789, %v4785
    %v5162 = vpack.c.b16 %v4790, %v4786
    %v5163 = vpack.c.b16 %v4791, %v4787
    %v5164 = vpack.c.b16 %v4792, %v4788
    %v5165 = vpack.c.b16 %v4797, %v4793
    %v5166 = vpack.c.b16 %v4798, %v4794
    %v5167 = vpack.c.b16 %v4799, %v4795
    %v5168 = vpack.c.b16 %v4800, %v4796
    %v5169 = vpack.c.b16 %v4805, %v4801
    %v5170 = vpack.c.b16 %v4806, %v4802
    %v5171 = vpack.c.b16 %v4807, %v4803
    %v5172 = vpack.c.b16 %v4808, %v4804
    %v5173 = vpack.c.b16 %v4813, %v4809
    %v5174 = vpack.c.b16 %v4814, %v4810
    %v5175 = vpack.c.b16 %v4815, %v4811
    %v5176 = vpack.c.b16 %v4816, %v4812
    %v5177 = vpack.c.b16 %v4821, %v4817
    %v5178 = vpack.c.b16 %v4822, %v4818
    %v5179 = vpack.c.b16 %v4823, %v4819
    %v5180 = vpack.c.b16 %v4824, %v4820
    %v5181 = vpack.c.b16 %v4829, %v4825
    %v5182 = vpack.c.b16 %v4830, %v4826
    %v5183 = vpack.c.b16 %v4831, %v4827
    %v5184 = vpack.c.b16 %v4832, %v4828
    %v5185 = vpack.c.b16 %v4837, %v4833
    %v5186 = vpack.c.b16 %v4838, %v4834
    %v5187 = vpack.c.b16 %v4839, %v4835
    %v5188 = vpack.c.b16 %v4840, %v4836
    %v5189 = vpack.c.b16 %v4845, %v4841
    %v5190 = vpack.c.b16 %v4846, %v4842
    %v5191 = vpack.c.b16 %v4847, %v4843
    %v5192 = vpack.c.b16 %v4848, %v4844
    %v5193 = vpack.c.b16 %v4853, %v4849
    %v5194 = vpack.c.b16 %v4854, %v4850
    %v5195 = vpack.c.b16 %v4855, %v4851
    %v5196 = vpack.c.b16 %v4856, %v4852
    %v5197 = vpack.c.b16 %v4861, %v4857
    %v5198 = vpack.c.b16 %v4862, %v4858
    %v5199 = vpack.c.b16 %v4863, %v4859
    %v5200 = vpack.c.b16 %v4864, %v4860
    %v5201 = vpack.c.b16 %v4869, %v4865
    %v5202 = vpack.c.b16 %v4870, %v4866
    %v5203 = vpack.c.b16 %v4871, %v4867
    %v5204 = vpack.c.b16 %v4872, %v4868
    %v5205 = vpack.c.b16 %v4877, %v4873
    %v5206 = vpack.c.b16 %v4878, %v4874
    %v5207 = vpack.c.b16 %v4879, %v4875
    %v5208 = vpack.c.b16 %v4880, %v4876
    %v5209 = vpack.c.b16 %v4885, %v4881
    %v5210 = vpack.c.b16 %v4886, %v4882
    %v5211 = vpack.c.b16 %v4887, %v4883
    %v5212 = vpack.c.b16 %v4888, %v4884
    %v5213 = vpack.c.b16 %v4893, %v4889
    %v5214 = vpack.c.b16 %v4894, %v4890
    %v5215 = vpack.c.b16 %v4895, %v4891
    %v5216 = vpack.c.b16 %v4896, %v4892
    %v5217 = vpack.c.b16 %v4901, %v4897
    %v5218 = vpack.c.b16 %v4902, %v4898
    %v5219 = vpack.c.b16 %v4903, %v4899
    %v5220 = vpack.c.b16 %v4904, %v4900
    %v5221 = vpack.c.b16 %v4909, %v4905
    %v5222 = vpack.c.b16 %v4910, %v4906
    %v5223 = vpack.c.b16 %v4911, %v4907
    %v5224 = vpack.c.b16 %v4912, %v4908
    %v5225 = vpack.c.b16 %v4917, %v4913
    %v5226 = vpack.c.b16 %v4918, %v4914
    %v5227 = vpack.c.b16 %v4919, %v4915
    %v5228 = vpack.c.b16 %v4920, %v4916
    %v5229 = vpack.c.b16 %v4925, %v4921
    %v5230 = vpack.c.b16 %v4926, %v4922
    %v5231 = vpack.c.b16 %v4927, %v4923
    %v5232 = vpack.c.b16 %v4928, %v4924
    %v5233 = vpack.c.b16 %v4933, %v4929
    %v5234 = vpack.c.b16 %v4934, %v4930
    %v5235 = vpack.c.b16 %v4935, %v4931
    %v5236 = vpack.c.b16 %v4936, %v4932
    %v5237 = vpack.c.b16 %v4941, %v4937
    %v5238 = vpack.c.b16 %v4942, %v4938
    %v5239 = vpack.c.b16 %v4943, %v4939
    %v5240 = vpack.c.b16 %v4944, %v4940
    %v5241 = vpack.c.b16 %v4949, %v4945
    %v5242 = vpack.c.b16 %v4950, %v4946
    %v5243 = vpack.c.b16 %v4951, %v4947
    %v5244 = vpack.c.b16 %v4952, %v4948
    %v5245 = vpack.c.b16 %v4957, %v4953
    %v5246 = vpack.c.b16 %v4958, %v4954
    %v5247 = vpack.c.b16 %v4959, %v4955
    %v5248 = vpack.c.b16 %v4960, %v4956
    %v5249 = vpack.c.b16 %v4965, %v4961
    %v5250 = vpack.c.b16 %v4966, %v4962
    %v5251 = vpack.c.b16 %v4967, %v4963
    %v5252 = vpack.c.b16 %v4968, %v4964
    %v5253 = vpack.c.b16 %v4973, %v4969
    %v5254 = vpack.c.b16 %v4974, %v4970
    %v5255 = vpack.c.b16 %v4975, %v4971
    %v5256 = vpack.c.b16 %v4976, %v4972
    %v5257 = vpack.c.b16 %v4981, %v4977
    %v5258 = vpack.c.b16 %v4982, %v4978
    %v5259 = vpack.c.b16 %v4983, %v4979
    %v5260 = vpack.c.b16 %v4984, %v4980
    %v5261 = vpack.c.b16 %v4989, %v4985
    %v5262 = vpack.c.b16 %v4990, %v4986
    %v5263 = vpack.c.b16 %v4991, %v4987
    %v5264 = vpack.c.b16 %v4992, %v4988
    %v5265 = vpack.c.b16 %v4997, %v4993
    %v5266 = vpack.c.b16 %v4998, %v4994
    %v5267 = vpack.c.b16 %v4999, %v4995
    %v5268 = vpack.c.b16 %v5000, %v4996
    %v5269 = vpack.c.b16 %v5005, %v5001
    %v5270 = vpack.c.b16 %v5006, %v5002
    %v5271 = vpack.c.b16 %v5007, %v5003
    %v5272 = vpack.c.b16 %v5008, %v5004
    %v5273 = vpack.c.b16 %v5013, %v5009
    %v5274 = vpack.c.b16 %v5014, %v5010
    %v5275 = vpack.c.b16 %v5015, %v5011
    %v5276 = vpack.c.b16 %v5016, %v5012
    %v5277 = vpack.c.b16 %v5021, %v5017
    %v5278 = vpack.c.b16 %v5022, %v5018
    %v5279 = vpack.c.b16 %v5023, %v5019
    %v5280 = vpack.c.b16 %v5024, %v5020
    %5537 = vmatprep.subr.bf16.mxu0 %v5026
    %5538 = vmatpush1.bf16.msra.mxu0 %v5025
    %5539 = vmatprep.subr.bf16.mxu0 %v5030
    %5540 = vmatpush1.bf16.msra.mxu0 %v5029
    %5541 = vmatprep.subr.bf16.mxu0 %v5034
    %5542 = vmatpush1.bf16.msra.mxu0 %v5033
    %5543 = vmatprep.subr.bf16.mxu0 %v5038
    %5544 = vmatpush1.bf16.msra.mxu0 %v5037
    %5545 = vmatprep.subr.bf16.mxu0 %v5042
    %5546 = vmatpush1.bf16.msra.mxu0 %v5041
    %5547 = vmatprep.subr.bf16.mxu0 %v5046
    %5548 = vmatpush1.bf16.msra.mxu0 %v5045
    %5549 = vmatprep.subr.bf16.mxu0 %v5050
    %5550 = vmatpush1.bf16.msra.mxu0 %v5049
    %5551 = vmatprep.subr.bf16.mxu0 %v5054
    %5552 = vmatpush1.bf16.msra.mxu0 %v5053
    %5553 = vmatprep.subr.bf16.mxu0 %v5058
    %5554 = vmatpush1.bf16.msra.mxu0 %v5057
    %5555 = vmatprep.subr.bf16.mxu0 %v5062
    %5556 = vmatpush1.bf16.msra.mxu0 %v5061
    %5557 = vmatprep.subr.bf16.mxu0 %v5066
    %5558 = vmatpush1.bf16.msra.mxu0 %v5065
    %5559 = vmatprep.subr.bf16.mxu0 %v5070
    %5560 = vmatpush1.bf16.msra.mxu0 %v5069
    %5561 = vmatprep.subr.bf16.mxu0 %v5074
    %5562 = vmatpush1.bf16.msra.mxu0 %v5073
    %5563 = vmatprep.subr.bf16.mxu0 %v5078
    %5564 = vmatpush1.bf16.msra.mxu0 %v5077
    %5565 = vmatprep.subr.bf16.mxu0 %v5082
    %5566 = vmatpush1.bf16.msra.mxu0 %v5081
    %5567 = vmatprep.subr.bf16.mxu0 %v5086
    %5568 = vmatpush1.bf16.msra.mxu0 %v5085
    %5569 = vmatprep.mubr.bf16.mxu0 %v3972
    %5570 = vmatmul.mubr.bf16.gmra.mrb[0].mxu0 %v3971
    %v5571 = vpop.f32.mrb[0].mxu0
    %v5572 = vadd.f32 %v4240, %v5571
    %v5573 = vpop.f32.mrb[0].mxu0
    %v5574 = vadd.f32 %v4244, %v5573
    %v5575 = vpop.f32.mrb[0].mxu0
    %v5576 = vadd.f32 %v4240, %v5575
    %v5577 = vpop.f32.mrb[0].mxu0
    %v5578 = vadd.f32 %v4244, %v5577
    %5579 = vdwg.mxu0
    %5580 = vmatprep.subr.bf16.mxu0 %v5090
    %5581 = vmatpush1.bf16.msra.mxu0 %v5089
    %5582 = vmatprep.subr.bf16.mxu0 %v5094
    %5583 = vmatpush1.bf16.msra.mxu0 %v5093
    %5584 = vmatprep.subr.bf16.mxu0 %v5098
    %5585 = vmatpush1.bf16.msra.mxu0 %v5097
    %5586 = vmatprep.subr.bf16.mxu0 %v5102
    %5587 = vmatpush1.bf16.msra.mxu0 %v5101
    %5588 = vmatprep.subr.bf16.mxu0 %v5106
    %5589 = vmatpush1.bf16.msra.mxu0 %v5105
    %5590 = vmatprep.subr.bf16.mxu0 %v5110
    %5591 = vmatpush1.bf16.msra.mxu0 %v5109
    %5592 = vmatprep.subr.bf16.mxu0 %v5114
    %5593 = vmatpush1.bf16.msra.mxu0 %v5113
    %5594 = vmatprep.subr.bf16.mxu0 %v5118
    %5595 = vmatpush1.bf16.msra.mxu0 %v5117
    %5596 = vmatprep.subr.bf16.mxu0 %v5122
    %5597 = vmatpush1.bf16.msra.mxu0 %v5121
    %5598 = vmatprep.subr.bf16.mxu0 %v5126
    %5599 = vmatpush1.bf16.msra.mxu0 %v5125
    %5600 = vmatprep.subr.bf16.mxu0 %v5130
    %5601 = vmatpush1.bf16.msra.mxu0 %v5129
    %5602 = vmatprep.subr.bf16.mxu0 %v5134
    %5603 = vmatpush1.bf16.msra.mxu0 %v5133
    %5604 = vmatprep.subr.bf16.mxu0 %v5138
    %5605 = vmatpush1.bf16.msra.mxu0 %v5137
    %5606 = vmatprep.subr.bf16.mxu0 %v5142
    %5607 = vmatpush1.bf16.msra.mxu0 %v5141
    %5608 = vmatprep.subr.bf16.mxu0 %v5146
    %5609 = vmatpush1.bf16.msra.mxu0 %v5145
    %5610 = vmatprep.subr.bf16.mxu0 %v5150
    %5611 = vmatpush1.bf16.msra.mxu0 %v5149
    %5612 = vmatprep.mubr.bf16.mxu0 %v3974
    %5613 = vmatmul.mubr.bf16.gmra.mrb[0].mxu0 %v3973
    %v5614 = vpop.f32.mrb[0].mxu0
    %v5615 = vadd.f32 %v5572, %v5614
    %v5616 = vpop.f32.mrb[0].mxu0
    %v5617 = vadd.f32 %v5574, %v5616
    %v5618 = vpop.f32.mrb[0].mxu0
    %v5619 = vadd.f32 %v5576, %v5618
    %v5620 = vpop.f32.mrb[0].mxu0
    %v5621 = vadd.f32 %v5578, %v5620
    %5622 = vdwg.mxu0
    %5623 = vmatprep.subr.bf16.mxu0 %v5154
    %5624 = vmatpush1.bf16.msra.mxu0 %v5153
    %5625 = vmatprep.subr.bf16.mxu0 %v5158
    %5626 = vmatpush1.bf16.msra.mxu0 %v5157
    %5627 = vmatprep.subr.bf16.mxu0 %v5162
    %5628 = vmatpush1.bf16.msra.mxu0 %v5161
    %5629 = vmatprep.subr.bf16.mxu0 %v5166
    %5630 = vmatpush1.bf16.msra.mxu0 %v5165
    %5631 = vmatprep.subr.bf16.mxu0 %v5170
    %5632 = vmatpush1.bf16.msra.mxu0 %v5169
    %5633 = vmatprep.subr.bf16.mxu0 %v5174
    %5634 = vmatpush1.bf16.msra.mxu0 %v5173
    %5635 = vmatprep.subr.bf16.mxu0 %v5178
    %5636 = vmatpush1.bf16.msra.mxu0 %v5177
    %5637 = vmatprep.subr.bf16.mxu0 %v5182
    %5638 = vmatpush1.bf16.msra.mxu0 %v5181
    %5639 = vmatprep.subr.bf16.mxu0 %v5186
    %5640 = vmatpush1.bf16.msra.mxu0 %v5185
    %5641 = vmatprep.subr.bf16.mxu0 %v5190
    %5642 = vmatpush1.bf16.msra.mxu0 %v5189
    %5643 = vmatprep.subr.bf16.mxu0 %v5194
    %5644 = vmatpush1.bf16.msra.mxu0 %v5193
    %5645 = vmatprep.subr.bf16.mxu0 %v5198
    %5646 = vmatpush1.bf16.msra.mxu0 %v5197
    %5647 = vmatprep.subr.bf16.mxu0 %v5202
    %5648 = vmatpush1.bf16.msra.mxu0 %v5201
    %5649 = vmatprep.subr.bf16.mxu0 %v5206
    %5650 = vmatpush1.bf16.msra.mxu0 %v5205
    %5651 = vmatprep.subr.bf16.mxu0 %v5210
    %5652 = vmatpush1.bf16.msra.mxu0 %v5209
    %5653 = vmatprep.subr.bf16.mxu0 %v5214
    %5654 = vmatpush1.bf16.msra.mxu0 %v5213
    %5655 = vmatprep.mubr.bf16.mxu0 %v3976
    %5656 = vmatmul.mubr.bf16.gmra.mrb[0].mxu0 %v3975
    %v5657 = vpop.f32.mrb[0].mxu0
    %v5658 = vadd.f32 %v5615, %v5657
    %v5659 = vpop.f32.mrb[0].mxu0
    %v5660 = vadd.f32 %v5617, %v5659
    %v5661 = vpop.f32.mrb[0].mxu0
    %v5662 = vadd.f32 %v5619, %v5661
    %v5663 = vpop.f32.mrb[0].mxu0
    %v5664 = vadd.f32 %v5621, %v5663
    %5665 = vdwg.mxu0
    %5666 = vmatprep.subr.bf16.mxu0 %v5218
    %5667 = vmatpush1.bf16.msra.mxu0 %v5217
    %5668 = vmatprep.subr.bf16.mxu0 %v5222
    %5669 = vmatpush1.bf16.msra.mxu0 %v5221
    %5670 = vmatprep.subr.bf16.mxu0 %v5226
    %5671 = vmatpush1.bf16.msra.mxu0 %v5225
    %5672 = vmatprep.subr.bf16.mxu0 %v5230
    %5673 = vmatpush1.bf16.msra.mxu0 %v5229
    %5674 = vmatprep.subr.bf16.mxu0 %v5234
    %5675 = vmatpush1.bf16.msra.mxu0 %v5233
    %5676 = vmatprep.subr.bf16.mxu0 %v5238
    %5677 = vmatpush1.bf16.msra.mxu0 %v5237
    %5678 = vmatprep.subr.bf16.mxu0 %v5242
    %5679 = vmatpush1.bf16.msra.mxu0 %v5241
    %5680 = vmatprep.subr.bf16.mxu0 %v5246
    %5681 = vmatpush1.bf16.msra.mxu0 %v5245
    %5682 = vmatprep.subr.bf16.mxu0 %v5250
    %5683 = vmatpush1.bf16.msra.mxu0 %v5249
    %5684 = vmatprep.subr.bf16.mxu0 %v5254
    %5685 = vmatpush1.bf16.msra.mxu0 %v5253
    %5686 = vmatprep.subr.bf16.mxu0 %v5258
    %5687 = vmatpush1.bf16.msra.mxu0 %v5257
    %5688 = vmatprep.subr.bf16.mxu0 %v5262
    %5689 = vmatpush1.bf16.msra.mxu0 %v5261
    %5690 = vmatprep.subr.bf16.mxu0 %v5266
    %5691 = vmatpush1.bf16.msra.mxu0 %v5265
    %5692 = vmatprep.subr.bf16.mxu0 %v5270
    %5693 = vmatpush1.bf16.msra.mxu0 %v5269
    %5694 = vmatprep.subr.bf16.mxu0 %v5274
    %5695 = vmatpush1.bf16.msra.mxu0 %v5273
    %5696 = vmatprep.subr.bf16.mxu0 %v5278
    %5697 = vmatpush1.bf16.msra.mxu0 %v5277
    %5698 = vmatprep.mubr.bf16.mxu0 %v3978
    %5699 = vmatmul.mubr.bf16.gmra.mrb[0].mxu0 %v3977
    %v5700 = vpop.f32.mrb[0].mxu0
    %v5701 = vadd.f32 %v5658, %v5700
    %v5702 = vpop.f32.mrb[0].mxu0
    %v5703 = vadd.f32 %v5660, %v5702
    %v5704 = vpop.f32.mrb[0].mxu0
    %v5705 = vadd.f32 %v5662, %v5704
    %v5706 = vpop.f32.mrb[0].mxu0
    %v5707 = vadd.f32 %v5664, %v5706
    %5708 = vdwg.mxu0
    %5709 = vmatprep.subr.bf16.mxu0 %v5028
    %5710 = vmatpush1.bf16.msra.mxu0 %v5027
    %5711 = vmatprep.subr.bf16.mxu0 %v5032
    %5712 = vmatpush1.bf16.msra.mxu0 %v5031
    %5713 = vmatprep.subr.bf16.mxu0 %v5036
    %5714 = vmatpush1.bf16.msra.mxu0 %v5035
    %5715 = vmatprep.subr.bf16.mxu0 %v5040
    %5716 = vmatpush1.bf16.msra.mxu0 %v5039
    %5717 = vmatprep.subr.bf16.mxu0 %v5044
    %5718 = vmatpush1.bf16.msra.mxu0 %v5043
    %5719 = vmatprep.subr.bf16.mxu0 %v5048
    %5720 = vmatpush1.bf16.msra.mxu0 %v5047
    %5721 = vmatprep.subr.bf16.mxu0 %v5052
    %5722 = vmatpush1.bf16.msra.mxu0 %v5051
    %5723 = vmatprep.subr.bf16.mxu0 %v5056
    %5724 = vmatpush1.bf16.msra.mxu0 %v5055
    %5725 = vmatprep.subr.bf16.mxu0 %v5060
    %5726 = vmatpush1.bf16.msra.mxu0 %v5059
    %5727 = vmatprep.subr.bf16.mxu0 %v5064
    %5728 = vmatpush1.bf16.msra.mxu0 %v5063
    %5729 = vmatprep.subr.bf16.mxu0 %v5068
    %5730 = vmatpush1.bf16.msra.mxu0 %v5067
    %5731 = vmatprep.subr.bf16.mxu0 %v5072
    %5732 = vmatpush1.bf16.msra.mxu0 %v5071
    %5733 = vmatprep.subr.bf16.mxu0 %v5076
    %5734 = vmatpush1.bf16.msra.mxu0 %v5075
    %5735 = vmatprep.subr.bf16.mxu0 %v5080
    %5736 = vmatpush1.bf16.msra.mxu0 %v5079
    %5737 = vmatprep.subr.bf16.mxu0 %v5084
    %5738 = vmatpush1.bf16.msra.mxu0 %v5083
    %5739 = vmatprep.subr.bf16.mxu0 %v5088
    %5740 = vmatpush1.bf16.msra.mxu0 %v5087
    %5741 = vmatprep.mubr.bf16.mxu0 %v3972
    %5742 = vmatmul.mubr.bf16.gmra.mrb[0].mxu0 %v3971
    %v5743 = vpop.f32.mrb[0].mxu0
    %v5744 = vadd.f32 %v4248, %v5743
    %v5745 = vpop.f32.mrb[0].mxu0
    %v5746 = vadd.f32 %v4252, %v5745
    %v5747 = vpop.f32.mrb[0].mxu0
    %v5748 = vadd.f32 %v4248, %v5747
    %v5749 = vpop.f32.mrb[0].mxu0
    %v5750 = vadd.f32 %v4252, %v5749
    %5751 = vdwg.mxu0
    %5752 = vmatprep.subr.bf16.mxu0 %v5092
    %5753 = vmatpush1.bf16.msra.mxu0 %v5091
    %5754 = vmatprep.subr.bf16.mxu0 %v5096
    %5755 = vmatpush1.bf16.msra.mxu0 %v5095
    %5756 = vmatprep.subr.bf16.mxu0 %v5100
    %5757 = vmatpush1.bf16.msra.mxu0 %v5099
    %5758 = vmatprep.subr.bf16.mxu0 %v5104
    %5759 = vmatpush1.bf16.msra.mxu0 %v5103
    %5760 = vmatprep.subr.bf16.mxu0 %v5108
    %5761 = vmatpush1.bf16.msra.mxu0 %v5107
    %5762 = vmatprep.subr.bf16.mxu0 %v5112
    %5763 = vmatpush1.bf16.msra.mxu0 %v5111
    %5764 = vmatprep.subr.bf16.mxu0 %v5116
    %5765 = vmatpush1.bf16.msra.mxu0 %v5115
    %5766 = vmatprep.subr.bf16.mxu0 %v5120
    %5767 = vmatpush1.bf16.msra.mxu0 %v5119
    %5768 = vmatprep.subr.bf16.mxu0 %v5124
    %5769 = vmatpush1.bf16.msra.mxu0 %v5123
    %5770 = vmatprep.subr.bf16.mxu0 %v5128
    %5771 = vmatpush1.bf16.msra.mxu0 %v5127
    %5772 = vmatprep.subr.bf16.mxu0 %v5132
    %5773 = vmatpush1.bf16.msra.mxu0 %v5131
    %5774 = vmatprep.subr.bf16.mxu0 %v5136
    %5775 = vmatpush1.bf16.msra.mxu0 %v5135
    %5776 = vmatprep.subr.bf16.mxu0 %v5140
    %5777 = vmatpush1.bf16.msra.mxu0 %v5139
    %5778 = vmatprep.subr.bf16.mxu0 %v5144
    %5779 = vmatpush1.bf16.msra.mxu0 %v5143
    %5780 = vmatprep.subr.bf16.mxu0 %v5148
    %5781 = vmatpush1.bf16.msra.mxu0 %v5147
    %5782 = vmatprep.subr.bf16.mxu0 %v5152
    %5783 = vmatpush1.bf16.msra.mxu0 %v5151
    %5784 = vmatprep.mubr.bf16.mxu0 %v3974
    %5785 = vmatmul.mubr.bf16.gmra.mrb[0].mxu0 %v3973
    %v5786 = vpop.f32.mrb[0].mxu0
    %v5787 = vadd.f32 %v5744, %v5786
    %v5788 = vpop.f32.mrb[0].mxu0
    %v5789 = vadd.f32 %v5746, %v5788
    %v5790 = vpop.f32.mrb[0].mxu0
    %v5791 = vadd.f32 %v5748, %v5790
    %v5792 = vpop.f32.mrb[0].mxu0
    %v5793 = vadd.f32 %v5750, %v5792
    %5794 = vdwg.mxu0
    %5795 = vmatprep.subr.bf16.mxu0 %v5156
    %5796 = vmatpush1.bf16.msra.mxu0 %v5155
    %5797 = vmatprep.subr.bf16.mxu0 %v5160
    %5798 = vmatpush1.bf16.msra.mxu0 %v5159
    %5799 = vmatprep.subr.bf16.mxu0 %v5164
    %5800 = vmatpush1.bf16.msra.mxu0 %v5163
    %5801 = vmatprep.subr.bf16.mxu0 %v5168
    %5802 = vmatpush1.bf16.msra.mxu0 %v5167
    %5803 = vmatprep.subr.bf16.mxu0 %v5172
    %5804 = vmatpush1.bf16.msra.mxu0 %v5171
    %5805 = vmatprep.subr.bf16.mxu0 %v5176
    %5806 = vmatpush1.bf16.msra.mxu0 %v5175
    %5807 = vmatprep.subr.bf16.mxu0 %v5180
    %5808 = vmatpush1.bf16.msra.mxu0 %v5179
    %5809 = vmatprep.subr.bf16.mxu0 %v5184
    %5810 = vmatpush1.bf16.msra.mxu0 %v5183
    %5811 = vmatprep.subr.bf16.mxu0 %v5188
    %5812 = vmatpush1.bf16.msra.mxu0 %v5187
    %5813 = vmatprep.subr.bf16.mxu0 %v5192
    %5814 = vmatpush1.bf16.msra.mxu0 %v5191
    %5815 = vmatprep.subr.bf16.mxu0 %v5196
    %5816 = vmatpush1.bf16.msra.mxu0 %v5195
    %5817 = vmatprep.subr.bf16.mxu0 %v5200
    %5818 = vmatpush1.bf16.msra.mxu0 %v5199
    %5819 = vmatprep.subr.bf16.mxu0 %v5204
    %5820 = vmatpush1.bf16.msra.mxu0 %v5203
    %5821 = vmatprep.subr.bf16.mxu0 %v5208
    %5822 = vmatpush1.bf16.msra.mxu0 %v5207
    %5823 = vmatprep.subr.bf16.mxu0 %v5212
    %5824 = vmatpush1.bf16.msra.mxu0 %v5211
    %5825 = vmatprep.subr.bf16.mxu0 %v5216
    %5826 = vmatpush1.bf16.msra.mxu0 %v5215
    %5827 = vmatprep.mubr.bf16.mxu0 %v3976
    %5828 = vmatmul.mubr.bf16.gmra.mrb[0].mxu0 %v3975
    %v5829 = vpop.f32.mrb[0].mxu0
    %v5830 = vadd.f32 %v5787, %v5829
    %v5831 = vpop.f32.mrb[0].mxu0
    %v5832 = vadd.f32 %v5789, %v5831
    %v5833 = vpop.f32.mrb[0].mxu0
    %v5834 = vadd.f32 %v5791, %v5833
    %v5835 = vpop.f32.mrb[0].mxu0
    %v5836 = vadd.f32 %v5793, %v5835
    %5837 = vdwg.mxu0
    %5838 = vmatprep.subr.bf16.mxu0 %v5220
    %5839 = vmatpush1.bf16.msra.mxu0 %v5219
    %5840 = vmatprep.subr.bf16.mxu0 %v5224
    %5841 = vmatpush1.bf16.msra.mxu0 %v5223
    %5842 = vmatprep.subr.bf16.mxu0 %v5228
    %5843 = vmatpush1.bf16.msra.mxu0 %v5227
    %5844 = vmatprep.subr.bf16.mxu0 %v5232
    %5845 = vmatpush1.bf16.msra.mxu0 %v5231
    %5846 = vmatprep.subr.bf16.mxu0 %v5236
    %5847 = vmatpush1.bf16.msra.mxu0 %v5235
    %5848 = vmatprep.subr.bf16.mxu0 %v5240
    %5849 = vmatpush1.bf16.msra.mxu0 %v5239
    %5850 = vmatprep.subr.bf16.mxu0 %v5244
    %5851 = vmatpush1.bf16.msra.mxu0 %v5243
    %5852 = vmatprep.subr.bf16.mxu0 %v5248
    %5853 = vmatpush1.bf16.msra.mxu0 %v5247
    %5854 = vmatprep.subr.bf16.mxu0 %v5252
    %5855 = vmatpush1.bf16.msra.mxu0 %v5251
    %5856 = vmatprep.subr.bf16.mxu0 %v5256
    %5857 = vmatpush1.bf16.msra.mxu0 %v5255
    %5858 = vmatprep.subr.bf16.mxu0 %v5260
    %5859 = vmatpush1.bf16.msra.mxu0 %v5259
    %5860 = vmatprep.subr.bf16.mxu0 %v5264
    %5861 = vmatpush1.bf16.msra.mxu0 %v5263
    %5862 = vmatprep.subr.bf16.mxu0 %v5268
    %5863 = vmatpush1.bf16.msra.mxu0 %v5267
    %5864 = vmatprep.subr.bf16.mxu0 %v5272
    %5865 = vmatpush1.bf16.msra.mxu0 %v5271
    %5866 = vmatprep.subr.bf16.mxu0 %v5276
    %5867 = vmatpush1.bf16.msra.mxu0 %v5275
    %5868 = vmatprep.subr.bf16.mxu0 %v5280
    %5869 = vmatpush1.bf16.msra.mxu0 %v5279
    %5870 = vmatprep.mubr.bf16.mxu0 %v3978
    %5871 = vmatmul.mubr.bf16.gmra.mrb[0].mxu0 %v3977
    %v5872 = vpop.f32.mrb[0].mxu0
    %v5873 = vadd.f32 %v5830, %v5872
    %v5874 = vpop.f32.mrb[0].mxu0
    %v5875 = vadd.f32 %v5832, %v5874
    %v5876 = vpop.f32.mrb[0].mxu0
    %v5877 = vadd.f32 %v5834, %v5876
    %v5878 = vpop.f32.mrb[0].mxu0
    %v5879 = vadd.f32 %v5836, %v5878
    %5880 = vdwg.mxu0
    %v5881 = vmax.f32 %v5701, 0.0
    %v5882 = vmax.f32 %v5703, 0.0
    %v5883 = vmax.f32 %v5873, 0.0
    %v5884 = vmax.f32 %v5875, 0.0
    %v5885 = vmax.f32 %v5705, 0.0
    %v5886 = vmax.f32 %v5707, 0.0
    %v5887 = vmax.f32 %v5877, 0.0
    %v5888 = vmax.f32 %v5879, 0.0
    %v5889 = vld [vmem:[#allocation12] sm:$0xf]
    %v5890 = vpack.c.bf16 %v5885, %v5881
    %v5891 = vpack.c.bf16 %v5886, %v5882
    %v5892 = vpack.c.bf16 %v5887, %v5883
    %v5893 = vpack.c.bf16 %v5888, %v5884
    %s5894 = sld [smem:[#allocation2]]
    %v5895 = vstv %s5894
    %v5898 = vunpack.c.l.s4 1966171168
    %v5899 = vunpack.c.0.s8 %v5898
    %v5900 = vlaneseq
    %v5901 = vshrl.u32 %v5900, 7
    %v5902 = vsub.s32 %v5899, %v5901
    %v5903 = vrot.slane %v5889, %v5902
    %v5904 = vcombine.high %v5903, %v5903
    %v5906 = vunpack.c.l.s4 1966171168
    %v5907 = vunpack.c.0.s8 %v5906
    %v5908 = vlaneseq
    %v5909 = vshrl.u32 %v5908, 7
    %v5910 = vsub.s32 %v5907, %v5909
    %v5911 = vrot.slane %v5903, %v5910
    %v5913 = vunpack.c.l.s4 1966171168
    %v5914 = vunpack.c.0.s8 %v5913
    %v5915 = vlaneseq
    %v5916 = vshrl.u32 %v5915, 7
    %v5917 = vsub.s32 %v5914, %v5916
    %v5918 = vrot.slane %v5904, %v5917
    %v5919 = vcombine.high %v5911, %v5911
    %v5920 = vcombine.high %v5918, %v5918
    %5925 = vmatprep.subr.bf16.mxu0 %v5891
    %5926 = vmatpush1.bf16.xpose.msra.mxu0 %v5890
    %5927 = vmatprep.subr.bf16.mxu0 0
    %5928 = vmatpush1.bf16.xpose.msra.mxu0 0
    %5929 = vmatprep.subr.bf16.mxu0 0
    %5930 = vmatpush1.bf16.xpose.msra.mxu0 0
    %5931 = vmatprep.subr.bf16.mxu0 0
    %5932 = vmatpush1.bf16.xpose.msra.mxu0 0
    %5933 = vmatprep.subr.bf16.mxu0 0
    %5934 = vmatpush1.bf16.xpose.msra.mxu0 0
    %5935 = vmatprep.subr.bf16.mxu0 0
    %5936 = vmatpush1.bf16.xpose.msra.mxu0 0
    %5937 = vmatprep.subr.bf16.mxu0 0
    %5938 = vmatpush1.bf16.xpose.msra.mxu0 0
    %5939 = vmatprep.subr.bf16.mxu0 0
    %5940 = vmatpush1.bf16.xpose.msra.mxu0 0
    %5941 = vmatprep.subr.bf16.mxu0 0
    %5942 = vmatpush1.bf16.xpose.msra.mxu0 0
    %5943 = vmatprep.subr.bf16.mxu0 0
    %5944 = vmatpush1.bf16.xpose.msra.mxu0 0
    %5945 = vmatprep.subr.bf16.mxu0 0
    %5946 = vmatpush1.bf16.xpose.msra.mxu0 0
    %5947 = vmatprep.subr.bf16.mxu0 0
    %5948 = vmatpush1.bf16.xpose.msra.mxu0 0
    %5949 = vmatprep.subr.bf16.mxu0 0
    %5950 = vmatpush1.bf16.xpose.msra.mxu0 0
    %5951 = vmatprep.subr.bf16.mxu0 0
    %5952 = vmatpush1.bf16.xpose.msra.mxu0 0
    %5953 = vmatprep.subr.bf16.mxu0 0
    %5954 = vmatpush1.bf16.xpose.msra.mxu0 0
    %5955 = vmatprep.subr.bf16.mxu0 0
    %5956 = vmatpush1.bf16.xpose.msra.mxu0 0
    %5957 = vmatprep.mubr.bf16.mxu0 %v5918
    %5958 = vmatmul.mubr.bf16.gmra.mrb[0].mxu0 %v5911
    %v5959 = vpop.f32.mrb[0].mxu0
    %v5960 = vadd.f32 %v5895, %v5959
    %v5961 = vpop.f32.mrb[0].mxu0
    %v5962 = vpop.f32.mrb[0].mxu0
    %v5963 = vpop.f32.mrb[0].mxu0
    %5964 = vdwg.mxu0
    %5965 = vmatprep.subr.bf16.mxu0 %v5893
    %5966 = vmatpush1.bf16.xpose.msra.mxu0 %v5892
    %5967 = vmatprep.subr.bf16.mxu0 0
    %5968 = vmatpush1.bf16.xpose.msra.mxu0 0
    %5969 = vmatprep.subr.bf16.mxu0 0
    %5970 = vmatpush1.bf16.xpose.msra.mxu0 0
    %5971 = vmatprep.subr.bf16.mxu0 0
    %5972 = vmatpush1.bf16.xpose.msra.mxu0 0
    %5973 = vmatprep.subr.bf16.mxu0 0
    %5974 = vmatpush1.bf16.xpose.msra.mxu0 0
    %5975 = vmatprep.subr.bf16.mxu0 0
    %5976 = vmatpush1.bf16.xpose.msra.mxu0 0
    %5977 = vmatprep.subr.bf16.mxu0 0
    %5978 = vmatpush1.bf16.xpose.msra.mxu0 0
    %5979 = vmatprep.subr.bf16.mxu0 0
    %5980 = vmatpush1.bf16.xpose.msra.mxu0 0
    %5981 = vmatprep.subr.bf16.mxu0 0
    %5982 = vmatpush1.bf16.xpose.msra.mxu0 0
    %5983 = vmatprep.subr.bf16.mxu0 0
    %5984 = vmatpush1.bf16.xpose.msra.mxu0 0
    %5985 = vmatprep.subr.bf16.mxu0 0
    %5986 = vmatpush1.bf16.xpose.msra.mxu0 0
    %5987 = vmatprep.subr.bf16.mxu0 0
    %5988 = vmatpush1.bf16.xpose.msra.mxu0 0
    %5989 = vmatprep.subr.bf16.mxu0 0
    %5990 = vmatpush1.bf16.xpose.msra.mxu0 0
    %5991 = vmatprep.subr.bf16.mxu0 0
    %5992 = vmatpush1.bf16.xpose.msra.mxu0 0
    %5993 = vmatprep.subr.bf16.mxu0 0
    %5994 = vmatpush1.bf16.xpose.msra.mxu0 0
    %5995 = vmatprep.subr.bf16.mxu0 0
    %5996 = vmatpush1.bf16.xpose.msra.mxu0 0
    %5997 = vmatprep.mubr.bf16.mxu0 %v5920
    %5998 = vmatmul.mubr.bf16.gmra.mrb[0].mxu0 %v5919
    %v5999 = vpop.f32.mrb[0].mxu0
    %v6000 = vadd.f32 %v5960, %v5999
    %v6001 = vpop.f32.mrb[0].mxu0
    %v6002 = vpop.f32.mrb[0].mxu0
    %v6003 = vpop.f32.mrb[0].mxu0
    %6004 = vdwg.mxu0
    %vm6005 = vcmask 122880
    %6006 = vst.msk [vmem:[#allocation14] sm:$0x1] %vm6005, %v6000
    // Predicated region
    $region54: #{tpu_custom_call.1} parent=1 // pred_check
      _
    $region55: #{tpu_custom_call.1} parent=1 // pred_check_branch
      %6008 = sbr.rel (0) target = $region57
    $region56: #{tpu_custom_call.1} parent=1 // pred_region
      %s6010 = ssub.s32 16, 16
      %6011 = vsyncadd [#allocation5], %s6010
      %s6013 = sshll.u32 [#allocation14], 4
      %s6014 = int_to_ptr.vmem [resolvable:$true] %s6013
      %6016 = dma.vmem_to_hbm [thread:$0]  %s6014, 16, %s7, [#allocation5]
    $region57: #{tpu_custom_call.1} parent=1 // pred_fallthru
      _
    // Predicated region
    $region58: #{tpu_custom_call.1} parent=1 // pred_check
      _
    $region59: #{tpu_custom_call.1} parent=1 // pred_check_branch
      %6018 = sbr.rel (0) target = $region61
    $region60: #{tpu_custom_call.1} parent=1 // pred_region
      %6019 = dma.done [#allocation5], 16
    $region61: #{tpu_custom_call.1} parent=1 // pred_fallthru
      _
    %6020 = vsyncpa [#allocation4], 1
    %6021 = vsyncpa [#allocation7], 1
    %6022 = vsyncpa [#allocation10], 1
    %6023 = vsyncpa [#allocation13], 1
    %6024 = vsyncpa [#allocation5], 1

</llo_original>
